<compile_context>
chip_gen: v7x
topology: tpu7x:2x2x1
jax: 0.10.0
libtpu: 0.0.40
codegen_flags: <defaults>
</compile_context>

<pallas_src>
import math
import jax
import jax.numpy as jnp
from jax.experimental import pallas as pl
from jax.experimental.pallas import tpu as pltpu

# ---- model hyper-parameters (from the PyTorch module defaults) ----
INPUT_SIZE = 5
D_MODEL = 64
NHEAD = 4
HEAD_DIM = D_MODEL // NHEAD
NUM_LAYERS = 3
D_FF = 4 * D_MODEL
LN_EPS = 1e-5


def _layernorm(x, w, b):
    mu = jnp.mean(x, axis=-1, keepdims=True)
    var = jnp.mean((x - mu) ** 2, axis=-1, keepdims=True)
    return (x - mu) * jax.lax.rsqrt(var + LN_EPS) * w + b


# ------------------------------------------------------------------
# Fused kernel: embedding + positional encoding + NUM_LAYERS encoder
# layers.  One (TB, S, F) batch block per grid step ("parallel" axis).
#
# Packed operands (weights pre-transposed to (in, out), bf16 where used
# as MXU operands):
#   pe     : (S, D)  f32
#   w_emb  : (F, D)  bf16       b_emb : (1, D)   f32
#   w_qkv  : (L, D, 3D) bf16    b_qkv : (L, 1, 3D) f32
#   w_out  : (L, D, D)  bf16
#   vecs   : (L, 6, D)  f32  -> [b_out, ln1_w, ln1_b, ln2_w, ln2_b, b_ff2]
#   w_ff1  : (L, D, 4D) bf16    b_ff1 : (L, 1, 4D) f32
#   w_ff2  : (L, 4D, D) bf16
# ------------------------------------------------------------------
def itransformer_kernel(x_ref, pe_ref, w_emb_ref, b_emb_ref,
                        w_qkv_ref, b_qkv_ref, w_out_ref, vec_ref,
                        w_ff1_ref, b_ff1_ref, w_ff2_ref, o_ref):
    TB, S, F = x_ref.shape
    D = D_MODEL
    rows = TB * S
    scale = 1.0 / math.sqrt(HEAD_DIM)

    # ---- feature embedding + positional encoding (all TB*S rows at once) ----
    x = x_ref[...].reshape(rows, F).astype(jnp.bfloat16)
    h = jnp.dot(x, w_emb_ref[...], preferred_element_type=jnp.float32)
    h = h + b_emb_ref[...]
    h = (h.reshape(TB, S, D) + pe_ref[...][None]).reshape(rows, D)   # f32

    for l in range(NUM_LAYERS):                                      # static unroll
        vecs = vec_ref[l]                                            # (6, D)

        # ---- fused QKV projection: one 192-wide matmul ----
        qkv = jnp.dot(h.astype(jnp.bfloat16), w_qkv_ref[l],
                      preferred_element_type=jnp.float32)
        qkv = qkv + b_qkv_ref[l]                                     # (rows, 3D)

        def to_heads(t):                    # (rows, D) -> (NHEAD*TB, S, HD)
            t3 = t.reshape(TB, S, D)
            parts = [t3[..., hd * HEAD_DIM:(hd + 1) * HEAD_DIM]
                     for hd in range(NHEAD)]
            return jnp.stack(parts, axis=0).reshape(NHEAD * TB, S, HEAD_DIM)

        qh = to_heads(qkv[:, 0:D]).astype(jnp.bfloat16)
        kh = to_heads(qkv[:, D:2 * D]).astype(jnp.bfloat16)
        vh = to_heads(qkv[:, 2 * D:3 * D]).astype(jnp.bfloat16)

        # ---- head-batched attention (2 batched MXU ops, 2 XLU reductions) ----
        s = jnp.einsum('bqd,bkd->bqk', qh, kh,
                       preferred_element_type=jnp.float32) * scale   # (HB, S, S)
        s = s - jnp.max(s, axis=-1, keepdims=True)
        p = jnp.exp(s)
        p = p / jnp.sum(p, axis=-1, keepdims=True)                   # exact recip
        o = jnp.einsum('bqk,bkd->bqd', p.astype(jnp.bfloat16), vh,
                       preferred_element_type=jnp.float32)           # (HB, S, HD)

        # un-batch heads -> (rows, D), one full-width output projection
        o4 = o.reshape(NHEAD, TB, S, HEAD_DIM)
        ctx = jnp.concatenate([o4[hd] for hd in range(NHEAD)], axis=-1)
        ctx = ctx.reshape(rows, D)
        attn = jnp.dot(ctx.astype(jnp.bfloat16), w_out_ref[l],
                       preferred_element_type=jnp.float32) + vecs[0:1]

        # residual + LayerNorm 1 (post-norm), f32
        h = _layernorm(h + attn, vecs[1:2], vecs[2:3])

        # ---- feed-forward: Linear -> ReLU -> Linear ----
        f = jnp.dot(h.astype(jnp.bfloat16), w_ff1_ref[l],
                    preferred_element_type=jnp.float32)
        f = jnp.maximum(f + b_ff1_ref[l], 0.0)
        f = jnp.dot(f.astype(jnp.bfloat16), w_ff2_ref[l],
                    preferred_element_type=jnp.float32)
        f = f + vecs[5:6]

        # residual + LayerNorm 2
        h = _layernorm(h + f, vecs[3:4], vecs[4:5])

    o_ref[...] = h.reshape(TB, S, D)


# ------------------------------------------------------------------
# Wrapper
# ------------------------------------------------------------------
def _rep_spec(arr):
    nd = arr.ndim
    return pl.BlockSpec(arr.shape, lambda b, _nd=nd: (0,) * _nd)


def itransformer_forward(x, packed):
    B, S, F = x.shape
    # >=2 parallel grid steps when B allows (v7x: 2 TensorCores); block the
    # rest of the batch into each step to amortize per-step overhead.
    num_steps = 2 if (B >= 2 and B % 2 == 0) else 1
    TB = B // num_steps
    ordered = [packed[k] for k in
               ("pe", "w_emb", "b_emb", "w_qkv", "b_qkv", "w_out", "vecs",
                "w_ff1", "b_ff1", "w_ff2")]
    in_specs = [pl.BlockSpec((TB, S, F), lambda b: (b, 0, 0))]
    in_specs += [_rep_spec(p) for p in ordered]
    return pl.pallas_call(
        itransformer_kernel,
        out_shape=jax.ShapeDtypeStruct((B, S, D_MODEL), jnp.float32),
        grid=(num_steps,),
        in_specs=in_specs,
        out_specs=pl.BlockSpec((TB, S, D_MODEL), lambda b: (b, 0, 0)),
        compiler_params=pltpu.CompilerParams(
            dimension_semantics=("parallel",)),
    )(x, *ordered)


# ------------------------------------------------------------------
# One-time packing of PyTorch-style weights into the kernel layout
# (pre-transposed to (in, out), stacked over layers, matmul weights bf16).
# ------------------------------------------------------------------
def pack_params(weights):
    D = D_MODEL
    layers = weights["layers"]
    return {
        "pe": weights["pe"],                                              # (S, D)
        "w_emb": weights["w_emb"].T.astype(jnp.bfloat16),                 # (F, D)
        "b_emb": weights["b_emb"].reshape(1, D),                          # (1, D)
        "w_qkv": jnp.stack([p["w_in"].T for p in layers]
                           ).astype(jnp.bfloat16),                        # (L, D, 3D)
        "b_qkv": jnp.stack([p["b_in"].reshape(1, -1) for p in layers]),   # (L, 1, 3D)
        "w_out": jnp.stack([p["w_out"].T for p in layers]
                           ).astype(jnp.bfloat16),                        # (L, D, D)
        "vecs": jnp.stack([jnp.stack([
            p["b_out"].reshape(-1),
            p["ln1_w"].reshape(-1), p["ln1_b"].reshape(-1),
            p["ln2_w"].reshape(-1), p["ln2_b"].reshape(-1),
            p["b_ff2"].reshape(-1),
        ]) for p in layers]),                                             # (L, 6, D)
        "w_ff1": jnp.stack([p["w_ff1"].T for p in layers]
                           ).astype(jnp.bfloat16),                        # (L, D, 4D)
        "b_ff1": jnp.stack([p["b_ff1"].reshape(1, -1) for p in layers]),  # (L, 1, 4D)
        "w_ff2": jnp.stack([p["w_ff2"].T for p in layers]
                           ).astype(jnp.bfloat16),                        # (L, 4D, D)
    }


# ------------------------------------------------------------------
# Pure-JAX f32 reference (PyTorch-style weights) for a correctness check
# ------------------------------------------------------------------
def reference_forward(x, weights):
    x = jnp.einsum("bsf,df->bsd", x, weights["w_emb"]) + weights["b_emb"]
    x = x + weights["pe"][None]
    for p in weights["layers"]:
        qkv = jnp.einsum("bsd,ed->bse", x, p["w_in"]) + p["b_in"]
        q, k, v = (qkv[..., :D_MODEL], qkv[..., D_MODEL:2 * D_MODEL],
                   qkv[..., 2 * D_MODEL:])
        B, S, _ = x.shape
        qh = q.reshape(B, S, NHEAD, HEAD_DIM).transpose(0, 2, 1, 3)
        kh = k.reshape(B, S, NHEAD, HEAD_DIM).transpose(0, 2, 1, 3)
        vh = v.reshape(B, S, NHEAD, HEAD_DIM).transpose(0, 2, 1, 3)
        s = jnp.einsum("bhqd,bhkd->bhqk", qh, kh) / math.sqrt(HEAD_DIM)
        a = jax.nn.softmax(s, axis=-1)
        o = jnp.einsum("bhqk,bhkd->bhqd", a, vh).transpose(0, 2, 1, 3)
        o = o.reshape(B, S, D_MODEL)
        attn = jnp.einsum("bsd,ed->bse", o, p["w_out"]) + p["b_out"]
        x = _layernorm(x + attn, p["ln1_w"], p["ln1_b"])
        h1 = jax.nn.relu(jnp.einsum("bsd,ed->bse", x, p["w_ff1"]) + p["b_ff1"])
        h2 = jnp.einsum("bse,de->bsd", h1, p["w_ff2"]) + p["b_ff2"]
        x = _layernorm(x + h2, p["ln2_w"], p["ln2_b"])
    return x


# ------------------------------------------------------------------
# Deterministic parameter construction (PyTorch-style layouts)
# ------------------------------------------------------------------
def make_weights(key, seq_len):
    keys = iter(jax.random.split(key, 64))

    def rnd(shape, scale=0.05):
        return (scale * jax.random.normal(next(keys), shape)).astype(jnp.float32)

    position = jnp.arange(seq_len, dtype=jnp.float32)[:, None]
    div_term = jnp.exp(jnp.arange(0, D_MODEL, 2, dtype=jnp.float32)
                       * (-math.log(10000.0) / D_MODEL))
    pe = jnp.zeros((seq_len, D_MODEL), jnp.float32)
    pe = pe.at[:, 0::2].set(jnp.sin(position * div_term))
    pe = pe.at[:, 1::2].set(jnp.cos(position * div_term))

    weights = {
        "w_emb": rnd((D_MODEL, INPUT_SIZE)),
        "b_emb": rnd((1, D_MODEL)),
        "pe": pe,
        "layers": [],
    }
    for _ in range(NUM_LAYERS):
        weights["layers"].append({
            "w_in": rnd((3 * D_MODEL, D_MODEL)),
            "b_in": rnd((1, 3 * D_MODEL)),
            "w_out": rnd((D_MODEL, D_MODEL)),
            "b_out": rnd((1, D_MODEL)),
            "ln1_w": jnp.ones((1, D_MODEL), jnp.float32),
            "ln1_b": jnp.zeros((1, D_MODEL), jnp.float32),
            "w_ff1": rnd((D_FF, D_MODEL)),
            "b_ff1": rnd((1, D_FF)),
            "w_ff2": rnd((D_MODEL, D_FF)),
            "b_ff2": rnd((1, D_MODEL)),
            "ln2_w": jnp.ones((1, D_MODEL), jnp.float32),
            "ln2_b": jnp.zeros((1, D_MODEL), jnp.float32),
        })
    return weights


if __name__ == "__main__":
    key = jax.random.PRNGKey(0)
    kx, kw = jax.random.split(key)

    batch, seq_len = 2, 8
    x = jax.random.normal(kx, (batch, seq_len, INPUT_SIZE), dtype=jnp.float32)
    weights = make_weights(kw, seq_len)
    packed = pack_params(weights)                 # one-time layout plumbing

    out = jax.block_until_ready(itransformer_forward(x, packed))
    ref = jax.block_until_ready(reference_forward(x, weights))

    assert out.shape == (batch, seq_len, D_MODEL)
    # Tolerance budget is spent on bf16 MXU operands (f32 accumulation, f32
    # LayerNorm/softmax); outputs are post-LN O(1) so 2e-2 abs/rel is ample.
    assert jnp.allclose(out, ref, atol=2e-2, rtol=2e-2), "mismatch vs reference"

    print("KERNEL_OK")
</pallas_src>

<mosaic_0001>
module attributes {stable_mosaic.version = 11 : i64} {
  func.func @itransformer_kernel(%arg0: i32, %arg1: memref<1x8x5xf32, #tpu.memory_space<vmem>>, %arg2: memref<8x64xf32, #tpu.memory_space<vmem>>, %arg3: memref<5x64xbf16, #tpu.memory_space<vmem>>, %arg4: memref<1x64xf32, #tpu.memory_space<vmem>>, %arg5: memref<3x64x192xbf16, #tpu.memory_space<vmem>>, %arg6: memref<3x1x192xf32, #tpu.memory_space<vmem>>, %arg7: memref<3x64x64xbf16, #tpu.memory_space<vmem>>, %arg8: memref<3x6x64xf32, #tpu.memory_space<vmem>>, %arg9: memref<3x64x256xbf16, #tpu.memory_space<vmem>>, %arg10: memref<3x1x256xf32, #tpu.memory_space<vmem>>, %arg11: memref<3x256x64xbf16, #tpu.memory_space<vmem>>, %arg12: memref<1x8x64xf32, #tpu.memory_space<vmem>>) attributes {dimension_semantics = [#tpu.dimension_semantics<parallel>], iteration_bounds = array<i64: 2>, scalar_prefetch = 0 : i64, scratch_operands = 0 : i64, tpu.core_type = #tpu.core_type<tc>, window_params = [{transform_indices = @transform_0, window_bounds = array<i64: 1, 8, 5>}, {pipeline_mode = #tpu.pipeline_mode<synchronous>, transform_indices = @transform_1, window_bounds = array<i64: 8, 64>}, {pipeline_mode = #tpu.pipeline_mode<synchronous>, transform_indices = @transform_2, window_bounds = array<i64: 5, 64>}, {pipeline_mode = #tpu.pipeline_mode<synchronous>, transform_indices = @transform_3, window_bounds = array<i64: 1, 64>}, {pipeline_mode = #tpu.pipeline_mode<synchronous>, transform_indices = @transform_4, window_bounds = array<i64: 3, 64, 192>}, {pipeline_mode = #tpu.pipeline_mode<synchronous>, transform_indices = @transform_5, window_bounds = array<i64: 3, 1, 192>}, {pipeline_mode = #tpu.pipeline_mode<synchronous>, transform_indices = @transform_6, window_bounds = array<i64: 3, 64, 64>}, {pipeline_mode = #tpu.pipeline_mode<synchronous>, transform_indices = @transform_7, window_bounds = array<i64: 3, 6, 64>}, {pipeline_mode = #tpu.pipeline_mode<synchronous>, transform_indices = @transform_8, window_bounds = array<i64: 3, 64, 256>}, {pipeline_mode = #tpu.pipeline_mode<synchronous>, transform_indices = @transform_9, window_bounds = array<i64: 3, 1, 256>}, {pipeline_mode = #tpu.pipeline_mode<synchronous>, transform_indices = @transform_10, window_bounds = array<i64: 3, 256, 64>}, {transform_indices = @transform_11, window_bounds = array<i64: 1, 8, 64>}]} {
    %c0 = arith.constant 0 : index
    %c0_0 = arith.constant 0 : index
    %c0_1 = arith.constant 0 : index
    %0 = vector.load %arg1[%c0, %c0_0, %c0_1] : memref<1x8x5xf32, #tpu.memory_space<vmem>>, vector<1x8x5xf32>
    %1 = vector.shape_cast %0 : vector<1x8x5xf32> to vector<8x5xf32>
    %2 = arith.truncf %1 : vector<8x5xf32> to vector<8x5xbf16>
    %c0_2 = arith.constant 0 : index
    %c0_3 = arith.constant 0 : index
    %3 = vector.load %arg3[%c0_2, %c0_3] : memref<5x64xbf16, #tpu.memory_space<vmem>>, vector<5x64xbf16>
    %cst = arith.constant dense<0.000000e+00> : vector<8x64xf32>
    %4 = tpu.matmul %2, %3, %cst {dimension_numbers = #tpu.dot_dimension_numbers<[1], [0], [0], [1], [0, 0, 1, 1], [], []>} : vector<8x5xbf16>, vector<5x64xbf16>, vector<8x64xf32> -> vector<8x64xf32>
    %c0_4 = arith.constant 0 : index
    %c0_5 = arith.constant 0 : index
    %5 = vector.load %arg4[%c0_4, %c0_5] : memref<1x64xf32, #tpu.memory_space<vmem>>, vector<1x64xf32>
    %6 = vector.broadcast %5 : vector<1x64xf32> to vector<8x64xf32>
    %7 = arith.addf %4, %6 : vector<8x64xf32>
    %8 = vector.shape_cast %7 : vector<8x64xf32> to vector<1x8x64xf32>
    %c0_6 = arith.constant 0 : index
    %c0_7 = arith.constant 0 : index
    %9 = vector.load %arg2[%c0_6, %c0_7] : memref<8x64xf32, #tpu.memory_space<vmem>>, vector<8x64xf32>
    %10 = vector.shape_cast %9 : vector<8x64xf32> to vector<1x8x64xf32>
    %11 = arith.addf %8, %10 : vector<1x8x64xf32>
    %12 = vector.shape_cast %11 : vector<1x8x64xf32> to vector<8x64xf32>
    %c0_8 = arith.constant 0 : index
    %c0_9 = arith.constant 0 : index
    %c0_10 = arith.constant 0 : index
    %13 = vector.load %arg8[%c0_8, %c0_9, %c0_10] : memref<3x6x64xf32, #tpu.memory_space<vmem>>, vector<1x6x64xf32>
    %14 = vector.shape_cast %13 : vector<1x6x64xf32> to vector<6x64xf32>
    %15 = arith.truncf %12 : vector<8x64xf32> to vector<8x64xbf16>
    %c0_11 = arith.constant 0 : index
    %c0_12 = arith.constant 0 : index
    %c0_13 = arith.constant 0 : index
    %16 = vector.load %arg5[%c0_11, %c0_12, %c0_13] : memref<3x64x192xbf16, #tpu.memory_space<vmem>>, vector<1x64x192xbf16>
    %17 = vector.shape_cast %16 : vector<1x64x192xbf16> to vector<64x192xbf16>
    %cst_14 = arith.constant dense<0.000000e+00> : vector<8x192xf32>
    %18 = tpu.matmul %15, %17, %cst_14 {dimension_numbers = #tpu.dot_dimension_numbers<[1], [0], [0], [1], [0, 0, 1, 1], [], []>} : vector<8x64xbf16>, vector<64x192xbf16>, vector<8x192xf32> -> vector<8x192xf32>
    %c0_15 = arith.constant 0 : index
    %c0_16 = arith.constant 0 : index
    %c0_17 = arith.constant 0 : index
    %19 = vector.load %arg6[%c0_15, %c0_16, %c0_17] : memref<3x1x192xf32, #tpu.memory_space<vmem>>, vector<1x1x192xf32>
    %20 = vector.shape_cast %19 : vector<1x1x192xf32> to vector<1x192xf32>
    %21 = vector.broadcast %20 : vector<1x192xf32> to vector<8x192xf32>
    %22 = arith.addf %18, %21 : vector<8x192xf32>
    %23 = vector.extract_strided_slice %22 {offsets = [0, 0], sizes = [8, 64], strides = [1, 1]} : vector<8x192xf32> to vector<8x64xf32>
    %24 = vector.shape_cast %23 : vector<8x64xf32> to vector<1x8x64xf32>
    %25 = vector.extract_strided_slice %24 {offsets = [0, 0, 0], sizes = [1, 8, 16], strides = [1, 1, 1]} : vector<1x8x64xf32> to vector<1x8x16xf32>
    %26 = vector.extract_strided_slice %24 {offsets = [0, 0, 16], sizes = [1, 8, 16], strides = [1, 1, 1]} : vector<1x8x64xf32> to vector<1x8x16xf32>
    %27 = vector.extract_strided_slice %24 {offsets = [0, 0, 32], sizes = [1, 8, 16], strides = [1, 1, 1]} : vector<1x8x64xf32> to vector<1x8x16xf32>
    %28 = vector.extract_strided_slice %24 {offsets = [0, 0, 48], sizes = [1, 8, 16], strides = [1, 1, 1]} : vector<1x8x64xf32> to vector<1x8x16xf32>
    %29 = vector.shape_cast %25 : vector<1x8x16xf32> to vector<1x1x8x16xf32>
    %30 = vector.shape_cast %26 : vector<1x8x16xf32> to vector<1x1x8x16xf32>
    %31 = vector.shape_cast %27 : vector<1x8x16xf32> to vector<1x1x8x16xf32>
    %32 = vector.shape_cast %28 : vector<1x8x16xf32> to vector<1x1x8x16xf32>
    %33 = tpu.concatenate %29, %30, %31, %32 in 0 : vector<1x1x8x16xf32>, vector<1x1x8x16xf32>, vector<1x1x8x16xf32>, vector<1x1x8x16xf32> -> vector<4x1x8x16xf32>
    %34 = vector.shape_cast %33 : vector<4x1x8x16xf32> to vector<4x8x16xf32>
    %35 = arith.truncf %34 : vector<4x8x16xf32> to vector<4x8x16xbf16>
    %36 = vector.extract_strided_slice %22 {offsets = [0, 64], sizes = [8, 64], strides = [1, 1]} : vector<8x192xf32> to vector<8x64xf32>
    %37 = vector.shape_cast %36 : vector<8x64xf32> to vector<1x8x64xf32>
    %38 = vector.extract_strided_slice %37 {offsets = [0, 0, 0], sizes = [1, 8, 16], strides = [1, 1, 1]} : vector<1x8x64xf32> to vector<1x8x16xf32>
    %39 = vector.extract_strided_slice %37 {offsets = [0, 0, 16], sizes = [1, 8, 16], strides = [1, 1, 1]} : vector<1x8x64xf32> to vector<1x8x16xf32>
    %40 = vector.extract_strided_slice %37 {offsets = [0, 0, 32], sizes = [1, 8, 16], strides = [1, 1, 1]} : vector<1x8x64xf32> to vector<1x8x16xf32>
    %41 = vector.extract_strided_slice %37 {offsets = [0, 0, 48], sizes = [1, 8, 16], strides = [1, 1, 1]} : vector<1x8x64xf32> to vector<1x8x16xf32>
    %42 = vector.shape_cast %38 : vector<1x8x16xf32> to vector<1x1x8x16xf32>
    %43 = vector.shape_cast %39 : vector<1x8x16xf32> to vector<1x1x8x16xf32>
    %44 = vector.shape_cast %40 : vector<1x8x16xf32> to vector<1x1x8x16xf32>
    %45 = vector.shape_cast %41 : vector<1x8x16xf32> to vector<1x1x8x16xf32>
    %46 = tpu.concatenate %42, %43, %44, %45 in 0 : vector<1x1x8x16xf32>, vector<1x1x8x16xf32>, vector<1x1x8x16xf32>, vector<1x1x8x16xf32> -> vector<4x1x8x16xf32>
    %47 = vector.shape_cast %46 : vector<4x1x8x16xf32> to vector<4x8x16xf32>
    %48 = arith.truncf %47 : vector<4x8x16xf32> to vector<4x8x16xbf16>
    %49 = vector.extract_strided_slice %22 {offsets = [0, 128], sizes = [8, 64], strides = [1, 1]} : vector<8x192xf32> to vector<8x64xf32>
    %50 = vector.shape_cast %49 : vector<8x64xf32> to vector<1x8x64xf32>
    %51 = vector.extract_strided_slice %50 {offsets = [0, 0, 0], sizes = [1, 8, 16], strides = [1, 1, 1]} : vector<1x8x64xf32> to vector<1x8x16xf32>
    %52 = vector.extract_strided_slice %50 {offsets = [0, 0, 16], sizes = [1, 8, 16], strides = [1, 1, 1]} : vector<1x8x64xf32> to vector<1x8x16xf32>
    %53 = vector.extract_strided_slice %50 {offsets = [0, 0, 32], sizes = [1, 8, 16], strides = [1, 1, 1]} : vector<1x8x64xf32> to vector<1x8x16xf32>
    %54 = vector.extract_strided_slice %50 {offsets = [0, 0, 48], sizes = [1, 8, 16], strides = [1, 1, 1]} : vector<1x8x64xf32> to vector<1x8x16xf32>
    %55 = vector.shape_cast %51 : vector<1x8x16xf32> to vector<1x1x8x16xf32>
    %56 = vector.shape_cast %52 : vector<1x8x16xf32> to vector<1x1x8x16xf32>
    %57 = vector.shape_cast %53 : vector<1x8x16xf32> to vector<1x1x8x16xf32>
    %58 = vector.shape_cast %54 : vector<1x8x16xf32> to vector<1x1x8x16xf32>
    %59 = tpu.concatenate %55, %56, %57, %58 in 0 : vector<1x1x8x16xf32>, vector<1x1x8x16xf32>, vector<1x1x8x16xf32>, vector<1x1x8x16xf32> -> vector<4x1x8x16xf32>
    %60 = vector.shape_cast %59 : vector<4x1x8x16xf32> to vector<4x8x16xf32>
    %61 = arith.truncf %60 : vector<4x8x16xf32> to vector<4x8x16xbf16>
    "tpu.trace_start"() <{level = 10 : i32, message = "bqd,bkd->bqk"}> : () -> ()
    %cst_18 = arith.constant dense<0.000000e+00> : vector<4x8x8xf32>
    %62 = tpu.matmul %35, %48, %cst_18 {dimension_numbers = #tpu.dot_dimension_numbers<[2], [2], [1], [1], [0, 0, 0, 1, 1, 1], [0], [0]>} : vector<4x8x16xbf16>, vector<4x8x16xbf16>, vector<4x8x8xf32> -> vector<4x8x8xf32>
    "tpu.trace_stop"() : () -> ()
    %cst_19 = arith.constant 2.500000e-01 : f32
    %63 = vector.broadcast %cst_19 : f32 to vector<4x8x8xf32>
    %64 = arith.mulf %62, %63 : vector<4x8x8xf32>
    %cst_20 = arith.constant dense<0xFF800000> : vector<4x8xf32>
    %65 = vector.multi_reduction <maximumf>, %64, %cst_20 [2] : vector<4x8x8xf32> to vector<4x8xf32>
    %66 = vector.shape_cast %65 : vector<4x8xf32> to vector<4x8x1xf32>
    %67 = vector.broadcast %66 : vector<4x8x1xf32> to vector<4x8x8xf32>
    %68 = arith.subf %64, %67 : vector<4x8x8xf32>
    %69 = math.exp %68 : vector<4x8x8xf32>
    %cst_21 = arith.constant dense<0.000000e+00> : vector<4x8xf32>
    %70 = vector.multi_reduction <add>, %69, %cst_21 [2] : vector<4x8x8xf32> to vector<4x8xf32>
    %71 = vector.shape_cast %70 : vector<4x8xf32> to vector<4x8x1xf32>
    %72 = vector.broadcast %71 : vector<4x8x1xf32> to vector<4x8x8xf32>
    %73 = arith.divf %69, %72 : vector<4x8x8xf32>
    %74 = arith.truncf %73 : vector<4x8x8xf32> to vector<4x8x8xbf16>
    "tpu.trace_start"() <{level = 10 : i32, message = "bqk,bkd->bqd"}> : () -> ()
    %cst_22 = arith.constant dense<0.000000e+00> : vector<4x8x16xf32>
    %75 = tpu.matmul %74, %61, %cst_22 {dimension_numbers = #tpu.dot_dimension_numbers<[2], [1], [1], [2], [0, 0, 0, 1, 1, 2], [0], [0]>} : vector<4x8x8xbf16>, vector<4x8x16xbf16>, vector<4x8x16xf32> -> vector<4x8x16xf32>
    "tpu.trace_stop"() : () -> ()
    %76 = vector.shape_cast %75 : vector<4x8x16xf32> to vector<4x1x8x16xf32>
    %77 = vector.extract_strided_slice %76 {offsets = [0, 0, 0, 0], sizes = [1, 1, 8, 16], strides = [1, 1, 1, 1]} : vector<4x1x8x16xf32> to vector<1x1x8x16xf32>
    %78 = vector.shape_cast %77 : vector<1x1x8x16xf32> to vector<1x8x16xf32>
    %79 = vector.extract_strided_slice %76 {offsets = [1, 0, 0, 0], sizes = [1, 1, 8, 16], strides = [1, 1, 1, 1]} : vector<4x1x8x16xf32> to vector<1x1x8x16xf32>
    %80 = vector.shape_cast %79 : vector<1x1x8x16xf32> to vector<1x8x16xf32>
    %81 = vector.extract_strided_slice %76 {offsets = [2, 0, 0, 0], sizes = [1, 1, 8, 16], strides = [1, 1, 1, 1]} : vector<4x1x8x16xf32> to vector<1x1x8x16xf32>
    %82 = vector.shape_cast %81 : vector<1x1x8x16xf32> to vector<1x8x16xf32>
    %83 = vector.extract_strided_slice %76 {offsets = [3, 0, 0, 0], sizes = [1, 1, 8, 16], strides = [1, 1, 1, 1]} : vector<4x1x8x16xf32> to vector<1x1x8x16xf32>
    %84 = vector.shape_cast %83 : vector<1x1x8x16xf32> to vector<1x8x16xf32>
    %85 = tpu.concatenate %78, %80, %82, %84 in 2 : vector<1x8x16xf32>, vector<1x8x16xf32>, vector<1x8x16xf32>, vector<1x8x16xf32> -> vector<1x8x64xf32>
    %86 = vector.shape_cast %85 : vector<1x8x64xf32> to vector<8x64xf32>
    %87 = arith.truncf %86 : vector<8x64xf32> to vector<8x64xbf16>
    %c0_23 = arith.constant 0 : index
    %c0_24 = arith.constant 0 : index
    %c0_25 = arith.constant 0 : index
    %88 = vector.load %arg7[%c0_23, %c0_24, %c0_25] : memref<3x64x64xbf16, #tpu.memory_space<vmem>>, vector<1x64x64xbf16>
    %89 = vector.shape_cast %88 : vector<1x64x64xbf16> to vector<64x64xbf16>
    %cst_26 = arith.constant dense<0.000000e+00> : vector<8x64xf32>
    %90 = tpu.matmul %87, %89, %cst_26 {dimension_numbers = #tpu.dot_dimension_numbers<[1], [0], [0], [1], [0, 0, 1, 1], [], []>} : vector<8x64xbf16>, vector<64x64xbf16>, vector<8x64xf32> -> vector<8x64xf32>
    %91 = vector.extract_strided_slice %14 {offsets = [0, 0], sizes = [1, 64], strides = [1, 1]} : vector<6x64xf32> to vector<1x64xf32>
    %92 = vector.broadcast %91 : vector<1x64xf32> to vector<8x64xf32>
    %93 = arith.addf %90, %92 : vector<8x64xf32>
    %94 = arith.addf %12, %93 : vector<8x64xf32>
    %95 = vector.extract_strided_slice %14 {offsets = [1, 0], sizes = [1, 64], strides = [1, 1]} : vector<6x64xf32> to vector<1x64xf32>
    %96 = vector.extract_strided_slice %14 {offsets = [2, 0], sizes = [1, 64], strides = [1, 1]} : vector<6x64xf32> to vector<1x64xf32>
    %cst_27 = arith.constant dense<0.000000e+00> : vector<8xf32>
    %97 = vector.multi_reduction <add>, %94, %cst_27 [1] : vector<8x64xf32> to vector<8xf32>
    %98 = vector.shape_cast %97 : vector<8xf32> to vector<8x1xf32>
    %cst_28 = arith.constant 6.400000e+01 : f32
    %99 = vector.broadcast %cst_28 : f32 to vector<8x1xf32>
    %100 = arith.divf %98, %99 : vector<8x1xf32>
    %101 = vector.broadcast %100 : vector<8x1xf32> to vector<8x64xf32>
    %102 = arith.subf %94, %101 : vector<8x64xf32>
    %103 = arith.mulf %102, %102 : vector<8x64xf32>
    %cst_29 = arith.constant dense<0.000000e+00> : vector<8xf32>
    %104 = vector.multi_reduction <add>, %103, %cst_29 [1] : vector<8x64xf32> to vector<8xf32>
    %105 = vector.shape_cast %104 : vector<8xf32> to vector<8x1xf32>
    %cst_30 = arith.constant 6.400000e+01 : f32
    %106 = vector.broadcast %cst_30 : f32 to vector<8x1xf32>
    %107 = arith.divf %105, %106 : vector<8x1xf32>
    %108 = vector.broadcast %100 : vector<8x1xf32> to vector<8x64xf32>
    %109 = arith.subf %94, %108 : vector<8x64xf32>
    %cst_31 = arith.constant 9.99999974E-6 : f32
    %110 = vector.broadcast %cst_31 : f32 to vector<8x1xf32>
    %111 = arith.addf %107, %110 : vector<8x1xf32>
    %112 = math.rsqrt %111 : vector<8x1xf32>
    %113 = vector.broadcast %112 : vector<8x1xf32> to vector<8x64xf32>
    %114 = arith.mulf %109, %113 : vector<8x64xf32>
    %115 = vector.broadcast %95 : vector<1x64xf32> to vector<8x64xf32>
    %116 = arith.mulf %114, %115 : vector<8x64xf32>
    %117 = vector.broadcast %96 : vector<1x64xf32> to vector<8x64xf32>
    %118 = arith.addf %116, %117 : vector<8x64xf32>
    %119 = arith.truncf %118 : vector<8x64xf32> to vector<8x64xbf16>
    %c0_32 = arith.constant 0 : index
    %c0_33 = arith.constant 0 : index
    %c0_34 = arith.constant 0 : index
    %120 = vector.load %arg9[%c0_32, %c0_33, %c0_34] : memref<3x64x256xbf16, #tpu.memory_space<vmem>>, vector<1x64x256xbf16>
    %121 = vector.shape_cast %120 : vector<1x64x256xbf16> to vector<64x256xbf16>
    %cst_35 = arith.constant dense<0.000000e+00> : vector<8x256xf32>
    %122 = tpu.matmul %119, %121, %cst_35 {dimension_numbers = #tpu.dot_dimension_numbers<[1], [0], [0], [1], [0, 0, 1, 1], [], []>} : vector<8x64xbf16>, vector<64x256xbf16>, vector<8x256xf32> -> vector<8x256xf32>
    %c0_36 = arith.constant 0 : index
    %c0_37 = arith.constant 0 : index
    %c0_38 = arith.constant 0 : index
    %123 = vector.load %arg10[%c0_36, %c0_37, %c0_38] : memref<3x1x256xf32, #tpu.memory_space<vmem>>, vector<1x1x256xf32>
    %124 = vector.shape_cast %123 : vector<1x1x256xf32> to vector<1x256xf32>
    %125 = vector.broadcast %124 : vector<1x256xf32> to vector<8x256xf32>
    %126 = arith.addf %122, %125 : vector<8x256xf32>
    %cst_39 = arith.constant 0.000000e+00 : f32
    %127 = vector.broadcast %cst_39 : f32 to vector<8x256xf32>
    %128 = arith.maximumf %126, %127 : vector<8x256xf32>
    %129 = arith.truncf %128 : vector<8x256xf32> to vector<8x256xbf16>
    %c0_40 = arith.constant 0 : index
    %c0_41 = arith.constant 0 : index
    %c0_42 = arith.constant 0 : index
    %130 = vector.load %arg11[%c0_40, %c0_41, %c0_42] : memref<3x256x64xbf16, #tpu.memory_space<vmem>>, vector<1x256x64xbf16>
    %131 = vector.shape_cast %130 : vector<1x256x64xbf16> to vector<256x64xbf16>
    %cst_43 = arith.constant dense<0.000000e+00> : vector<8x64xf32>
    %132 = tpu.matmul %129, %131, %cst_43 {dimension_numbers = #tpu.dot_dimension_numbers<[1], [0], [0], [1], [0, 0, 1, 1], [], []>} : vector<8x256xbf16>, vector<256x64xbf16>, vector<8x64xf32> -> vector<8x64xf32>
    %133 = vector.extract_strided_slice %14 {offsets = [5, 0], sizes = [1, 64], strides = [1, 1]} : vector<6x64xf32> to vector<1x64xf32>
    %134 = vector.broadcast %133 : vector<1x64xf32> to vector<8x64xf32>
    %135 = arith.addf %132, %134 : vector<8x64xf32>
    %136 = arith.addf %118, %135 : vector<8x64xf32>
    %137 = vector.extract_strided_slice %14 {offsets = [3, 0], sizes = [1, 64], strides = [1, 1]} : vector<6x64xf32> to vector<1x64xf32>
    %138 = vector.extract_strided_slice %14 {offsets = [4, 0], sizes = [1, 64], strides = [1, 1]} : vector<6x64xf32> to vector<1x64xf32>
    %cst_44 = arith.constant dense<0.000000e+00> : vector<8xf32>
    %139 = vector.multi_reduction <add>, %136, %cst_44 [1] : vector<8x64xf32> to vector<8xf32>
    %140 = vector.shape_cast %139 : vector<8xf32> to vector<8x1xf32>
    %cst_45 = arith.constant 6.400000e+01 : f32
    %141 = vector.broadcast %cst_45 : f32 to vector<8x1xf32>
    %142 = arith.divf %140, %141 : vector<8x1xf32>
    %143 = vector.broadcast %142 : vector<8x1xf32> to vector<8x64xf32>
    %144 = arith.subf %136, %143 : vector<8x64xf32>
    %145 = arith.mulf %144, %144 : vector<8x64xf32>
    %cst_46 = arith.constant dense<0.000000e+00> : vector<8xf32>
    %146 = vector.multi_reduction <add>, %145, %cst_46 [1] : vector<8x64xf32> to vector<8xf32>
    %147 = vector.shape_cast %146 : vector<8xf32> to vector<8x1xf32>
    %cst_47 = arith.constant 6.400000e+01 : f32
    %148 = vector.broadcast %cst_47 : f32 to vector<8x1xf32>
    %149 = arith.divf %147, %148 : vector<8x1xf32>
    %150 = vector.broadcast %142 : vector<8x1xf32> to vector<8x64xf32>
    %151 = arith.subf %136, %150 : vector<8x64xf32>
    %cst_48 = arith.constant 9.99999974E-6 : f32
    %152 = vector.broadcast %cst_48 : f32 to vector<8x1xf32>
    %153 = arith.addf %149, %152 : vector<8x1xf32>
    %154 = math.rsqrt %153 : vector<8x1xf32>
    %155 = vector.broadcast %154 : vector<8x1xf32> to vector<8x64xf32>
    %156 = arith.mulf %151, %155 : vector<8x64xf32>
    %157 = vector.broadcast %137 : vector<1x64xf32> to vector<8x64xf32>
    %158 = arith.mulf %156, %157 : vector<8x64xf32>
    %159 = vector.broadcast %138 : vector<1x64xf32> to vector<8x64xf32>
    %160 = arith.addf %158, %159 : vector<8x64xf32>
    %c1 = arith.constant 1 : index
    %c0_49 = arith.constant 0 : index
    %c0_50 = arith.constant 0 : index
    %161 = vector.load %arg8[%c1, %c0_49, %c0_50] : memref<3x6x64xf32, #tpu.memory_space<vmem>>, vector<1x6x64xf32>
    %162 = vector.shape_cast %161 : vector<1x6x64xf32> to vector<6x64xf32>
    %163 = arith.truncf %160 : vector<8x64xf32> to vector<8x64xbf16>
    %c1_51 = arith.constant 1 : index
    %c0_52 = arith.constant 0 : index
    %c0_53 = arith.constant 0 : index
    %164 = vector.load %arg5[%c1_51, %c0_52, %c0_53] : memref<3x64x192xbf16, #tpu.memory_space<vmem>>, vector<1x64x192xbf16>
    %165 = vector.shape_cast %164 : vector<1x64x192xbf16> to vector<64x192xbf16>
    %cst_54 = arith.constant dense<0.000000e+00> : vector<8x192xf32>
    %166 = tpu.matmul %163, %165, %cst_54 {dimension_numbers = #tpu.dot_dimension_numbers<[1], [0], [0], [1], [0, 0, 1, 1], [], []>} : vector<8x64xbf16>, vector<64x192xbf16>, vector<8x192xf32> -> vector<8x192xf32>
    %c1_55 = arith.constant 1 : index
    %c0_56 = arith.constant 0 : index
    %c0_57 = arith.constant 0 : index
    %167 = vector.load %arg6[%c1_55, %c0_56, %c0_57] : memref<3x1x192xf32, #tpu.memory_space<vmem>>, vector<1x1x192xf32>
    %168 = vector.shape_cast %167 : vector<1x1x192xf32> to vector<1x192xf32>
    %169 = vector.broadcast %168 : vector<1x192xf32> to vector<8x192xf32>
    %170 = arith.addf %166, %169 : vector<8x192xf32>
    %171 = vector.extract_strided_slice %170 {offsets = [0, 0], sizes = [8, 64], strides = [1, 1]} : vector<8x192xf32> to vector<8x64xf32>
    %172 = vector.shape_cast %171 : vector<8x64xf32> to vector<1x8x64xf32>
    %173 = vector.extract_strided_slice %172 {offsets = [0, 0, 0], sizes = [1, 8, 16], strides = [1, 1, 1]} : vector<1x8x64xf32> to vector<1x8x16xf32>
    %174 = vector.extract_strided_slice %172 {offsets = [0, 0, 16], sizes = [1, 8, 16], strides = [1, 1, 1]} : vector<1x8x64xf32> to vector<1x8x16xf32>
    %175 = vector.extract_strided_slice %172 {offsets = [0, 0, 32], sizes = [1, 8, 16], strides = [1, 1, 1]} : vector<1x8x64xf32> to vector<1x8x16xf32>
    %176 = vector.extract_strided_slice %172 {offsets = [0, 0, 48], sizes = [1, 8, 16], strides = [1, 1, 1]} : vector<1x8x64xf32> to vector<1x8x16xf32>
    %177 = vector.shape_cast %173 : vector<1x8x16xf32> to vector<1x1x8x16xf32>
    %178 = vector.shape_cast %174 : vector<1x8x16xf32> to vector<1x1x8x16xf32>
    %179 = vector.shape_cast %175 : vector<1x8x16xf32> to vector<1x1x8x16xf32>
    %180 = vector.shape_cast %176 : vector<1x8x16xf32> to vector<1x1x8x16xf32>
    %181 = tpu.concatenate %177, %178, %179, %180 in 0 : vector<1x1x8x16xf32>, vector<1x1x8x16xf32>, vector<1x1x8x16xf32>, vector<1x1x8x16xf32> -> vector<4x1x8x16xf32>
    %182 = vector.shape_cast %181 : vector<4x1x8x16xf32> to vector<4x8x16xf32>
    %183 = arith.truncf %182 : vector<4x8x16xf32> to vector<4x8x16xbf16>
    %184 = vector.extract_strided_slice %170 {offsets = [0, 64], sizes = [8, 64], strides = [1, 1]} : vector<8x192xf32> to vector<8x64xf32>
    %185 = vector.shape_cast %184 : vector<8x64xf32> to vector<1x8x64xf32>
    %186 = vector.extract_strided_slice %185 {offsets = [0, 0, 0], sizes = [1, 8, 16], strides = [1, 1, 1]} : vector<1x8x64xf32> to vector<1x8x16xf32>
    %187 = vector.extract_strided_slice %185 {offsets = [0, 0, 16], sizes = [1, 8, 16], strides = [1, 1, 1]} : vector<1x8x64xf32> to vector<1x8x16xf32>
    %188 = vector.extract_strided_slice %185 {offsets = [0, 0, 32], sizes = [1, 8, 16], strides = [1, 1, 1]} : vector<1x8x64xf32> to vector<1x8x16xf32>
    %189 = vector.extract_strided_slice %185 {offsets = [0, 0, 48], sizes = [1, 8, 16], strides = [1, 1, 1]} : vector<1x8x64xf32> to vector<1x8x16xf32>
    %190 = vector.shape_cast %186 : vector<1x8x16xf32> to vector<1x1x8x16xf32>
    %191 = vector.shape_cast %187 : vector<1x8x16xf32> to vector<1x1x8x16xf32>
    %192 = vector.shape_cast %188 : vector<1x8x16xf32> to vector<1x1x8x16xf32>
    %193 = vector.shape_cast %189 : vector<1x8x16xf32> to vector<1x1x8x16xf32>
    %194 = tpu.concatenate %190, %191, %192, %193 in 0 : vector<1x1x8x16xf32>, vector<1x1x8x16xf32>, vector<1x1x8x16xf32>, vector<1x1x8x16xf32> -> vector<4x1x8x16xf32>
    %195 = vector.shape_cast %194 : vector<4x1x8x16xf32> to vector<4x8x16xf32>
    %196 = arith.truncf %195 : vector<4x8x16xf32> to vector<4x8x16xbf16>
    %197 = vector.extract_strided_slice %170 {offsets = [0, 128], sizes = [8, 64], strides = [1, 1]} : vector<8x192xf32> to vector<8x64xf32>
    %198 = vector.shape_cast %197 : vector<8x64xf32> to vector<1x8x64xf32>
    %199 = vector.extract_strided_slice %198 {offsets = [0, 0, 0], sizes = [1, 8, 16], strides = [1, 1, 1]} : vector<1x8x64xf32> to vector<1x8x16xf32>
    %200 = vector.extract_strided_slice %198 {offsets = [0, 0, 16], sizes = [1, 8, 16], strides = [1, 1, 1]} : vector<1x8x64xf32> to vector<1x8x16xf32>
    %201 = vector.extract_strided_slice %198 {offsets = [0, 0, 32], sizes = [1, 8, 16], strides = [1, 1, 1]} : vector<1x8x64xf32> to vector<1x8x16xf32>
    %202 = vector.extract_strided_slice %198 {offsets = [0, 0, 48], sizes = [1, 8, 16], strides = [1, 1, 1]} : vector<1x8x64xf32> to vector<1x8x16xf32>
    %203 = vector.shape_cast %199 : vector<1x8x16xf32> to vector<1x1x8x16xf32>
    %204 = vector.shape_cast %200 : vector<1x8x16xf32> to vector<1x1x8x16xf32>
    %205 = vector.shape_cast %201 : vector<1x8x16xf32> to vector<1x1x8x16xf32>
    %206 = vector.shape_cast %202 : vector<1x8x16xf32> to vector<1x1x8x16xf32>
    %207 = tpu.concatenate %203, %204, %205, %206 in 0 : vector<1x1x8x16xf32>, vector<1x1x8x16xf32>, vector<1x1x8x16xf32>, vector<1x1x8x16xf32> -> vector<4x1x8x16xf32>
    %208 = vector.shape_cast %207 : vector<4x1x8x16xf32> to vector<4x8x16xf32>
    %209 = arith.truncf %208 : vector<4x8x16xf32> to vector<4x8x16xbf16>
    "tpu.trace_start"() <{level = 10 : i32, message = "bqd,bkd->bqk"}> : () -> ()
    %cst_58 = arith.constant dense<0.000000e+00> : vector<4x8x8xf32>
    %210 = tpu.matmul %183, %196, %cst_58 {dimension_numbers = #tpu.dot_dimension_numbers<[2], [2], [1], [1], [0, 0, 0, 1, 1, 1], [0], [0]>} : vector<4x8x16xbf16>, vector<4x8x16xbf16>, vector<4x8x8xf32> -> vector<4x8x8xf32>
    "tpu.trace_stop"() : () -> ()
    %cst_59 = arith.constant 2.500000e-01 : f32
    %211 = vector.broadcast %cst_59 : f32 to vector<4x8x8xf32>
    %212 = arith.mulf %210, %211 : vector<4x8x8xf32>
    %cst_60 = arith.constant dense<0xFF800000> : vector<4x8xf32>
    %213 = vector.multi_reduction <maximumf>, %212, %cst_60 [2] : vector<4x8x8xf32> to vector<4x8xf32>
    %214 = vector.shape_cast %213 : vector<4x8xf32> to vector<4x8x1xf32>
    %215 = vector.broadcast %214 : vector<4x8x1xf32> to vector<4x8x8xf32>
    %216 = arith.subf %212, %215 : vector<4x8x8xf32>
    %217 = math.exp %216 : vector<4x8x8xf32>
    %cst_61 = arith.constant dense<0.000000e+00> : vector<4x8xf32>
    %218 = vector.multi_reduction <add>, %217, %cst_61 [2] : vector<4x8x8xf32> to vector<4x8xf32>
    %219 = vector.shape_cast %218 : vector<4x8xf32> to vector<4x8x1xf32>
    %220 = vector.broadcast %219 : vector<4x8x1xf32> to vector<4x8x8xf32>
    %221 = arith.divf %217, %220 : vector<4x8x8xf32>
    %222 = arith.truncf %221 : vector<4x8x8xf32> to vector<4x8x8xbf16>
    "tpu.trace_start"() <{level = 10 : i32, message = "bqk,bkd->bqd"}> : () -> ()
    %cst_62 = arith.constant dense<0.000000e+00> : vector<4x8x16xf32>
    %223 = tpu.matmul %222, %209, %cst_62 {dimension_numbers = #tpu.dot_dimension_numbers<[2], [1], [1], [2], [0, 0, 0, 1, 1, 2], [0], [0]>} : vector<4x8x8xbf16>, vector<4x8x16xbf16>, vector<4x8x16xf32> -> vector<4x8x16xf32>
    "tpu.trace_stop"() : () -> ()
    %224 = vector.shape_cast %223 : vector<4x8x16xf32> to vector<4x1x8x16xf32>
    %225 = vector.extract_strided_slice %224 {offsets = [0, 0, 0, 0], sizes = [1, 1, 8, 16], strides = [1, 1, 1, 1]} : vector<4x1x8x16xf32> to vector<1x1x8x16xf32>
    %226 = vector.shape_cast %225 : vector<1x1x8x16xf32> to vector<1x8x16xf32>
    %227 = vector.extract_strided_slice %224 {offsets = [1, 0, 0, 0], sizes = [1, 1, 8, 16], strides = [1, 1, 1, 1]} : vector<4x1x8x16xf32> to vector<1x1x8x16xf32>
    %228 = vector.shape_cast %227 : vector<1x1x8x16xf32> to vector<1x8x16xf32>
    %229 = vector.extract_strided_slice %224 {offsets = [2, 0, 0, 0], sizes = [1, 1, 8, 16], strides = [1, 1, 1, 1]} : vector<4x1x8x16xf32> to vector<1x1x8x16xf32>
    %230 = vector.shape_cast %229 : vector<1x1x8x16xf32> to vector<1x8x16xf32>
    %231 = vector.extract_strided_slice %224 {offsets = [3, 0, 0, 0], sizes = [1, 1, 8, 16], strides = [1, 1, 1, 1]} : vector<4x1x8x16xf32> to vector<1x1x8x16xf32>
    %232 = vector.shape_cast %231 : vector<1x1x8x16xf32> to vector<1x8x16xf32>
    %233 = tpu.concatenate %226, %228, %230, %232 in 2 : vector<1x8x16xf32>, vector<1x8x16xf32>, vector<1x8x16xf32>, vector<1x8x16xf32> -> vector<1x8x64xf32>
    %234 = vector.shape_cast %233 : vector<1x8x64xf32> to vector<8x64xf32>
    %235 = arith.truncf %234 : vector<8x64xf32> to vector<8x64xbf16>
    %c1_63 = arith.constant 1 : index
    %c0_64 = arith.constant 0 : index
    %c0_65 = arith.constant 0 : index
    %236 = vector.load %arg7[%c1_63, %c0_64, %c0_65] : memref<3x64x64xbf16, #tpu.memory_space<vmem>>, vector<1x64x64xbf16>
    %237 = vector.shape_cast %236 : vector<1x64x64xbf16> to vector<64x64xbf16>
    %cst_66 = arith.constant dense<0.000000e+00> : vector<8x64xf32>
    %238 = tpu.matmul %235, %237, %cst_66 {dimension_numbers = #tpu.dot_dimension_numbers<[1], [0], [0], [1], [0, 0, 1, 1], [], []>} : vector<8x64xbf16>, vector<64x64xbf16>, vector<8x64xf32> -> vector<8x64xf32>
    %239 = vector.extract_strided_slice %162 {offsets = [0, 0], sizes = [1, 64], strides = [1, 1]} : vector<6x64xf32> to vector<1x64xf32>
    %240 = vector.broadcast %239 : vector<1x64xf32> to vector<8x64xf32>
    %241 = arith.addf %238, %240 : vector<8x64xf32>
    %242 = arith.addf %160, %241 : vector<8x64xf32>
    %243 = vector.extract_strided_slice %162 {offsets = [1, 0], sizes = [1, 64], strides = [1, 1]} : vector<6x64xf32> to vector<1x64xf32>
    %244 = vector.extract_strided_slice %162 {offsets = [2, 0], sizes = [1, 64], strides = [1, 1]} : vector<6x64xf32> to vector<1x64xf32>
    %cst_67 = arith.constant dense<0.000000e+00> : vector<8xf32>
    %245 = vector.multi_reduction <add>, %242, %cst_67 [1] : vector<8x64xf32> to vector<8xf32>
    %246 = vector.shape_cast %245 : vector<8xf32> to vector<8x1xf32>
    %cst_68 = arith.constant 6.400000e+01 : f32
    %247 = vector.broadcast %cst_68 : f32 to vector<8x1xf32>
    %248 = arith.divf %246, %247 : vector<8x1xf32>
    %249 = vector.broadcast %248 : vector<8x1xf32> to vector<8x64xf32>
    %250 = arith.subf %242, %249 : vector<8x64xf32>
    %251 = arith.mulf %250, %250 : vector<8x64xf32>
    %cst_69 = arith.constant dense<0.000000e+00> : vector<8xf32>
    %252 = vector.multi_reduction <add>, %251, %cst_69 [1] : vector<8x64xf32> to vector<8xf32>
    %253 = vector.shape_cast %252 : vector<8xf32> to vector<8x1xf32>
    %cst_70 = arith.constant 6.400000e+01 : f32
    %254 = vector.broadcast %cst_70 : f32 to vector<8x1xf32>
    %255 = arith.divf %253, %254 : vector<8x1xf32>
    %256 = vector.broadcast %248 : vector<8x1xf32> to vector<8x64xf32>
    %257 = arith.subf %242, %256 : vector<8x64xf32>
    %cst_71 = arith.constant 9.99999974E-6 : f32
    %258 = vector.broadcast %cst_71 : f32 to vector<8x1xf32>
    %259 = arith.addf %255, %258 : vector<8x1xf32>
    %260 = math.rsqrt %259 : vector<8x1xf32>
    %261 = vector.broadcast %260 : vector<8x1xf32> to vector<8x64xf32>
    %262 = arith.mulf %257, %261 : vector<8x64xf32>
    %263 = vector.broadcast %243 : vector<1x64xf32> to vector<8x64xf32>
    %264 = arith.mulf %262, %263 : vector<8x64xf32>
    %265 = vector.broadcast %244 : vector<1x64xf32> to vector<8x64xf32>
    %266 = arith.addf %264, %265 : vector<8x64xf32>
    %267 = arith.truncf %266 : vector<8x64xf32> to vector<8x64xbf16>
    %c1_72 = arith.constant 1 : index
    %c0_73 = arith.constant 0 : index
    %c0_74 = arith.constant 0 : index
    %268 = vector.load %arg9[%c1_72, %c0_73, %c0_74] : memref<3x64x256xbf16, #tpu.memory_space<vmem>>, vector<1x64x256xbf16>
    %269 = vector.shape_cast %268 : vector<1x64x256xbf16> to vector<64x256xbf16>
    %cst_75 = arith.constant dense<0.000000e+00> : vector<8x256xf32>
    %270 = tpu.matmul %267, %269, %cst_75 {dimension_numbers = #tpu.dot_dimension_numbers<[1], [0], [0], [1], [0, 0, 1, 1], [], []>} : vector<8x64xbf16>, vector<64x256xbf16>, vector<8x256xf32> -> vector<8x256xf32>
    %c1_76 = arith.constant 1 : index
    %c0_77 = arith.constant 0 : index
    %c0_78 = arith.constant 0 : index
    %271 = vector.load %arg10[%c1_76, %c0_77, %c0_78] : memref<3x1x256xf32, #tpu.memory_space<vmem>>, vector<1x1x256xf32>
    %272 = vector.shape_cast %271 : vector<1x1x256xf32> to vector<1x256xf32>
    %273 = vector.broadcast %272 : vector<1x256xf32> to vector<8x256xf32>
    %274 = arith.addf %270, %273 : vector<8x256xf32>
    %cst_79 = arith.constant 0.000000e+00 : f32
    %275 = vector.broadcast %cst_79 : f32 to vector<8x256xf32>
    %276 = arith.maximumf %274, %275 : vector<8x256xf32>
    %277 = arith.truncf %276 : vector<8x256xf32> to vector<8x256xbf16>
    %c1_80 = arith.constant 1 : index
    %c0_81 = arith.constant 0 : index
    %c0_82 = arith.constant 0 : index
    %278 = vector.load %arg11[%c1_80, %c0_81, %c0_82] : memref<3x256x64xbf16, #tpu.memory_space<vmem>>, vector<1x256x64xbf16>
    %279 = vector.shape_cast %278 : vector<1x256x64xbf16> to vector<256x64xbf16>
    %cst_83 = arith.constant dense<0.000000e+00> : vector<8x64xf32>
    %280 = tpu.matmul %277, %279, %cst_83 {dimension_numbers = #tpu.dot_dimension_numbers<[1], [0], [0], [1], [0, 0, 1, 1], [], []>} : vector<8x256xbf16>, vector<256x64xbf16>, vector<8x64xf32> -> vector<8x64xf32>
    %281 = vector.extract_strided_slice %162 {offsets = [5, 0], sizes = [1, 64], strides = [1, 1]} : vector<6x64xf32> to vector<1x64xf32>
    %282 = vector.broadcast %281 : vector<1x64xf32> to vector<8x64xf32>
    %283 = arith.addf %280, %282 : vector<8x64xf32>
    %284 = arith.addf %266, %283 : vector<8x64xf32>
    %285 = vector.extract_strided_slice %162 {offsets = [3, 0], sizes = [1, 64], strides = [1, 1]} : vector<6x64xf32> to vector<1x64xf32>
    %286 = vector.extract_strided_slice %162 {offsets = [4, 0], sizes = [1, 64], strides = [1, 1]} : vector<6x64xf32> to vector<1x64xf32>
    %cst_84 = arith.constant dense<0.000000e+00> : vector<8xf32>
    %287 = vector.multi_reduction <add>, %284, %cst_84 [1] : vector<8x64xf32> to vector<8xf32>
    %288 = vector.shape_cast %287 : vector<8xf32> to vector<8x1xf32>
    %cst_85 = arith.constant 6.400000e+01 : f32
    %289 = vector.broadcast %cst_85 : f32 to vector<8x1xf32>
    %290 = arith.divf %288, %289 : vector<8x1xf32>
    %291 = vector.broadcast %290 : vector<8x1xf32> to vector<8x64xf32>
    %292 = arith.subf %284, %291 : vector<8x64xf32>
    %293 = arith.mulf %292, %292 : vector<8x64xf32>
    %cst_86 = arith.constant dense<0.000000e+00> : vector<8xf32>
    %294 = vector.multi_reduction <add>, %293, %cst_86 [1] : vector<8x64xf32> to vector<8xf32>
    %295 = vector.shape_cast %294 : vector<8xf32> to vector<8x1xf32>
    %cst_87 = arith.constant 6.400000e+01 : f32
    %296 = vector.broadcast %cst_87 : f32 to vector<8x1xf32>
    %297 = arith.divf %295, %296 : vector<8x1xf32>
    %298 = vector.broadcast %290 : vector<8x1xf32> to vector<8x64xf32>
    %299 = arith.subf %284, %298 : vector<8x64xf32>
    %cst_88 = arith.constant 9.99999974E-6 : f32
    %300 = vector.broadcast %cst_88 : f32 to vector<8x1xf32>
    %301 = arith.addf %297, %300 : vector<8x1xf32>
    %302 = math.rsqrt %301 : vector<8x1xf32>
    %303 = vector.broadcast %302 : vector<8x1xf32> to vector<8x64xf32>
    %304 = arith.mulf %299, %303 : vector<8x64xf32>
    %305 = vector.broadcast %285 : vector<1x64xf32> to vector<8x64xf32>
    %306 = arith.mulf %304, %305 : vector<8x64xf32>
    %307 = vector.broadcast %286 : vector<1x64xf32> to vector<8x64xf32>
    %308 = arith.addf %306, %307 : vector<8x64xf32>
    %c2 = arith.constant 2 : index
    %c0_89 = arith.constant 0 : index
    %c0_90 = arith.constant 0 : index
    %309 = vector.load %arg8[%c2, %c0_89, %c0_90] : memref<3x6x64xf32, #tpu.memory_space<vmem>>, vector<1x6x64xf32>
    %310 = vector.shape_cast %309 : vector<1x6x64xf32> to vector<6x64xf32>
    %311 = arith.truncf %308 : vector<8x64xf32> to vector<8x64xbf16>
    %c2_91 = arith.constant 2 : index
    %c0_92 = arith.constant 0 : index
    %c0_93 = arith.constant 0 : index
    %312 = vector.load %arg5[%c2_91, %c0_92, %c0_93] : memref<3x64x192xbf16, #tpu.memory_space<vmem>>, vector<1x64x192xbf16>
    %313 = vector.shape_cast %312 : vector<1x64x192xbf16> to vector<64x192xbf16>
    %cst_94 = arith.constant dense<0.000000e+00> : vector<8x192xf32>
    %314 = tpu.matmul %311, %313, %cst_94 {dimension_numbers = #tpu.dot_dimension_numbers<[1], [0], [0], [1], [0, 0, 1, 1], [], []>} : vector<8x64xbf16>, vector<64x192xbf16>, vector<8x192xf32> -> vector<8x192xf32>
    %c2_95 = arith.constant 2 : index
    %c0_96 = arith.constant 0 : index
    %c0_97 = arith.constant 0 : index
    %315 = vector.load %arg6[%c2_95, %c0_96, %c0_97] : memref<3x1x192xf32, #tpu.memory_space<vmem>>, vector<1x1x192xf32>
    %316 = vector.shape_cast %315 : vector<1x1x192xf32> to vector<1x192xf32>
    %317 = vector.broadcast %316 : vector<1x192xf32> to vector<8x192xf32>
    %318 = arith.addf %314, %317 : vector<8x192xf32>
    %319 = vector.extract_strided_slice %318 {offsets = [0, 0], sizes = [8, 64], strides = [1, 1]} : vector<8x192xf32> to vector<8x64xf32>
    %320 = vector.shape_cast %319 : vector<8x64xf32> to vector<1x8x64xf32>
    %321 = vector.extract_strided_slice %320 {offsets = [0, 0, 0], sizes = [1, 8, 16], strides = [1, 1, 1]} : vector<1x8x64xf32> to vector<1x8x16xf32>
    %322 = vector.extract_strided_slice %320 {offsets = [0, 0, 16], sizes = [1, 8, 16], strides = [1, 1, 1]} : vector<1x8x64xf32> to vector<1x8x16xf32>
    %323 = vector.extract_strided_slice %320 {offsets = [0, 0, 32], sizes = [1, 8, 16], strides = [1, 1, 1]} : vector<1x8x64xf32> to vector<1x8x16xf32>
    %324 = vector.extract_strided_slice %320 {offsets = [0, 0, 48], sizes = [1, 8, 16], strides = [1, 1, 1]} : vector<1x8x64xf32> to vector<1x8x16xf32>
    %325 = vector.shape_cast %321 : vector<1x8x16xf32> to vector<1x1x8x16xf32>
    %326 = vector.shape_cast %322 : vector<1x8x16xf32> to vector<1x1x8x16xf32>
    %327 = vector.shape_cast %323 : vector<1x8x16xf32> to vector<1x1x8x16xf32>
    %328 = vector.shape_cast %324 : vector<1x8x16xf32> to vector<1x1x8x16xf32>
    %329 = tpu.concatenate %325, %326, %327, %328 in 0 : vector<1x1x8x16xf32>, vector<1x1x8x16xf32>, vector<1x1x8x16xf32>, vector<1x1x8x16xf32> -> vector<4x1x8x16xf32>
    %330 = vector.shape_cast %329 : vector<4x1x8x16xf32> to vector<4x8x16xf32>
    %331 = arith.truncf %330 : vector<4x8x16xf32> to vector<4x8x16xbf16>
    %332 = vector.extract_strided_slice %318 {offsets = [0, 64], sizes = [8, 64], strides = [1, 1]} : vector<8x192xf32> to vector<8x64xf32>
    %333 = vector.shape_cast %332 : vector<8x64xf32> to vector<1x8x64xf32>
    %334 = vector.extract_strided_slice %333 {offsets = [0, 0, 0], sizes = [1, 8, 16], strides = [1, 1, 1]} : vector<1x8x64xf32> to vector<1x8x16xf32>
    %335 = vector.extract_strided_slice %333 {offsets = [0, 0, 16], sizes = [1, 8, 16], strides = [1, 1, 1]} : vector<1x8x64xf32> to vector<1x8x16xf32>
    %336 = vector.extract_strided_slice %333 {offsets = [0, 0, 32], sizes = [1, 8, 16], strides = [1, 1, 1]} : vector<1x8x64xf32> to vector<1x8x16xf32>
    %337 = vector.extract_strided_slice %333 {offsets = [0, 0, 48], sizes = [1, 8, 16], strides = [1, 1, 1]} : vector<1x8x64xf32> to vector<1x8x16xf32>
    %338 = vector.shape_cast %334 : vector<1x8x16xf32> to vector<1x1x8x16xf32>
    %339 = vector.shape_cast %335 : vector<1x8x16xf32> to vector<1x1x8x16xf32>
    %340 = vector.shape_cast %336 : vector<1x8x16xf32> to vector<1x1x8x16xf32>
    %341 = vector.shape_cast %337 : vector<1x8x16xf32> to vector<1x1x8x16xf32>
    %342 = tpu.concatenate %338, %339, %340, %341 in 0 : vector<1x1x8x16xf32>, vector<1x1x8x16xf32>, vector<1x1x8x16xf32>, vector<1x1x8x16xf32> -> vector<4x1x8x16xf32>
    %343 = vector.shape_cast %342 : vector<4x1x8x16xf32> to vector<4x8x16xf32>
    %344 = arith.truncf %343 : vector<4x8x16xf32> to vector<4x8x16xbf16>
    %345 = vector.extract_strided_slice %318 {offsets = [0, 128], sizes = [8, 64], strides = [1, 1]} : vector<8x192xf32> to vector<8x64xf32>
    %346 = vector.shape_cast %345 : vector<8x64xf32> to vector<1x8x64xf32>
    %347 = vector.extract_strided_slice %346 {offsets = [0, 0, 0], sizes = [1, 8, 16], strides = [1, 1, 1]} : vector<1x8x64xf32> to vector<1x8x16xf32>
    %348 = vector.extract_strided_slice %346 {offsets = [0, 0, 16], sizes = [1, 8, 16], strides = [1, 1, 1]} : vector<1x8x64xf32> to vector<1x8x16xf32>
    %349 = vector.extract_strided_slice %346 {offsets = [0, 0, 32], sizes = [1, 8, 16], strides = [1, 1, 1]} : vector<1x8x64xf32> to vector<1x8x16xf32>
    %350 = vector.extract_strided_slice %346 {offsets = [0, 0, 48], sizes = [1, 8, 16], strides = [1, 1, 1]} : vector<1x8x64xf32> to vector<1x8x16xf32>
    %351 = vector.shape_cast %347 : vector<1x8x16xf32> to vector<1x1x8x16xf32>
    %352 = vector.shape_cast %348 : vector<1x8x16xf32> to vector<1x1x8x16xf32>
    %353 = vector.shape_cast %349 : vector<1x8x16xf32> to vector<1x1x8x16xf32>
    %354 = vector.shape_cast %350 : vector<1x8x16xf32> to vector<1x1x8x16xf32>
    %355 = tpu.concatenate %351, %352, %353, %354 in 0 : vector<1x1x8x16xf32>, vector<1x1x8x16xf32>, vector<1x1x8x16xf32>, vector<1x1x8x16xf32> -> vector<4x1x8x16xf32>
    %356 = vector.shape_cast %355 : vector<4x1x8x16xf32> to vector<4x8x16xf32>
    %357 = arith.truncf %356 : vector<4x8x16xf32> to vector<4x8x16xbf16>
    "tpu.trace_start"() <{level = 10 : i32, message = "bqd,bkd->bqk"}> : () -> ()
    %cst_98 = arith.constant dense<0.000000e+00> : vector<4x8x8xf32>
    %358 = tpu.matmul %331, %344, %cst_98 {dimension_numbers = #tpu.dot_dimension_numbers<[2], [2], [1], [1], [0, 0, 0, 1, 1, 1], [0], [0]>} : vector<4x8x16xbf16>, vector<4x8x16xbf16>, vector<4x8x8xf32> -> vector<4x8x8xf32>
    "tpu.trace_stop"() : () -> ()
    %cst_99 = arith.constant 2.500000e-01 : f32
    %359 = vector.broadcast %cst_99 : f32 to vector<4x8x8xf32>
    %360 = arith.mulf %358, %359 : vector<4x8x8xf32>
    %cst_100 = arith.constant dense<0xFF800000> : vector<4x8xf32>
    %361 = vector.multi_reduction <maximumf>, %360, %cst_100 [2] : vector<4x8x8xf32> to vector<4x8xf32>
    %362 = vector.shape_cast %361 : vector<4x8xf32> to vector<4x8x1xf32>
    %363 = vector.broadcast %362 : vector<4x8x1xf32> to vector<4x8x8xf32>
    %364 = arith.subf %360, %363 : vector<4x8x8xf32>
    %365 = math.exp %364 : vector<4x8x8xf32>
    %cst_101 = arith.constant dense<0.000000e+00> : vector<4x8xf32>
    %366 = vector.multi_reduction <add>, %365, %cst_101 [2] : vector<4x8x8xf32> to vector<4x8xf32>
    %367 = vector.shape_cast %366 : vector<4x8xf32> to vector<4x8x1xf32>
    %368 = vector.broadcast %367 : vector<4x8x1xf32> to vector<4x8x8xf32>
    %369 = arith.divf %365, %368 : vector<4x8x8xf32>
    %370 = arith.truncf %369 : vector<4x8x8xf32> to vector<4x8x8xbf16>
    "tpu.trace_start"() <{level = 10 : i32, message = "bqk,bkd->bqd"}> : () -> ()
    %cst_102 = arith.constant dense<0.000000e+00> : vector<4x8x16xf32>
    %371 = tpu.matmul %370, %357, %cst_102 {dimension_numbers = #tpu.dot_dimension_numbers<[2], [1], [1], [2], [0, 0, 0, 1, 1, 2], [0], [0]>} : vector<4x8x8xbf16>, vector<4x8x16xbf16>, vector<4x8x16xf32> -> vector<4x8x16xf32>
    "tpu.trace_stop"() : () -> ()
    %372 = vector.shape_cast %371 : vector<4x8x16xf32> to vector<4x1x8x16xf32>
    %373 = vector.extract_strided_slice %372 {offsets = [0, 0, 0, 0], sizes = [1, 1, 8, 16], strides = [1, 1, 1, 1]} : vector<4x1x8x16xf32> to vector<1x1x8x16xf32>
    %374 = vector.shape_cast %373 : vector<1x1x8x16xf32> to vector<1x8x16xf32>
    %375 = vector.extract_strided_slice %372 {offsets = [1, 0, 0, 0], sizes = [1, 1, 8, 16], strides = [1, 1, 1, 1]} : vector<4x1x8x16xf32> to vector<1x1x8x16xf32>
    %376 = vector.shape_cast %375 : vector<1x1x8x16xf32> to vector<1x8x16xf32>
    %377 = vector.extract_strided_slice %372 {offsets = [2, 0, 0, 0], sizes = [1, 1, 8, 16], strides = [1, 1, 1, 1]} : vector<4x1x8x16xf32> to vector<1x1x8x16xf32>
    %378 = vector.shape_cast %377 : vector<1x1x8x16xf32> to vector<1x8x16xf32>
    %379 = vector.extract_strided_slice %372 {offsets = [3, 0, 0, 0], sizes = [1, 1, 8, 16], strides = [1, 1, 1, 1]} : vector<4x1x8x16xf32> to vector<1x1x8x16xf32>
    %380 = vector.shape_cast %379 : vector<1x1x8x16xf32> to vector<1x8x16xf32>
    %381 = tpu.concatenate %374, %376, %378, %380 in 2 : vector<1x8x16xf32>, vector<1x8x16xf32>, vector<1x8x16xf32>, vector<1x8x16xf32> -> vector<1x8x64xf32>
    %382 = vector.shape_cast %381 : vector<1x8x64xf32> to vector<8x64xf32>
    %383 = arith.truncf %382 : vector<8x64xf32> to vector<8x64xbf16>
    %c2_103 = arith.constant 2 : index
    %c0_104 = arith.constant 0 : index
    %c0_105 = arith.constant 0 : index
    %384 = vector.load %arg7[%c2_103, %c0_104, %c0_105] : memref<3x64x64xbf16, #tpu.memory_space<vmem>>, vector<1x64x64xbf16>
    %385 = vector.shape_cast %384 : vector<1x64x64xbf16> to vector<64x64xbf16>
    %cst_106 = arith.constant dense<0.000000e+00> : vector<8x64xf32>
    %386 = tpu.matmul %383, %385, %cst_106 {dimension_numbers = #tpu.dot_dimension_numbers<[1], [0], [0], [1], [0, 0, 1, 1], [], []>} : vector<8x64xbf16>, vector<64x64xbf16>, vector<8x64xf32> -> vector<8x64xf32>
    %387 = vector.extract_strided_slice %310 {offsets = [0, 0], sizes = [1, 64], strides = [1, 1]} : vector<6x64xf32> to vector<1x64xf32>
    %388 = vector.broadcast %387 : vector<1x64xf32> to vector<8x64xf32>
    %389 = arith.addf %386, %388 : vector<8x64xf32>
    %390 = arith.addf %308, %389 : vector<8x64xf32>
    %391 = vector.extract_strided_slice %310 {offsets = [1, 0], sizes = [1, 64], strides = [1, 1]} : vector<6x64xf32> to vector<1x64xf32>
    %392 = vector.extract_strided_slice %310 {offsets = [2, 0], sizes = [1, 64], strides = [1, 1]} : vector<6x64xf32> to vector<1x64xf32>
    %cst_107 = arith.constant dense<0.000000e+00> : vector<8xf32>
    %393 = vector.multi_reduction <add>, %390, %cst_107 [1] : vector<8x64xf32> to vector<8xf32>
    %394 = vector.shape_cast %393 : vector<8xf32> to vector<8x1xf32>
    %cst_108 = arith.constant 6.400000e+01 : f32
    %395 = vector.broadcast %cst_108 : f32 to vector<8x1xf32>
    %396 = arith.divf %394, %395 : vector<8x1xf32>
    %397 = vector.broadcast %396 : vector<8x1xf32> to vector<8x64xf32>
    %398 = arith.subf %390, %397 : vector<8x64xf32>
    %399 = arith.mulf %398, %398 : vector<8x64xf32>
    %cst_109 = arith.constant dense<0.000000e+00> : vector<8xf32>
    %400 = vector.multi_reduction <add>, %399, %cst_109 [1] : vector<8x64xf32> to vector<8xf32>
    %401 = vector.shape_cast %400 : vector<8xf32> to vector<8x1xf32>
    %cst_110 = arith.constant 6.400000e+01 : f32
    %402 = vector.broadcast %cst_110 : f32 to vector<8x1xf32>
    %403 = arith.divf %401, %402 : vector<8x1xf32>
    %404 = vector.broadcast %396 : vector<8x1xf32> to vector<8x64xf32>
    %405 = arith.subf %390, %404 : vector<8x64xf32>
    %cst_111 = arith.constant 9.99999974E-6 : f32
    %406 = vector.broadcast %cst_111 : f32 to vector<8x1xf32>
    %407 = arith.addf %403, %406 : vector<8x1xf32>
    %408 = math.rsqrt %407 : vector<8x1xf32>
    %409 = vector.broadcast %408 : vector<8x1xf32> to vector<8x64xf32>
    %410 = arith.mulf %405, %409 : vector<8x64xf32>
    %411 = vector.broadcast %391 : vector<1x64xf32> to vector<8x64xf32>
    %412 = arith.mulf %410, %411 : vector<8x64xf32>
    %413 = vector.broadcast %392 : vector<1x64xf32> to vector<8x64xf32>
    %414 = arith.addf %412, %413 : vector<8x64xf32>
    %415 = arith.truncf %414 : vector<8x64xf32> to vector<8x64xbf16>
    %c2_112 = arith.constant 2 : index
    %c0_113 = arith.constant 0 : index
    %c0_114 = arith.constant 0 : index
    %416 = vector.load %arg9[%c2_112, %c0_113, %c0_114] : memref<3x64x256xbf16, #tpu.memory_space<vmem>>, vector<1x64x256xbf16>
    %417 = vector.shape_cast %416 : vector<1x64x256xbf16> to vector<64x256xbf16>
    %cst_115 = arith.constant dense<0.000000e+00> : vector<8x256xf32>
    %418 = tpu.matmul %415, %417, %cst_115 {dimension_numbers = #tpu.dot_dimension_numbers<[1], [0], [0], [1], [0, 0, 1, 1], [], []>} : vector<8x64xbf16>, vector<64x256xbf16>, vector<8x256xf32> -> vector<8x256xf32>
    %c2_116 = arith.constant 2 : index
    %c0_117 = arith.constant 0 : index
    %c0_118 = arith.constant 0 : index
    %419 = vector.load %arg10[%c2_116, %c0_117, %c0_118] : memref<3x1x256xf32, #tpu.memory_space<vmem>>, vector<1x1x256xf32>
    %420 = vector.shape_cast %419 : vector<1x1x256xf32> to vector<1x256xf32>
    %421 = vector.broadcast %420 : vector<1x256xf32> to vector<8x256xf32>
    %422 = arith.addf %418, %421 : vector<8x256xf32>
    %cst_119 = arith.constant 0.000000e+00 : f32
    %423 = vector.broadcast %cst_119 : f32 to vector<8x256xf32>
    %424 = arith.maximumf %422, %423 : vector<8x256xf32>
    %425 = arith.truncf %424 : vector<8x256xf32> to vector<8x256xbf16>
    %c2_120 = arith.constant 2 : index
    %c0_121 = arith.constant 0 : index
    %c0_122 = arith.constant 0 : index
    %426 = vector.load %arg11[%c2_120, %c0_121, %c0_122] : memref<3x256x64xbf16, #tpu.memory_space<vmem>>, vector<1x256x64xbf16>
    %427 = vector.shape_cast %426 : vector<1x256x64xbf16> to vector<256x64xbf16>
    %cst_123 = arith.constant dense<0.000000e+00> : vector<8x64xf32>
    %428 = tpu.matmul %425, %427, %cst_123 {dimension_numbers = #tpu.dot_dimension_numbers<[1], [0], [0], [1], [0, 0, 1, 1], [], []>} : vector<8x256xbf16>, vector<256x64xbf16>, vector<8x64xf32> -> vector<8x64xf32>
    %429 = vector.extract_strided_slice %310 {offsets = [5, 0], sizes = [1, 64], strides = [1, 1]} : vector<6x64xf32> to vector<1x64xf32>
    %430 = vector.broadcast %429 : vector<1x64xf32> to vector<8x64xf32>
    %431 = arith.addf %428, %430 : vector<8x64xf32>
    %432 = arith.addf %414, %431 : vector<8x64xf32>
    %433 = vector.extract_strided_slice %310 {offsets = [3, 0], sizes = [1, 64], strides = [1, 1]} : vector<6x64xf32> to vector<1x64xf32>
    %434 = vector.extract_strided_slice %310 {offsets = [4, 0], sizes = [1, 64], strides = [1, 1]} : vector<6x64xf32> to vector<1x64xf32>
    %cst_124 = arith.constant dense<0.000000e+00> : vector<8xf32>
    %435 = vector.multi_reduction <add>, %432, %cst_124 [1] : vector<8x64xf32> to vector<8xf32>
    %436 = vector.shape_cast %435 : vector<8xf32> to vector<8x1xf32>
    %cst_125 = arith.constant 6.400000e+01 : f32
    %437 = vector.broadcast %cst_125 : f32 to vector<8x1xf32>
    %438 = arith.divf %436, %437 : vector<8x1xf32>
    %439 = vector.broadcast %438 : vector<8x1xf32> to vector<8x64xf32>
    %440 = arith.subf %432, %439 : vector<8x64xf32>
    %441 = arith.mulf %440, %440 : vector<8x64xf32>
    %cst_126 = arith.constant dense<0.000000e+00> : vector<8xf32>
    %442 = vector.multi_reduction <add>, %441, %cst_126 [1] : vector<8x64xf32> to vector<8xf32>
    %443 = vector.shape_cast %442 : vector<8xf32> to vector<8x1xf32>
    %cst_127 = arith.constant 6.400000e+01 : f32
    %444 = vector.broadcast %cst_127 : f32 to vector<8x1xf32>
    %445 = arith.divf %443, %444 : vector<8x1xf32>
    %446 = vector.broadcast %438 : vector<8x1xf32> to vector<8x64xf32>
    %447 = arith.subf %432, %446 : vector<8x64xf32>
    %cst_128 = arith.constant 9.99999974E-6 : f32
    %448 = vector.broadcast %cst_128 : f32 to vector<8x1xf32>
    %449 = arith.addf %445, %448 : vector<8x1xf32>
    %450 = math.rsqrt %449 : vector<8x1xf32>
    %451 = vector.broadcast %450 : vector<8x1xf32> to vector<8x64xf32>
    %452 = arith.mulf %447, %451 : vector<8x64xf32>
    %453 = vector.broadcast %433 : vector<1x64xf32> to vector<8x64xf32>
    %454 = arith.mulf %452, %453 : vector<8x64xf32>
    %455 = vector.broadcast %434 : vector<1x64xf32> to vector<8x64xf32>
    %456 = arith.addf %454, %455 : vector<8x64xf32>
    %457 = vector.shape_cast %456 : vector<8x64xf32> to vector<1x8x64xf32>
    %c0_129 = arith.constant 0 : index
    %c0_130 = arith.constant 0 : index
    %c0_131 = arith.constant 0 : index
    %458 = vector.load %arg12[%c0_129, %c0_130, %c0_131] : memref<1x8x64xf32, #tpu.memory_space<vmem>>, vector<1x8x64xf32>
    tpu.vector_store %arg12[%c0_129, %c0_130, %c0_131], %457 {strides = array<i32>} : memref<1x8x64xf32, #tpu.memory_space<vmem>>, vector<1x8x64xf32>,
    return
  }
  func.func @transform_0(%arg0: i32) -> (i32, i32, i32) {
    %c0_i32 = arith.constant 0 : i32
    %c0_i32_0 = arith.constant 0 : i32
    %c0_i32_1 = arith.constant 0 : i32
    return %arg0, %c0_i32, %c0_i32_0 : i32, i32, i32
  }
  func.func @transform_1(%arg0: i32) -> (i32, i32) {
    %c0_i32 = arith.constant 0 : i32
    %c0_i32_0 = arith.constant 0 : i32
    %c0_i32_1 = arith.constant 0 : i32
    return %c0_i32, %c0_i32_0 : i32, i32
  }
  func.func @transform_2(%arg0: i32) -> (i32, i32) {
    %c0_i32 = arith.constant 0 : i32
    %c0_i32_0 = arith.constant 0 : i32
    %c0_i32_1 = arith.constant 0 : i32
    return %c0_i32, %c0_i32_0 : i32, i32
  }
  func.func @transform_3(%arg0: i32) -> (i32, i32) {
    %c0_i32 = arith.constant 0 : i32
    %c0_i32_0 = arith.constant 0 : i32
    %c0_i32_1 = arith.constant 0 : i32
    return %c0_i32, %c0_i32_0 : i32, i32
  }
  func.func @transform_4(%arg0: i32) -> (i32, i32, i32) {
    %c0_i32 = arith.constant 0 : i32
    %c0_i32_0 = arith.constant 0 : i32
    %c0_i32_1 = arith.constant 0 : i32
    %c0_i32_2 = arith.constant 0 : i32
    return %c0_i32, %c0_i32_0, %c0_i32_1 : i32, i32, i32
  }
  func.func @transform_5(%arg0: i32) -> (i32, i32, i32) {
    %c0_i32 = arith.constant 0 : i32
    %c0_i32_0 = arith.constant 0 : i32
    %c0_i32_1 = arith.constant 0 : i32
    %c0_i32_2 = arith.constant 0 : i32
    return %c0_i32, %c0_i32_0, %c0_i32_1 : i32, i32, i32
  }
  func.func @transform_6(%arg0: i32) -> (i32, i32, i32) {
    %c0_i32 = arith.constant 0 : i32
    %c0_i32_0 = arith.constant 0 : i32
    %c0_i32_1 = arith.constant 0 : i32
    %c0_i32_2 = arith.constant 0 : i32
    return %c0_i32, %c0_i32_0, %c0_i32_1 : i32, i32, i32
  }
  func.func @transform_7(%arg0: i32) -> (i32, i32, i32) {
    %c0_i32 = arith.constant 0 : i32
    %c0_i32_0 = arith.constant 0 : i32
    %c0_i32_1 = arith.constant 0 : i32
    %c0_i32_2 = arith.constant 0 : i32
    return %c0_i32, %c0_i32_0, %c0_i32_1 : i32, i32, i32
  }
  func.func @transform_8(%arg0: i32) -> (i32, i32, i32) {
    %c0_i32 = arith.constant 0 : i32
    %c0_i32_0 = arith.constant 0 : i32
    %c0_i32_1 = arith.constant 0 : i32
    %c0_i32_2 = arith.constant 0 : i32
    return %c0_i32, %c0_i32_0, %c0_i32_1 : i32, i32, i32
  }
  func.func @transform_9(%arg0: i32) -> (i32, i32, i32) {
    %c0_i32 = arith.constant 0 : i32
    %c0_i32_0 = arith.constant 0 : i32
    %c0_i32_1 = arith.constant 0 : i32
    %c0_i32_2 = arith.constant 0 : i32
    return %c0_i32, %c0_i32_0, %c0_i32_1 : i32, i32, i32
  }
  func.func @transform_10(%arg0: i32) -> (i32, i32, i32) {
    %c0_i32 = arith.constant 0 : i32
    %c0_i32_0 = arith.constant 0 : i32
    %c0_i32_1 = arith.constant 0 : i32
    %c0_i32_2 = arith.constant 0 : i32
    return %c0_i32, %c0_i32_0, %c0_i32_1 : i32, i32, i32
  }
  func.func @transform_11(%arg0: i32) -> (i32, i32, i32) {
    %c0_i32 = arith.constant 0 : i32
    %c0_i32_0 = arith.constant 0 : i32
    %c0_i32_1 = arith.constant 0 : i32
    return %arg0, %c0_i32, %c0_i32_0 : i32, i32, i32
  }
}

</mosaic_0001>

<llo_original>
// kernel: tpu_custom_call.1
$region0: #{tpu_custom_call.1}
  #allocation0 [shape = 'u32[]', space=smem, size = 0x4, offset = 0x4, fixed_abs, tag = 'smem constant byte address 0x4 - core index']
  #allocation1 [shape = 'u32[144,128]{1,0:T(1,128)}', space=vmem, size = 0x12000, scoped, tag = 'internal scratch']
  %s0 = inlined_call_operand.vmem [shape: f32[2,8,5], index: 0, kind: input, shape index: {}]
  %s1 = inlined_call_operand.vmem [shape: f32[8,64], index: 1, kind: input, shape index: {}]
  %s2 = inlined_call_operand.vmem [shape: bf16[5,64], index: 2, kind: input, shape index: {}]
  %s3 = inlined_call_operand.vmem [shape: f32[1,64], index: 3, kind: input, shape index: {}]
  %s4 = inlined_call_operand.vmem [shape: bf16[3,64,192], index: 4, kind: input, shape index: {}]
  %s5 = inlined_call_operand.vmem [shape: f32[3,1,192], index: 5, kind: input, shape index: {}]
  %s6 = inlined_call_operand.vmem [shape: bf16[3,64,64], index: 6, kind: input, shape index: {}]
  %s7 = inlined_call_operand.vmem [shape: f32[3,6,64], index: 7, kind: input, shape index: {}]
  %s8 = inlined_call_operand.vmem [shape: bf16[3,64,256], index: 8, kind: input, shape index: {}]
  %s9 = inlined_call_operand.vmem [shape: f32[3,1,256], index: 9, kind: input, shape index: {}]
  %s10 = inlined_call_operand.vmem [shape: bf16[3,256,64], index: 10, kind: input, shape index: {}]
  %s11 = inlined_call_operand.hbm [shape: f32[2,8,64], index: 11, kind: output, shape index: {}]
  %s12 = sld [smem:[#allocation0]]
  $region77: #{tpu_custom_call.1} parent=0
    _
  %s14 = ssub.s32 1, %s12
  %s15 = scalar_select 0, %s14, %s12
  $region1: #{tpu_custom_call.1} parent=0
    #allocation2 [shape = 'u8[8192]{0}', space=vmem, size = 0x2000, scoped, tag = 'output window, operand 0']
    #allocation3 [shape = 's32[2]{0}', space=sflag, size = 0x8, scoped, tag = 'scoped memory for tpu_custom_call.1']
    %16 = vsyncpa [#allocation3], 0
    %s17 = scalar_lea.sflag [#allocation3], 1
    %18 = vsyncpa %s17, 0
    loop: start=0, step=1, limit=4
    $region2: #{tpu_custom_call.1} parent=1 // loop_pre_header
      _
    $region3: #{tpu_custom_call.1} parent=1 // loop_header
      %s20 = sphi 0, %s24
      %p21 = scmp.ge.s32.totalorder %s20, 4
      %s30 = sphi 0, %s32
      %s33 = sphi 0, %s30
      %s34 = sphi 0, %s33
      %s50 = sphi 0, %s34
      %s54 = sphi 0, %s54
      %s56 = sphi 0, %s54
      %s57 = sphi 0, %s56
      %s71 = sphi 0, %s57
      %s75 = sphi 0, %s75
      %s77 = sphi 0, %s75
      %s78 = sphi 0, %s77
      %s92 = sphi 0, %s78
      %s96 = sphi 0, %s96
      %s98 = sphi 0, %s96
      %s99 = sphi 0, %s98
      %s113 = sphi 0, %s99
      %s117 = sphi 0, %s117
      %s119 = sphi 0, %s117
      %s120 = sphi 0, %s119
      %s134 = sphi 0, %s120
      %s138 = sphi 0, %s138
      %s140 = sphi 0, %s138
      %s141 = sphi 0, %s140
      %s155 = sphi 0, %s141
      %s159 = sphi 0, %s159
      %s161 = sphi 0, %s159
      %s162 = sphi 0, %s161
      %s176 = sphi 0, %s162
      %s180 = sphi 0, %s180
      %s182 = sphi 0, %s180
      %s183 = sphi 0, %s182
      %s197 = sphi 0, %s183
      %s201 = sphi 0, %s201
      %s203 = sphi 0, %s201
      %s204 = sphi 0, %s203
      %s218 = sphi 0, %s204
      %s222 = sphi 0, %s222
      %s224 = sphi 0, %s222
      %s225 = sphi 0, %s224
      %s239 = sphi 0, %s225
      %s243 = sphi 0, %s243
      %s245 = sphi 0, %s243
      %s246 = sphi 0, %s245
      %s260 = sphi 0, %s246
      %s266 = sphi 0, %s268
      %s269 = sphi 0, %s266
      %s270 = sphi 0, %s269
      %s286 = sphi 0, %s270
    $region4: #{tpu_custom_call.1} parent=1 // loop_header_branch
      %23 = sbr.rel (%p21) target = $region8
    $region5: #{tpu_custom_call.1} parent=1 // loop_body
      %s25 = ssub.s32 %s20, 1
      %s26 = ssub.s32 %s20, 2
      %s27 = sadd.s32 %s20, 1
      %s28 = ssub.s32 %s20, %s27
      %p29 = scmp.eq.s32.totalorder %s28, 0
      %s31 = sadd.s32 %s30, 1
      %s32 = scalar_select %p29, %s30, %s31
      %p35 = pneg %p29
      %p36 = scmp.eq.s32.totalorder %s20, 1
      %p37 = por %p35, %p36
      %p38 = scmp.ne.s32.totalorder %s30, %s33
      %p39 = scmp.eq.s32.totalorder %s20, 0
      %p40 = por %p38, %p39
      %p41 = scmp.ne.s32.totalorder %s30, %s33
      %p42 = scmp.eq.s32.totalorder %s25, 1
      %p43 = por %p41, %p42
      %p44 = scmp.ne.s32.totalorder %s33, %s34
      %p45 = scmp.eq.s32.totalorder %s25, 0
      %p46 = por %p44, %p45
      %p47 = scmp.ne.s32.totalorder %s33, %s34
      %p48 = scmp.eq.s32.totalorder %s26, 1
      %p49 = por %p47, %p48
      %p51 = scmp.ne.s32.totalorder %s34, %s50
      %p52 = scmp.eq.s32.totalorder %s26, 0
      %p53 = por %p51, %p52
      %s55 = sadd.s32 %s54, 1
      %p58 = scmp.eq.s32.totalorder %s20, 1
      %p59 = scmp.ne.s32.totalorder %s54, %s56
      %p60 = scmp.eq.s32.totalorder %s20, 0
      %p61 = por %p59, %p60
      %p62 = scmp.ne.s32.totalorder %s54, %s56
      %p63 = scmp.eq.s32.totalorder %s25, 1
      %p64 = por %p62, %p63
      %p65 = scmp.ne.s32.totalorder %s56, %s57
      %p66 = scmp.eq.s32.totalorder %s25, 0
      %p67 = por %p65, %p66
      %p68 = scmp.ne.s32.totalorder %s56, %s57
      %p69 = scmp.eq.s32.totalorder %s26, 1
      %p70 = por %p68, %p69
      %p72 = scmp.ne.s32.totalorder %s57, %s71
      %p73 = scmp.eq.s32.totalorder %s26, 0
      %p74 = por %p72, %p73
      %s76 = sadd.s32 %s75, 1
      %p79 = scmp.eq.s32.totalorder %s20, 1
      %p80 = scmp.ne.s32.totalorder %s75, %s77
      %p81 = scmp.eq.s32.totalorder %s20, 0
      %p82 = por %p80, %p81
      %p83 = scmp.ne.s32.totalorder %s75, %s77
      %p84 = scmp.eq.s32.totalorder %s25, 1
      %p85 = por %p83, %p84
      %p86 = scmp.ne.s32.totalorder %s77, %s78
      %p87 = scmp.eq.s32.totalorder %s25, 0
      %p88 = por %p86, %p87
      %p89 = scmp.ne.s32.totalorder %s77, %s78
      %p90 = scmp.eq.s32.totalorder %s26, 1
      %p91 = por %p89, %p90
      %p93 = scmp.ne.s32.totalorder %s78, %s92
      %p94 = scmp.eq.s32.totalorder %s26, 0
      %p95 = por %p93, %p94
      %s97 = sadd.s32 %s96, 1
      %p100 = scmp.eq.s32.totalorder %s20, 1
      %p101 = scmp.ne.s32.totalorder %s96, %s98
      %p102 = scmp.eq.s32.totalorder %s20, 0
      %p103 = por %p101, %p102
      %p104 = scmp.ne.s32.totalorder %s96, %s98
      %p105 = scmp.eq.s32.totalorder %s25, 1
      %p106 = por %p104, %p105
      %p107 = scmp.ne.s32.totalorder %s98, %s99
      %p108 = scmp.eq.s32.totalorder %s25, 0
      %p109 = por %p107, %p108
      %p110 = scmp.ne.s32.totalorder %s98, %s99
      %p111 = scmp.eq.s32.totalorder %s26, 1
      %p112 = por %p110, %p111
      %p114 = scmp.ne.s32.totalorder %s99, %s113
      %p115 = scmp.eq.s32.totalorder %s26, 0
      %p116 = por %p114, %p115
      %s118 = sadd.s32 %s117, 1
      %p121 = scmp.eq.s32.totalorder %s20, 1
      %p122 = scmp.ne.s32.totalorder %s117, %s119
      %p123 = scmp.eq.s32.totalorder %s20, 0
      %p124 = por %p122, %p123
      %p125 = scmp.ne.s32.totalorder %s117, %s119
      %p126 = scmp.eq.s32.totalorder %s25, 1
      %p127 = por %p125, %p126
      %p128 = scmp.ne.s32.totalorder %s119, %s120
      %p129 = scmp.eq.s32.totalorder %s25, 0
      %p130 = por %p128, %p129
      %p131 = scmp.ne.s32.totalorder %s119, %s120
      %p132 = scmp.eq.s32.totalorder %s26, 1
      %p133 = por %p131, %p132
      %p135 = scmp.ne.s32.totalorder %s120, %s134
      %p136 = scmp.eq.s32.totalorder %s26, 0
      %p137 = por %p135, %p136
      %s139 = sadd.s32 %s138, 1
      %p142 = scmp.eq.s32.totalorder %s20, 1
      %p143 = scmp.ne.s32.totalorder %s138, %s140
      %p144 = scmp.eq.s32.totalorder %s20, 0
      %p145 = por %p143, %p144
      %p146 = scmp.ne.s32.totalorder %s138, %s140
      %p147 = scmp.eq.s32.totalorder %s25, 1
      %p148 = por %p146, %p147
      %p149 = scmp.ne.s32.totalorder %s140, %s141
      %p150 = scmp.eq.s32.totalorder %s25, 0
      %p151 = por %p149, %p150
      %p152 = scmp.ne.s32.totalorder %s140, %s141
      %p153 = scmp.eq.s32.totalorder %s26, 1
      %p154 = por %p152, %p153
      %p156 = scmp.ne.s32.totalorder %s141, %s155
      %p157 = scmp.eq.s32.totalorder %s26, 0
      %p158 = por %p156, %p157
      %s160 = sadd.s32 %s159, 1
      %p163 = scmp.eq.s32.totalorder %s20, 1
      %p164 = scmp.ne.s32.totalorder %s159, %s161
      %p165 = scmp.eq.s32.totalorder %s20, 0
      %p166 = por %p164, %p165
      %p167 = scmp.ne.s32.totalorder %s159, %s161
      %p168 = scmp.eq.s32.totalorder %s25, 1
      %p169 = por %p167, %p168
      %p170 = scmp.ne.s32.totalorder %s161, %s162
      %p171 = scmp.eq.s32.totalorder %s25, 0
      %p172 = por %p170, %p171
      %p173 = scmp.ne.s32.totalorder %s161, %s162
      %p174 = scmp.eq.s32.totalorder %s26, 1
      %p175 = por %p173, %p174
      %p177 = scmp.ne.s32.totalorder %s162, %s176
      %p178 = scmp.eq.s32.totalorder %s26, 0
      %p179 = por %p177, %p178
      %s181 = sadd.s32 %s180, 1
      %p184 = scmp.eq.s32.totalorder %s20, 1
      %p185 = scmp.ne.s32.totalorder %s180, %s182
      %p186 = scmp.eq.s32.totalorder %s20, 0
      %p187 = por %p185, %p186
      %p188 = scmp.ne.s32.totalorder %s180, %s182
      %p189 = scmp.eq.s32.totalorder %s25, 1
      %p190 = por %p188, %p189
      %p191 = scmp.ne.s32.totalorder %s182, %s183
      %p192 = scmp.eq.s32.totalorder %s25, 0
      %p193 = por %p191, %p192
      %p194 = scmp.ne.s32.totalorder %s182, %s183
      %p195 = scmp.eq.s32.totalorder %s26, 1
      %p196 = por %p194, %p195
      %p198 = scmp.ne.s32.totalorder %s183, %s197
      %p199 = scmp.eq.s32.totalorder %s26, 0
      %p200 = por %p198, %p199
      %s202 = sadd.s32 %s201, 1
      %p205 = scmp.eq.s32.totalorder %s20, 1
      %p206 = scmp.ne.s32.totalorder %s201, %s203
      %p207 = scmp.eq.s32.totalorder %s20, 0
      %p208 = por %p206, %p207
      %p209 = scmp.ne.s32.totalorder %s201, %s203
      %p210 = scmp.eq.s32.totalorder %s25, 1
      %p211 = por %p209, %p210
      %p212 = scmp.ne.s32.totalorder %s203, %s204
      %p213 = scmp.eq.s32.totalorder %s25, 0
      %p214 = por %p212, %p213
      %p215 = scmp.ne.s32.totalorder %s203, %s204
      %p216 = scmp.eq.s32.totalorder %s26, 1
      %p217 = por %p215, %p216
      %p219 = scmp.ne.s32.totalorder %s204, %s218
      %p220 = scmp.eq.s32.totalorder %s26, 0
      %p221 = por %p219, %p220
      %s223 = sadd.s32 %s222, 1
      %p226 = scmp.eq.s32.totalorder %s20, 1
      %p227 = scmp.ne.s32.totalorder %s222, %s224
      %p228 = scmp.eq.s32.totalorder %s20, 0
      %p229 = por %p227, %p228
      %p230 = scmp.ne.s32.totalorder %s222, %s224
      %p231 = scmp.eq.s32.totalorder %s25, 1
      %p232 = por %p230, %p231
      %p233 = scmp.ne.s32.totalorder %s224, %s225
      %p234 = scmp.eq.s32.totalorder %s25, 0
      %p235 = por %p233, %p234
      %p236 = scmp.ne.s32.totalorder %s224, %s225
      %p237 = scmp.eq.s32.totalorder %s26, 1
      %p238 = por %p236, %p237
      %p240 = scmp.ne.s32.totalorder %s225, %s239
      %p241 = scmp.eq.s32.totalorder %s26, 0
      %p242 = por %p240, %p241
      %s244 = sadd.s32 %s243, 1
      %p247 = scmp.eq.s32.totalorder %s20, 1
      %p248 = scmp.ne.s32.totalorder %s243, %s245
      %p249 = scmp.eq.s32.totalorder %s20, 0
      %p250 = por %p248, %p249
      %p251 = scmp.ne.s32.totalorder %s243, %s245
      %p252 = scmp.eq.s32.totalorder %s25, 1
      %p253 = por %p251, %p252
      %p254 = scmp.ne.s32.totalorder %s245, %s246
      %p255 = scmp.eq.s32.totalorder %s25, 0
      %p256 = por %p254, %p255
      %p257 = scmp.ne.s32.totalorder %s245, %s246
      %p258 = scmp.eq.s32.totalorder %s26, 1
      %p259 = por %p257, %p258
      %p261 = scmp.ne.s32.totalorder %s246, %s260
      %p262 = scmp.eq.s32.totalorder %s26, 0
      %p263 = por %p261, %p262
      %s264 = ssub.s32 %s20, %s27
      %p265 = scmp.eq.s32.totalorder %s264, 0
      %s267 = sadd.s32 %s266, 1
      %s268 = scalar_select %p265, %s266, %s267
      %p271 = pneg %p265
      %p272 = scmp.eq.s32.totalorder %s20, 1
      %p273 = por %p271, %p272
      %p274 = scmp.ne.s32.totalorder %s266, %s269
      %p275 = scmp.eq.s32.totalorder %s20, 0
      %p276 = por %p274, %p275
      %p277 = scmp.ne.s32.totalorder %s266, %s269
      %p278 = scmp.eq.s32.totalorder %s25, 1
      %p279 = por %p277, %p278
      %p280 = scmp.ne.s32.totalorder %s269, %s270
      %p281 = scmp.eq.s32.totalorder %s25, 0
      %p282 = por %p280, %p281
      %p283 = scmp.ne.s32.totalorder %s269, %s270
      %p284 = scmp.eq.s32.totalorder %s26, 1
      %p285 = por %p283, %p284
      %p287 = scmp.ne.s32.totalorder %s270, %s286
      %p288 = scmp.eq.s32.totalorder %s26, 0
      %p289 = por %p287, %p288
      %p290 = scmp.le.s32.totalorder 1, %s20
      %p291 = scmp.lt.s32.totalorder %s20, 3
      %p292 = pnand %p290, %p291
      %p293 = pneg %p292
      // Predicated region
      $region9: #{tpu_custom_call.1} parent=5 // pred_check
        _
      $region10: #{tpu_custom_call.1} parent=5 // pred_check_branch
        %295 = sbr.rel (%p292) target = $region12
      $region11: #{tpu_custom_call.1} parent=5 // pred_region
        %s296 = ssub.s32 %s20, 1
        // Predicated region
        $region13: #{tpu_custom_call.1} parent=11 // pred_check
          %p297 = pneg %p67
        $region14: #{tpu_custom_call.1} parent=11 // pred_check_branch
          %299 = sbr.rel (%p297) target = $region16
        $region15: #{tpu_custom_call.1} parent=11 // pred_region
          _
        $region16: #{tpu_custom_call.1} parent=11 // pred_fallthru
          _
        // Predicated region
        $region17: #{tpu_custom_call.1} parent=11 // pred_check
          %p300 = pneg %p88
        $region18: #{tpu_custom_call.1} parent=11 // pred_check_branch
          %302 = sbr.rel (%p300) target = $region20
        $region19: #{tpu_custom_call.1} parent=11 // pred_region
          _
        $region20: #{tpu_custom_call.1} parent=11 // pred_fallthru
          _
        // Predicated region
        $region21: #{tpu_custom_call.1} parent=11 // pred_check
          %p303 = pneg %p109
        $region22: #{tpu_custom_call.1} parent=11 // pred_check_branch
          %305 = sbr.rel (%p303) target = $region24
        $region23: #{tpu_custom_call.1} parent=11 // pred_region
          _
        $region24: #{tpu_custom_call.1} parent=11 // pred_fallthru
          _
        // Predicated region
        $region25: #{tpu_custom_call.1} parent=11 // pred_check
          %p306 = pneg %p130
        $region26: #{tpu_custom_call.1} parent=11 // pred_check_branch
          %308 = sbr.rel (%p306) target = $region28
        $region27: #{tpu_custom_call.1} parent=11 // pred_region
          _
        $region28: #{tpu_custom_call.1} parent=11 // pred_fallthru
          _
        // Predicated region
        $region29: #{tpu_custom_call.1} parent=11 // pred_check
          %p309 = pneg %p151
        $region30: #{tpu_custom_call.1} parent=11 // pred_check_branch
          %311 = sbr.rel (%p309) target = $region32
        $region31: #{tpu_custom_call.1} parent=11 // pred_region
          _
        $region32: #{tpu_custom_call.1} parent=11 // pred_fallthru
          _
        // Predicated region
        $region33: #{tpu_custom_call.1} parent=11 // pred_check
          %p312 = pneg %p172
        $region34: #{tpu_custom_call.1} parent=11 // pred_check_branch
          %314 = sbr.rel (%p312) target = $region36
        $region35: #{tpu_custom_call.1} parent=11 // pred_region
          _
        $region36: #{tpu_custom_call.1} parent=11 // pred_fallthru
          _
        // Predicated region
        $region37: #{tpu_custom_call.1} parent=11 // pred_check
          %p315 = pneg %p193
        $region38: #{tpu_custom_call.1} parent=11 // pred_check_branch
          %317 = sbr.rel (%p315) target = $region40
        $region39: #{tpu_custom_call.1} parent=11 // pred_region
          _
        $region40: #{tpu_custom_call.1} parent=11 // pred_fallthru
          _
        // Predicated region
        $region41: #{tpu_custom_call.1} parent=11 // pred_check
          %p318 = pneg %p214
        $region42: #{tpu_custom_call.1} parent=11 // pred_check_branch
          %320 = sbr.rel (%p318) target = $region44
        $region43: #{tpu_custom_call.1} parent=11 // pred_region
          _
        $region44: #{tpu_custom_call.1} parent=11 // pred_fallthru
          _
        // Predicated region
        $region45: #{tpu_custom_call.1} parent=11 // pred_check
          %p321 = pneg %p235
        $region46: #{tpu_custom_call.1} parent=11 // pred_check_branch
          %323 = sbr.rel (%p321) target = $region48
        $region47: #{tpu_custom_call.1} parent=11 // pred_region
          _
        $region48: #{tpu_custom_call.1} parent=11 // pred_fallthru
          _
        // Predicated region
        $region49: #{tpu_custom_call.1} parent=11 // pred_check
          %p324 = pneg %p256
        $region50: #{tpu_custom_call.1} parent=11 // pred_check_branch
          %326 = sbr.rel (%p324) target = $region52
        $region51: #{tpu_custom_call.1} parent=11 // pred_region
          _
        $region52: #{tpu_custom_call.1} parent=11 // pred_fallthru
          _
      $region12: #{tpu_custom_call.1} parent=5 // pred_fallthru
        _
      %p327 = scmp.lt.s32.totalorder %s20, 2
      // Predicated region
      $region53: #{tpu_custom_call.1} parent=5 // pred_check
        %p328 = pneg %p327
      $region54: #{tpu_custom_call.1} parent=5 // pred_check_branch
        %330 = sbr.rel (%p328) target = $region56
      $region55: #{tpu_custom_call.1} parent=5 // pred_region
        // Predicated region
        $region57: #{tpu_custom_call.1} parent=55 // pred_check
          %p331 = pneg %p40
        $region58: #{tpu_custom_call.1} parent=55 // pred_check_branch
          %333 = sbr.rel (%p331) target = $region60
        $region59: #{tpu_custom_call.1} parent=55 // pred_region
          %p334 = scmp.lt.s32.totalorder %s20, 1
          %s335 = scalar_select %p334, %s20, 1
          %s336 = smul.addr %s335, 8
          %s337 = scalar_lea.vmem %s0, %s336
        $region60: #{tpu_custom_call.1} parent=55 // pred_fallthru
          _
      $region56: #{tpu_custom_call.1} parent=5 // pred_fallthru
        _
      %p338 = scmp.le.s32.totalorder 1, %s20
      %p339 = scmp.lt.s32.totalorder %s20, 3
      %p340 = pnand %p338, %p339
      %p341 = pneg %p340
      // Predicated region
      $region61: #{tpu_custom_call.1} parent=5 // pred_check
        _
      $region62: #{tpu_custom_call.1} parent=5 // pred_check_branch
        %343 = sbr.rel (%p340) target = $region64
      $region63: #{tpu_custom_call.1} parent=5 // pred_region
        %s344 = ssub.s32 %s20, 1
        %p345 = scmp.lt.s32.totalorder %s25, 1
        %s346 = scalar_select %p345, %s25, 1
        %s347 = smul.addr %s346, 8
        %s348 = scalar_lea.vmem %s0, %s347
        %p349 = pneg %p46
        %p350 = pneg %p43
        %p351 = pneg %p67
        %p352 = pneg %p64
        %p353 = pneg %p88
        %p354 = pneg %p85
        %p355 = pneg %p109
        %p356 = pneg %p106
        %p357 = pneg %p130
        %p358 = pneg %p127
        %p359 = pneg %p151
        %p360 = pneg %p148
        %p361 = pneg %p172
        %p362 = pneg %p169
        %p363 = pneg %p193
        %p364 = pneg %p190
        %p365 = pneg %p214
        %p366 = pneg %p211
        %p367 = pneg %p235
        %p368 = pneg %p232
        %p369 = pneg %p256
        %p370 = pneg %p253
        %p371 = pneg %p282
        %p372 = pneg %p279
        %s373 = sand.u32 %s269, 1
        %s374 = scalar_lea.sflag [#allocation3], %s373
        %s375 = sand.u32 %s269, 1
        %s376 = smul.addr %s375, 8
        %s377 = scalar_lea.vmem [#allocation2], %s376
        %p378 = scmp.lt.s32.totalorder %s25, 1
        %s379 = scalar_select %p378, %s25, 1
        %s380 = smul.addr %s379, 8
        %s381 = scalar_lea.vmem %s0, %s380
        %v383 = vld [vmem:[%s381] sm:$0xff]
        %v384 = vpack.c.bf16 %v383, %v383
        %v385 = vld [vmem:[%s2] sm:$0x7]
        %v386 = vld [vmem:[%s3] sm:$0x1]
        %v388 = vlaneseq
        %v389 = vshrl.u32 %v388, 7
        %v390 = vsub.s32 0, %v389
        %v391 = vrot.slane %v386, %v390
        %vm393 = vcmask 39936
        %v395 = vsel %vm393, %v384, 0
        %vm397 = vcmask 1041408
        %vm398 = vcmask 1042432
        %v399 = vsel %vm397, 4294967295, 65535
        %v400 = vsel %vm398, %v399, 0
        %v402 = vand.u32 %v385, %v400
        %404 = vmatprep.subr.bf16.mxu0 0
        %405 = vmatpush1.bf16.msra.mxu0 %v402
        %406 = vmatprep.subr.bf16.mxu0 0
        %407 = vmatpush1.bf16.msra.mxu0 0
        %408 = vmatprep.subr.bf16.mxu0 0
        %409 = vmatpush1.bf16.msra.mxu0 0
        %410 = vmatprep.subr.bf16.mxu0 0
        %411 = vmatpush1.bf16.msra.mxu0 0
        %412 = vmatprep.subr.bf16.mxu0 0
        %413 = vmatpush1.bf16.msra.mxu0 0
        %414 = vmatprep.subr.bf16.mxu0 0
        %415 = vmatpush1.bf16.msra.mxu0 0
        %416 = vmatprep.subr.bf16.mxu0 0
        %417 = vmatpush1.bf16.msra.mxu0 0
        %418 = vmatprep.subr.bf16.mxu0 0
        %419 = vmatpush1.bf16.msra.mxu0 0
        %420 = vmatprep.subr.bf16.mxu0 0
        %421 = vmatpush1.bf16.msra.mxu0 0
        %422 = vmatprep.subr.bf16.mxu0 0
        %423 = vmatpush1.bf16.msra.mxu0 0
        %424 = vmatprep.subr.bf16.mxu0 0
        %425 = vmatpush1.bf16.msra.mxu0 0
        %426 = vmatprep.subr.bf16.mxu0 0
        %427 = vmatpush1.bf16.msra.mxu0 0
        %428 = vmatprep.subr.bf16.mxu0 0
        %429 = vmatpush1.bf16.msra.mxu0 0
        %430 = vmatprep.subr.bf16.mxu0 0
        %431 = vmatpush1.bf16.msra.mxu0 0
        %432 = vmatprep.subr.bf16.mxu0 0
        %433 = vmatpush1.bf16.msra.mxu0 0
        %434 = vmatprep.subr.bf16.mxu0 0
        %435 = vmatpush1.bf16.msra.mxu0 0
        %436 = vmatprep.mubr.bf16.mxu0 0
        %437 = vmatmul.mubr.bf16.gmra.mrb[0].mxu0 %v395
        %v438 = vpop.f32.mrb[0].mxu0
        %v439 = vadd.f32 %v391, %v438
        %v440 = vpop.f32.mrb[0].mxu0
        %v441 = vpop.f32.mrb[0].mxu0
        %v442 = vpop.f32.mrb[0].mxu0
        %443 = vdwg.mxu0
        %v444 = vld [vmem:[%s1] sm:$0xff]
        %v445 = vadd.f32 %v439, %v444
        %v446 = vld [vmem:[%s7] sm:$0x3f]
        %v447 = vpack.c.bf16 %v445, %v445
        %v448 = vld [vmem:[%s4] sm:$0xff]
        %v449 = vld [vmem:[%s4 + $0x8] sm:$0xff]
        %v450 = vld [vmem:[%s4 + $0x10] sm:$0xff]
        %v451 = vld [vmem:[%s4 + $0x18] sm:$0xff]
        %v452 = vld [vmem:[%s4 + $0x20] sm:$0xff]
        %v453 = vld [vmem:[%s4 + $0x28] sm:$0xff]
        %v454 = vld [vmem:[%s4 + $0x30] sm:$0xff]
        %v455 = vld [vmem:[%s4 + $0x38] sm:$0xff]
        %v456 = vld [vmem:[%s5] sm:$0x3]
        %v458 = vlaneseq
        %v459 = vshrl.u32 %v458, 7
        %v460 = vsub.s32 0, %v459
        %v461 = vrot.slane %v456, %v460
        %v462 = vlaneseq
        %v463 = vshrl.u32 %v462, 7
        %v464 = vsub.s32 1, %v463
        %v465 = vrot.slane %v456, %v464
        %v476 = vunpack.c.l.b16 %v448
        %v477 = vunpack.c.h.b16 %v448
        %v478 = vunpack.c.l.b16 %v449
        %v479 = vunpack.c.h.b16 %v449
        %v480 = vunpack.c.l.b16 %v450
        %v481 = vunpack.c.h.b16 %v450
        %v482 = vunpack.c.l.b16 %v451
        %v483 = vunpack.c.h.b16 %v451
        %v484 = vunpack.c.l.b16 %v452
        %v485 = vunpack.c.h.b16 %v452
        %v486 = vunpack.c.l.b16 %v453
        %v487 = vunpack.c.h.b16 %v453
        %v488 = vunpack.c.l.b16 %v454
        %v489 = vunpack.c.h.b16 %v454
        %v490 = vunpack.c.l.b16 %v455
        %v491 = vunpack.c.h.b16 %v455
        %v492 = vpack.c.b16 %v478, %v476
        %v493 = vpack.c.b16 %v479, %v477
        %v494 = vpack.c.b16 %v482, %v480
        %v495 = vpack.c.b16 %v483, %v481
        %v496 = vpack.c.b16 %v486, %v484
        %v497 = vpack.c.b16 %v487, %v485
        %v498 = vpack.c.b16 %v490, %v488
        %v499 = vpack.c.b16 %v491, %v489
        %vm508 = vcmask 523264
        %v510 = vsel %vm508, %v447, 0
        %512 = vmatprep.subr.bf16.mxu0 %v493
        %513 = vmatpush1.bf16.msra.mxu0 %v492
        %514 = vmatprep.subr.bf16.mxu0 %v495
        %515 = vmatpush1.bf16.msra.mxu0 %v494
        %516 = vmatprep.subr.bf16.mxu0 %v497
        %517 = vmatpush1.bf16.msra.mxu0 %v496
        %518 = vmatprep.subr.bf16.mxu0 %v499
        %519 = vmatpush1.bf16.msra.mxu0 %v498
        %520 = vmatprep.subr.bf16.mxu0 0
        %521 = vmatpush1.bf16.msra.mxu0 0
        %522 = vmatprep.subr.bf16.mxu0 0
        %523 = vmatpush1.bf16.msra.mxu0 0
        %524 = vmatprep.subr.bf16.mxu0 0
        %525 = vmatpush1.bf16.msra.mxu0 0
        %526 = vmatprep.subr.bf16.mxu0 0
        %527 = vmatpush1.bf16.msra.mxu0 0
        %528 = vmatprep.subr.bf16.mxu0 0
        %529 = vmatpush1.bf16.msra.mxu0 0
        %530 = vmatprep.subr.bf16.mxu0 0
        %531 = vmatpush1.bf16.msra.mxu0 0
        %532 = vmatprep.subr.bf16.mxu0 0
        %533 = vmatpush1.bf16.msra.mxu0 0
        %534 = vmatprep.subr.bf16.mxu0 0
        %535 = vmatpush1.bf16.msra.mxu0 0
        %536 = vmatprep.subr.bf16.mxu0 0
        %537 = vmatpush1.bf16.msra.mxu0 0
        %538 = vmatprep.subr.bf16.mxu0 0
        %539 = vmatpush1.bf16.msra.mxu0 0
        %540 = vmatprep.subr.bf16.mxu0 0
        %541 = vmatpush1.bf16.msra.mxu0 0
        %542 = vmatprep.subr.bf16.mxu0 0
        %543 = vmatpush1.bf16.msra.mxu0 0
        %544 = vmatprep.mubr.bf16.mxu0 0
        %545 = vmatmul.mubr.bf16.gmra.mrb[0].mxu0 %v510
        %v546 = vpop.f32.mrb[0].mxu0
        %v547 = vadd.f32 %v461, %v546
        %v548 = vpop.f32.mrb[0].mxu0
        %v549 = vadd.f32 %v465, %v548
        %v550 = vpop.f32.mrb[0].mxu0
        %v551 = vpop.f32.mrb[0].mxu0
        %552 = vdwg.mxu0
        %554 = vrot.lane.b32.xlu0 %v547, 112
        %v555 = vpop.permute.xlu0 %554
        %557 = vrot.lane.b32.xlu0 %v547, 96
        %v558 = vpop.permute.xlu0 %557
        %560 = vrot.lane.b32.xlu0 %v547, 80
        %v561 = vpop.permute.xlu0 %560
        %v563 = vpack.c.bf16 %v547, %v547
        %v564 = vpack.c.bf16 %v555, %v555
        %v565 = vpack.c.bf16 %v558, %v558
        %v566 = vpack.c.bf16 %v561, %v561
        %568 = vrot.lane.b32.xlu0 %v549, 112
        %v569 = vpop.permute.xlu0 %568
        %571 = vrot.lane.b32.xlu0 %v549, 96
        %v572 = vpop.permute.xlu0 %571
        %574 = vrot.lane.b32.xlu0 %v549, 80
        %v575 = vpop.permute.xlu0 %574
        %v577 = vpack.c.bf16 %v549, %v549
        %v578 = vpack.c.bf16 %v569, %v569
        %v579 = vpack.c.bf16 %v572, %v572
        %v580 = vpack.c.bf16 %v575, %v575
        %582 = vrot.lane.b32.xlu0 %v563, 64
        %v583 = vpop.permute.xlu0 %582
        %vm584 = vcmask 130048
        %v586 = vsel %vm584, %v563, 0
        %v589 = vsel %vm584, %v583, 0
        %591 = vmatprep.subr.bf16.mxu0 0
        %592 = vmatpush1.bf16.xpose.msra.mxu0 %v589
        %593 = vmatprep.subr.bf16.mxu0 0
        %594 = vmatpush1.bf16.xpose.msra.mxu0 0
        %595 = vmatprep.subr.bf16.mxu0 0
        %596 = vmatpush1.bf16.xpose.msra.mxu0 0
        %597 = vmatprep.subr.bf16.mxu0 0
        %598 = vmatpush1.bf16.xpose.msra.mxu0 0
        %599 = vmatprep.subr.bf16.mxu0 0
        %600 = vmatpush1.bf16.xpose.msra.mxu0 0
        %601 = vmatprep.subr.bf16.mxu0 0
        %602 = vmatpush1.bf16.xpose.msra.mxu0 0
        %603 = vmatprep.subr.bf16.mxu0 0
        %604 = vmatpush1.bf16.xpose.msra.mxu0 0
        %605 = vmatprep.subr.bf16.mxu0 0
        %606 = vmatpush1.bf16.xpose.msra.mxu0 0
        %607 = vmatprep.subr.bf16.mxu0 0
        %608 = vmatpush1.bf16.xpose.msra.mxu0 0
        %609 = vmatprep.subr.bf16.mxu0 0
        %610 = vmatpush1.bf16.xpose.msra.mxu0 0
        %611 = vmatprep.subr.bf16.mxu0 0
        %612 = vmatpush1.bf16.xpose.msra.mxu0 0
        %613 = vmatprep.subr.bf16.mxu0 0
        %614 = vmatpush1.bf16.xpose.msra.mxu0 0
        %615 = vmatprep.subr.bf16.mxu0 0
        %616 = vmatpush1.bf16.xpose.msra.mxu0 0
        %617 = vmatprep.subr.bf16.mxu0 0
        %618 = vmatpush1.bf16.xpose.msra.mxu0 0
        %619 = vmatprep.subr.bf16.mxu0 0
        %620 = vmatpush1.bf16.xpose.msra.mxu0 0
        %621 = vmatprep.subr.bf16.mxu0 0
        %622 = vmatpush1.bf16.xpose.msra.mxu0 0
        %623 = vmatprep.mubr.bf16.mxu0 0
        %624 = vmatmul.mubr.bf16.gmra.mrb[0].mxu0 %v586
        %v625 = vpop.f32.mrb[0].mxu0
        %v626 = vadd.f32 0.0, %v625
        %v627 = vpop.f32.mrb[0].mxu0
        %v628 = vpop.f32.mrb[0].mxu0
        %v629 = vpop.f32.mrb[0].mxu0
        %630 = vdwg.mxu0
        %632 = vrot.lane.b32.xlu0 %v564, 64
        %v633 = vpop.permute.xlu0 %632
        %v635 = vsel %vm584, %v564, 0
        %v638 = vsel %vm584, %v633, 0
        %640 = vmatprep.subr.bf16.mxu0 0
        %641 = vmatpush1.bf16.xpose.msra.mxu0 %v638
        %642 = vmatprep.subr.bf16.mxu0 0
        %643 = vmatpush1.bf16.xpose.msra.mxu0 0
        %644 = vmatprep.subr.bf16.mxu0 0
        %645 = vmatpush1.bf16.xpose.msra.mxu0 0
        %646 = vmatprep.subr.bf16.mxu0 0
        %647 = vmatpush1.bf16.xpose.msra.mxu0 0
        %648 = vmatprep.subr.bf16.mxu0 0
        %649 = vmatpush1.bf16.xpose.msra.mxu0 0
        %650 = vmatprep.subr.bf16.mxu0 0
        %651 = vmatpush1.bf16.xpose.msra.mxu0 0
        %652 = vmatprep.subr.bf16.mxu0 0
        %653 = vmatpush1.bf16.xpose.msra.mxu0 0
        %654 = vmatprep.subr.bf16.mxu0 0
        %655 = vmatpush1.bf16.xpose.msra.mxu0 0
        %656 = vmatprep.subr.bf16.mxu0 0
        %657 = vmatpush1.bf16.xpose.msra.mxu0 0
        %658 = vmatprep.subr.bf16.mxu0 0
        %659 = vmatpush1.bf16.xpose.msra.mxu0 0
        %660 = vmatprep.subr.bf16.mxu0 0
        %661 = vmatpush1.bf16.xpose.msra.mxu0 0
        %662 = vmatprep.subr.bf16.mxu0 0
        %663 = vmatpush1.bf16.xpose.msra.mxu0 0
        %664 = vmatprep.subr.bf16.mxu0 0
        %665 = vmatpush1.bf16.xpose.msra.mxu0 0
        %666 = vmatprep.subr.bf16.mxu0 0
        %667 = vmatpush1.bf16.xpose.msra.mxu0 0
        %668 = vmatprep.subr.bf16.mxu0 0
        %669 = vmatpush1.bf16.xpose.msra.mxu0 0
        %670 = vmatprep.subr.bf16.mxu0 0
        %671 = vmatpush1.bf16.xpose.msra.mxu0 0
        %672 = vmatprep.mubr.bf16.mxu0 0
        %673 = vmatmul.mubr.bf16.gmra.mrb[0].mxu0 %v635
        %v674 = vpop.f32.mrb[0].mxu0
        %v675 = vadd.f32 0.0, %v674
        %v676 = vpop.f32.mrb[0].mxu0
        %v677 = vpop.f32.mrb[0].mxu0
        %v678 = vpop.f32.mrb[0].mxu0
        %679 = vdwg.mxu0
        %681 = vrot.lane.b32.xlu0 %v565, 64
        %v682 = vpop.permute.xlu0 %681
        %v684 = vsel %vm584, %v565, 0
        %v687 = vsel %vm584, %v682, 0
        %689 = vmatprep.subr.bf16.mxu0 0
        %690 = vmatpush1.bf16.xpose.msra.mxu0 %v687
        %691 = vmatprep.subr.bf16.mxu0 0
        %692 = vmatpush1.bf16.xpose.msra.mxu0 0
        %693 = vmatprep.subr.bf16.mxu0 0
        %694 = vmatpush1.bf16.xpose.msra.mxu0 0
        %695 = vmatprep.subr.bf16.mxu0 0
        %696 = vmatpush1.bf16.xpose.msra.mxu0 0
        %697 = vmatprep.subr.bf16.mxu0 0
        %698 = vmatpush1.bf16.xpose.msra.mxu0 0
        %699 = vmatprep.subr.bf16.mxu0 0
        %700 = vmatpush1.bf16.xpose.msra.mxu0 0
        %701 = vmatprep.subr.bf16.mxu0 0
        %702 = vmatpush1.bf16.xpose.msra.mxu0 0
        %703 = vmatprep.subr.bf16.mxu0 0
        %704 = vmatpush1.bf16.xpose.msra.mxu0 0
        %705 = vmatprep.subr.bf16.mxu0 0
        %706 = vmatpush1.bf16.xpose.msra.mxu0 0
        %707 = vmatprep.subr.bf16.mxu0 0
        %708 = vmatpush1.bf16.xpose.msra.mxu0 0
        %709 = vmatprep.subr.bf16.mxu0 0
        %710 = vmatpush1.bf16.xpose.msra.mxu0 0
        %711 = vmatprep.subr.bf16.mxu0 0
        %712 = vmatpush1.bf16.xpose.msra.mxu0 0
        %713 = vmatprep.subr.bf16.mxu0 0
        %714 = vmatpush1.bf16.xpose.msra.mxu0 0
        %715 = vmatprep.subr.bf16.mxu0 0
        %716 = vmatpush1.bf16.xpose.msra.mxu0 0
        %717 = vmatprep.subr.bf16.mxu0 0
        %718 = vmatpush1.bf16.xpose.msra.mxu0 0
        %719 = vmatprep.subr.bf16.mxu0 0
        %720 = vmatpush1.bf16.xpose.msra.mxu0 0
        %721 = vmatprep.mubr.bf16.mxu0 0
        %722 = vmatmul.mubr.bf16.gmra.mrb[0].mxu0 %v684
        %v723 = vpop.f32.mrb[0].mxu0
        %v724 = vadd.f32 0.0, %v723
        %v725 = vpop.f32.mrb[0].mxu0
        %v726 = vpop.f32.mrb[0].mxu0
        %v727 = vpop.f32.mrb[0].mxu0
        %728 = vdwg.mxu0
        %730 = vrot.lane.b32.xlu0 %v566, 64
        %v731 = vpop.permute.xlu0 %730
        %v733 = vsel %vm584, %v566, 0
        %v736 = vsel %vm584, %v731, 0
        %738 = vmatprep.subr.bf16.mxu0 0
        %739 = vmatpush1.bf16.xpose.msra.mxu0 %v736
        %740 = vmatprep.subr.bf16.mxu0 0
        %741 = vmatpush1.bf16.xpose.msra.mxu0 0
        %742 = vmatprep.subr.bf16.mxu0 0
        %743 = vmatpush1.bf16.xpose.msra.mxu0 0
        %744 = vmatprep.subr.bf16.mxu0 0
        %745 = vmatpush1.bf16.xpose.msra.mxu0 0
        %746 = vmatprep.subr.bf16.mxu0 0
        %747 = vmatpush1.bf16.xpose.msra.mxu0 0
        %748 = vmatprep.subr.bf16.mxu0 0
        %749 = vmatpush1.bf16.xpose.msra.mxu0 0
        %750 = vmatprep.subr.bf16.mxu0 0
        %751 = vmatpush1.bf16.xpose.msra.mxu0 0
        %752 = vmatprep.subr.bf16.mxu0 0
        %753 = vmatpush1.bf16.xpose.msra.mxu0 0
        %754 = vmatprep.subr.bf16.mxu0 0
        %755 = vmatpush1.bf16.xpose.msra.mxu0 0
        %756 = vmatprep.subr.bf16.mxu0 0
        %757 = vmatpush1.bf16.xpose.msra.mxu0 0
        %758 = vmatprep.subr.bf16.mxu0 0
        %759 = vmatpush1.bf16.xpose.msra.mxu0 0
        %760 = vmatprep.subr.bf16.mxu0 0
        %761 = vmatpush1.bf16.xpose.msra.mxu0 0
        %762 = vmatprep.subr.bf16.mxu0 0
        %763 = vmatpush1.bf16.xpose.msra.mxu0 0
        %764 = vmatprep.subr.bf16.mxu0 0
        %765 = vmatpush1.bf16.xpose.msra.mxu0 0
        %766 = vmatprep.subr.bf16.mxu0 0
        %767 = vmatpush1.bf16.xpose.msra.mxu0 0
        %768 = vmatprep.subr.bf16.mxu0 0
        %769 = vmatpush1.bf16.xpose.msra.mxu0 0
        %770 = vmatprep.mubr.bf16.mxu0 0
        %771 = vmatmul.mubr.bf16.gmra.mrb[0].mxu0 %v733
        %v772 = vpop.f32.mrb[0].mxu0
        %v773 = vadd.f32 0.0, %v772
        %v774 = vpop.f32.mrb[0].mxu0
        %v775 = vpop.f32.mrb[0].mxu0
        %v776 = vpop.f32.mrb[0].mxu0
        %777 = vdwg.mxu0
        %v778 = vmul.f32 %v626, 0.25
        %v779 = vmul.f32 %v675, 0.25
        %v780 = vmul.f32 %v724, 0.25
        %v781 = vmul.f32 %v773, 0.25
        %vm782 = vcmask 64512
        %v783 = vsel %vm782, %v778, -inf
        %784 = vmax.xlane.f32.xlu0 %v783
        %v785 = vpop.xlane.xlu0 %784
        %v786 = vsel %vm782, %v779, -inf
        %787 = vmax.xlane.f32.xlu0 %v786
        %v788 = vpop.xlane.xlu0 %787
        %v789 = vsel %vm782, %v780, -inf
        %790 = vmax.xlane.f32.xlu0 %v789
        %v791 = vpop.xlane.xlu0 %790
        %v792 = vsel %vm782, %v781, -inf
        %793 = vmax.xlane.f32.xlu0 %v792
        %v794 = vpop.xlane.xlu0 %793
        %v795 = vsub.f32 %v778, %v785
        %v796 = vsub.f32 %v779, %v788
        %v797 = vsub.f32 %v780, %v791
        %v798 = vsub.f32 %v781, %v794
        %v799 = vmul.f32 %v795, 1.442695
        %v800 = vpow.pop %v799
        %v801 = vmul.f32 %v796, 1.442695
        %v802 = vpow.pop %v801
        %v803 = vmul.f32 %v797, 1.442695
        %v804 = vpow.pop %v803
        %v805 = vmul.f32 %v798, 1.442695
        %v806 = vpow.pop %v805
        %v807 = vsel %vm782, %v800, 0.0
        %808 = vadd.xlane.f32.xlu0 %v807
        %v809 = vpop.xlane.xlu0 %808
        %v810 = vsel %vm782, %v802, 0.0
        %811 = vadd.xlane.f32.xlu0 %v810
        %v812 = vpop.xlane.xlu0 %811
        %v813 = vsel %vm782, %v804, 0.0
        %814 = vadd.xlane.f32.xlu0 %v813
        %v815 = vpop.xlane.xlu0 %814
        %v816 = vsel %vm782, %v806, 0.0
        %817 = vadd.xlane.f32.xlu0 %v816
        %v818 = vpop.xlane.xlu0 %817
        %v819 = vrcp.pop %v809
        %v820 = vmul.f32 %v800, %v819
        %v821 = vrcp.pop %v812
        %v822 = vmul.f32 %v802, %v821
        %v823 = vrcp.pop %v815
        %v824 = vmul.f32 %v804, %v823
        %v825 = vrcp.pop %v818
        %v826 = vmul.f32 %v806, %v825
        %v827 = vpack.c.bf16 %v820, %v820
        %v828 = vpack.c.bf16 %v822, %v822
        %v829 = vpack.c.bf16 %v824, %v824
        %v830 = vpack.c.bf16 %v826, %v826
        %v832 = vsel %vm782, %v827, 0
        %vm834 = vcmask 1043456
        %v836 = vsel %vm834, %v577, 0
        %838 = vmatprep.subr.bf16.mxu0 0
        %839 = vmatpush1.bf16.msra.mxu0 %v836
        %840 = vmatprep.subr.bf16.mxu0 0
        %841 = vmatpush1.bf16.msra.mxu0 0
        %842 = vmatprep.subr.bf16.mxu0 0
        %843 = vmatpush1.bf16.msra.mxu0 0
        %844 = vmatprep.subr.bf16.mxu0 0
        %845 = vmatpush1.bf16.msra.mxu0 0
        %846 = vmatprep.subr.bf16.mxu0 0
        %847 = vmatpush1.bf16.msra.mxu0 0
        %848 = vmatprep.subr.bf16.mxu0 0
        %849 = vmatpush1.bf16.msra.mxu0 0
        %850 = vmatprep.subr.bf16.mxu0 0
        %851 = vmatpush1.bf16.msra.mxu0 0
        %852 = vmatprep.subr.bf16.mxu0 0
        %853 = vmatpush1.bf16.msra.mxu0 0
        %854 = vmatprep.subr.bf16.mxu0 0
        %855 = vmatpush1.bf16.msra.mxu0 0
        %856 = vmatprep.subr.bf16.mxu0 0
        %857 = vmatpush1.bf16.msra.mxu0 0
        %858 = vmatprep.subr.bf16.mxu0 0
        %859 = vmatpush1.bf16.msra.mxu0 0
        %860 = vmatprep.subr.bf16.mxu0 0
        %861 = vmatpush1.bf16.msra.mxu0 0
        %862 = vmatprep.subr.bf16.mxu0 0
        %863 = vmatpush1.bf16.msra.mxu0 0
        %864 = vmatprep.subr.bf16.mxu0 0
        %865 = vmatpush1.bf16.msra.mxu0 0
        %866 = vmatprep.subr.bf16.mxu0 0
        %867 = vmatpush1.bf16.msra.mxu0 0
        %868 = vmatprep.subr.bf16.mxu0 0
        %869 = vmatpush1.bf16.msra.mxu0 0
        %870 = vmatprep.mubr.bf16.mxu0 0
        %871 = vmatmul.mubr.bf16.gmra.mrb[0].mxu0 %v832
        %v872 = vpop.f32.mrb[0].mxu0
        %v873 = vadd.f32 0.0, %v872
        %v874 = vpop.f32.mrb[0].mxu0
        %v875 = vpop.f32.mrb[0].mxu0
        %v876 = vpop.f32.mrb[0].mxu0
        %877 = vdwg.mxu0
        %v879 = vsel %vm782, %v828, 0
        %v882 = vsel %vm834, %v578, 0
        %884 = vmatprep.subr.bf16.mxu0 0
        %885 = vmatpush1.bf16.msra.mxu0 %v882
        %886 = vmatprep.subr.bf16.mxu0 0
        %887 = vmatpush1.bf16.msra.mxu0 0
        %888 = vmatprep.subr.bf16.mxu0 0
        %889 = vmatpush1.bf16.msra.mxu0 0
        %890 = vmatprep.subr.bf16.mxu0 0
        %891 = vmatpush1.bf16.msra.mxu0 0
        %892 = vmatprep.subr.bf16.mxu0 0
        %893 = vmatpush1.bf16.msra.mxu0 0
        %894 = vmatprep.subr.bf16.mxu0 0
        %895 = vmatpush1.bf16.msra.mxu0 0
        %896 = vmatprep.subr.bf16.mxu0 0
        %897 = vmatpush1.bf16.msra.mxu0 0
        %898 = vmatprep.subr.bf16.mxu0 0
        %899 = vmatpush1.bf16.msra.mxu0 0
        %900 = vmatprep.subr.bf16.mxu0 0
        %901 = vmatpush1.bf16.msra.mxu0 0
        %902 = vmatprep.subr.bf16.mxu0 0
        %903 = vmatpush1.bf16.msra.mxu0 0
        %904 = vmatprep.subr.bf16.mxu0 0
        %905 = vmatpush1.bf16.msra.mxu0 0
        %906 = vmatprep.subr.bf16.mxu0 0
        %907 = vmatpush1.bf16.msra.mxu0 0
        %908 = vmatprep.subr.bf16.mxu0 0
        %909 = vmatpush1.bf16.msra.mxu0 0
        %910 = vmatprep.subr.bf16.mxu0 0
        %911 = vmatpush1.bf16.msra.mxu0 0
        %912 = vmatprep.subr.bf16.mxu0 0
        %913 = vmatpush1.bf16.msra.mxu0 0
        %914 = vmatprep.subr.bf16.mxu0 0
        %915 = vmatpush1.bf16.msra.mxu0 0
        %916 = vmatprep.mubr.bf16.mxu0 0
        %917 = vmatmul.mubr.bf16.gmra.mrb[0].mxu0 %v879
        %v918 = vpop.f32.mrb[0].mxu0
        %v919 = vadd.f32 0.0, %v918
        %v920 = vpop.f32.mrb[0].mxu0
        %v921 = vpop.f32.mrb[0].mxu0
        %v922 = vpop.f32.mrb[0].mxu0
        %923 = vdwg.mxu0
        %v925 = vsel %vm782, %v829, 0
        %v928 = vsel %vm834, %v579, 0
        %930 = vmatprep.subr.bf16.mxu0 0
        %931 = vmatpush1.bf16.msra.mxu0 %v928
        %932 = vmatprep.subr.bf16.mxu0 0
        %933 = vmatpush1.bf16.msra.mxu0 0
        %934 = vmatprep.subr.bf16.mxu0 0
        %935 = vmatpush1.bf16.msra.mxu0 0
        %936 = vmatprep.subr.bf16.mxu0 0
        %937 = vmatpush1.bf16.msra.mxu0 0
        %938 = vmatprep.subr.bf16.mxu0 0
        %939 = vmatpush1.bf16.msra.mxu0 0
        %940 = vmatprep.subr.bf16.mxu0 0
        %941 = vmatpush1.bf16.msra.mxu0 0
        %942 = vmatprep.subr.bf16.mxu0 0
        %943 = vmatpush1.bf16.msra.mxu0 0
        %944 = vmatprep.subr.bf16.mxu0 0
        %945 = vmatpush1.bf16.msra.mxu0 0
        %946 = vmatprep.subr.bf16.mxu0 0
        %947 = vmatpush1.bf16.msra.mxu0 0
        %948 = vmatprep.subr.bf16.mxu0 0
        %949 = vmatpush1.bf16.msra.mxu0 0
        %950 = vmatprep.subr.bf16.mxu0 0
        %951 = vmatpush1.bf16.msra.mxu0 0
        %952 = vmatprep.subr.bf16.mxu0 0
        %953 = vmatpush1.bf16.msra.mxu0 0
        %954 = vmatprep.subr.bf16.mxu0 0
        %955 = vmatpush1.bf16.msra.mxu0 0
        %956 = vmatprep.subr.bf16.mxu0 0
        %957 = vmatpush1.bf16.msra.mxu0 0
        %958 = vmatprep.subr.bf16.mxu0 0
        %959 = vmatpush1.bf16.msra.mxu0 0
        %960 = vmatprep.subr.bf16.mxu0 0
        %961 = vmatpush1.bf16.msra.mxu0 0
        %962 = vmatprep.mubr.bf16.mxu0 0
        %963 = vmatmul.mubr.bf16.gmra.mrb[0].mxu0 %v925
        %v964 = vpop.f32.mrb[0].mxu0
        %v965 = vadd.f32 0.0, %v964
        %v966 = vpop.f32.mrb[0].mxu0
        %v967 = vpop.f32.mrb[0].mxu0
        %v968 = vpop.f32.mrb[0].mxu0
        %969 = vdwg.mxu0
        %v971 = vsel %vm782, %v830, 0
        %v974 = vsel %vm834, %v580, 0
        %976 = vmatprep.subr.bf16.mxu0 0
        %977 = vmatpush1.bf16.msra.mxu0 %v974
        %978 = vmatprep.subr.bf16.mxu0 0
        %979 = vmatpush1.bf16.msra.mxu0 0
        %980 = vmatprep.subr.bf16.mxu0 0
        %981 = vmatpush1.bf16.msra.mxu0 0
        %982 = vmatprep.subr.bf16.mxu0 0
        %983 = vmatpush1.bf16.msra.mxu0 0
        %984 = vmatprep.subr.bf16.mxu0 0
        %985 = vmatpush1.bf16.msra.mxu0 0
        %986 = vmatprep.subr.bf16.mxu0 0
        %987 = vmatpush1.bf16.msra.mxu0 0
        %988 = vmatprep.subr.bf16.mxu0 0
        %989 = vmatpush1.bf16.msra.mxu0 0
        %990 = vmatprep.subr.bf16.mxu0 0
        %991 = vmatpush1.bf16.msra.mxu0 0
        %992 = vmatprep.subr.bf16.mxu0 0
        %993 = vmatpush1.bf16.msra.mxu0 0
        %994 = vmatprep.subr.bf16.mxu0 0
        %995 = vmatpush1.bf16.msra.mxu0 0
        %996 = vmatprep.subr.bf16.mxu0 0
        %997 = vmatpush1.bf16.msra.mxu0 0
        %998 = vmatprep.subr.bf16.mxu0 0
        %999 = vmatpush1.bf16.msra.mxu0 0
        %1000 = vmatprep.subr.bf16.mxu0 0
        %1001 = vmatpush1.bf16.msra.mxu0 0
        %1002 = vmatprep.subr.bf16.mxu0 0
        %1003 = vmatpush1.bf16.msra.mxu0 0
        %1004 = vmatprep.subr.bf16.mxu0 0
        %1005 = vmatpush1.bf16.msra.mxu0 0
        %1006 = vmatprep.subr.bf16.mxu0 0
        %1007 = vmatpush1.bf16.msra.mxu0 0
        %1008 = vmatprep.mubr.bf16.mxu0 0
        %1009 = vmatmul.mubr.bf16.gmra.mrb[0].mxu0 %v971
        %v1010 = vpop.f32.mrb[0].mxu0
        %v1011 = vadd.f32 0.0, %v1010
        %v1012 = vpop.f32.mrb[0].mxu0
        %v1013 = vpop.f32.mrb[0].mxu0
        %v1014 = vpop.f32.mrb[0].mxu0
        %1015 = vdwg.mxu0
        %1017 = vrot.lane.b32.xlu0 %v919, 16
        %v1018 = vpop.permute.xlu0 %1017
        %1021 = vrot.lane.b32.xlu0 %v965, 32
        %v1022 = vpop.permute.xlu0 %1021
        %1025 = vrot.lane.b32.xlu0 %v1011, 48
        %v1026 = vpop.permute.xlu0 %1025
        %v1028 = vsel %vm584, %v873, %v1018
        %vm1029 = vcmask 261120
        %v1030 = vsel %vm1029, %v1028, %v1022
        %vm1031 = vcmask 392192
        %v1032 = vsel %vm1031, %v1030, %v1026
        %v1033 = vpack.c.bf16 %v1032, %v1032
        %v1034 = vld [vmem:[%s6] sm:$0xf]
        %v1035 = vld [vmem:[%s6 + $0x4] sm:$0xf]
        %v1036 = vld [vmem:[%s6 + $0x8] sm:$0xf]
        %v1037 = vld [vmem:[%s6 + $0xc] sm:$0xf]
        %v1038 = vld [vmem:[%s6 + $0x10] sm:$0xf]
        %v1039 = vld [vmem:[%s6 + $0x14] sm:$0xf]
        %v1040 = vld [vmem:[%s6 + $0x18] sm:$0xf]
        %v1041 = vld [vmem:[%s6 + $0x1c] sm:$0xf]
        %v1042 = vlaneseq
        %v1043 = vshrl.u32 %v1042, 7
        %v1044 = vsub.s32 0, %v1043
        %v1045 = vrot.slane %v446, %v1044
        %v1054 = vunpack.c.l.b16 %v1034
        %v1055 = vunpack.c.l.b16 %v1035
        %v1056 = vunpack.c.l.b16 %v1036
        %v1057 = vunpack.c.l.b16 %v1037
        %v1058 = vunpack.c.l.b16 %v1038
        %v1059 = vunpack.c.l.b16 %v1039
        %v1060 = vunpack.c.l.b16 %v1040
        %v1061 = vunpack.c.l.b16 %v1041
        %v1062 = vpack.c.b16 %v1055, %v1054
        %v1063 = vpack.c.b16 %v1057, %v1056
        %v1064 = vpack.c.b16 %v1059, %v1058
        %v1065 = vpack.c.b16 %v1061, %v1060
        %v1071 = vsel %vm508, %v1033, 0
        %1073 = vmatprep.subr.bf16.mxu0 0
        %1074 = vmatpush1.bf16.msra.mxu0 %v1062
        %1075 = vmatprep.subr.bf16.mxu0 0
        %1076 = vmatpush1.bf16.msra.mxu0 %v1063
        %1077 = vmatprep.subr.bf16.mxu0 0
        %1078 = vmatpush1.bf16.msra.mxu0 %v1064
        %1079 = vmatprep.subr.bf16.mxu0 0
        %1080 = vmatpush1.bf16.msra.mxu0 %v1065
        %1081 = vmatprep.subr.bf16.mxu0 0
        %1082 = vmatpush1.bf16.msra.mxu0 0
        %1083 = vmatprep.subr.bf16.mxu0 0
        %1084 = vmatpush1.bf16.msra.mxu0 0
        %1085 = vmatprep.subr.bf16.mxu0 0
        %1086 = vmatpush1.bf16.msra.mxu0 0
        %1087 = vmatprep.subr.bf16.mxu0 0
        %1088 = vmatpush1.bf16.msra.mxu0 0
        %1089 = vmatprep.subr.bf16.mxu0 0
        %1090 = vmatpush1.bf16.msra.mxu0 0
        %1091 = vmatprep.subr.bf16.mxu0 0
        %1092 = vmatpush1.bf16.msra.mxu0 0
        %1093 = vmatprep.subr.bf16.mxu0 0
        %1094 = vmatpush1.bf16.msra.mxu0 0
        %1095 = vmatprep.subr.bf16.mxu0 0
        %1096 = vmatpush1.bf16.msra.mxu0 0
        %1097 = vmatprep.subr.bf16.mxu0 0
        %1098 = vmatpush1.bf16.msra.mxu0 0
        %1099 = vmatprep.subr.bf16.mxu0 0
        %1100 = vmatpush1.bf16.msra.mxu0 0
        %1101 = vmatprep.subr.bf16.mxu0 0
        %1102 = vmatpush1.bf16.msra.mxu0 0
        %1103 = vmatprep.subr.bf16.mxu0 0
        %1104 = vmatpush1.bf16.msra.mxu0 0
        %1105 = vmatprep.mubr.bf16.mxu0 0
        %1106 = vmatmul.mubr.bf16.gmra.mrb[0].mxu0 %v1071
        %v1107 = vpop.f32.mrb[0].mxu0
        %v1108 = vadd.f32 %v1045, %v1107
        %v1109 = vpop.f32.mrb[0].mxu0
        %v1110 = vpop.f32.mrb[0].mxu0
        %v1111 = vpop.f32.mrb[0].mxu0
        %1112 = vdwg.mxu0
        %v1113 = vadd.f32 %v445, %v1108
        %v1114 = vsel %vm508, %v1113, 0.0
        %1115 = vadd.xlane.f32.xlu0 %v1114
        %v1116 = vpop.xlane.xlu0 %1115
        %v1117 = vrcp.pop 64.0
        %v1118 = vmul.f32 %v1116, %v1117
        %v1119 = vsub.f32 %v1113, %v1118
        %v1120 = vmul.f32 %v1119, %v1119
        %v1121 = vsel %vm508, %v1120, 0.0
        %1122 = vadd.xlane.f32.xlu0 %v1121
        %v1123 = vpop.xlane.xlu0 %1122
        %v1124 = vmul.f32 %v1123, %v1117
        %v1125 = vadd.f32 %v1124, 1e-05
        %v1126 = vrsqrt.pop %v1125
        %v1127 = vmul.f32 %v1119, %v1126
        %v1128 = vlaneseq
        %v1129 = vshrl.u32 %v1128, 7
        %v1130 = vsub.s32 1, %v1129
        %v1131 = vrot.slane %v446, %v1130
        %v1132 = vmul.f32 %v1127, %v1131
        %v1133 = vlaneseq
        %v1134 = vshrl.u32 %v1133, 7
        %v1135 = vsub.s32 2, %v1134
        %v1136 = vrot.slane %v446, %v1135
        %v1137 = vadd.f32 %v1132, %v1136
        %v1138 = vpack.c.bf16 %v1137, %v1137
        %v1139 = vld [vmem:[%s8] sm:$0xff]
        %v1140 = vld [vmem:[%s8 + $0x8] sm:$0xff]
        %v1141 = vld [vmem:[%s8 + $0x10] sm:$0xff]
        %v1142 = vld [vmem:[%s8 + $0x18] sm:$0xff]
        %v1143 = vld [vmem:[%s8 + $0x20] sm:$0xff]
        %v1144 = vld [vmem:[%s8 + $0x28] sm:$0xff]
        %v1145 = vld [vmem:[%s8 + $0x30] sm:$0xff]
        %v1146 = vld [vmem:[%s8 + $0x38] sm:$0xff]
        %v1147 = vld [vmem:[%s9] sm:$0x3]
        %v1149 = vlaneseq
        %v1150 = vshrl.u32 %v1149, 7
        %v1151 = vsub.s32 0, %v1150
        %v1152 = vrot.slane %v1147, %v1151
        %v1153 = vlaneseq
        %v1154 = vshrl.u32 %v1153, 7
        %v1155 = vsub.s32 1, %v1154
        %v1156 = vrot.slane %v1147, %v1155
        %v1167 = vunpack.c.l.b16 %v1139
        %v1168 = vunpack.c.h.b16 %v1139
        %v1169 = vunpack.c.l.b16 %v1140
        %v1170 = vunpack.c.h.b16 %v1140
        %v1171 = vunpack.c.l.b16 %v1141
        %v1172 = vunpack.c.h.b16 %v1141
        %v1173 = vunpack.c.l.b16 %v1142
        %v1174 = vunpack.c.h.b16 %v1142
        %v1175 = vunpack.c.l.b16 %v1143
        %v1176 = vunpack.c.h.b16 %v1143
        %v1177 = vunpack.c.l.b16 %v1144
        %v1178 = vunpack.c.h.b16 %v1144
        %v1179 = vunpack.c.l.b16 %v1145
        %v1180 = vunpack.c.h.b16 %v1145
        %v1181 = vunpack.c.l.b16 %v1146
        %v1182 = vunpack.c.h.b16 %v1146
        %v1183 = vpack.c.b16 %v1169, %v1167
        %v1184 = vpack.c.b16 %v1170, %v1168
        %v1185 = vpack.c.b16 %v1173, %v1171
        %v1186 = vpack.c.b16 %v1174, %v1172
        %v1187 = vpack.c.b16 %v1177, %v1175
        %v1188 = vpack.c.b16 %v1178, %v1176
        %v1189 = vpack.c.b16 %v1181, %v1179
        %v1190 = vpack.c.b16 %v1182, %v1180
        %v1200 = vsel %vm508, %v1138, 0
        %1202 = vmatprep.subr.bf16.mxu0 %v1184
        %1203 = vmatpush1.bf16.msra.mxu0 %v1183
        %1204 = vmatprep.subr.bf16.mxu0 %v1186
        %1205 = vmatpush1.bf16.msra.mxu0 %v1185
        %1206 = vmatprep.subr.bf16.mxu0 %v1188
        %1207 = vmatpush1.bf16.msra.mxu0 %v1187
        %1208 = vmatprep.subr.bf16.mxu0 %v1190
        %1209 = vmatpush1.bf16.msra.mxu0 %v1189
        %1210 = vmatprep.subr.bf16.mxu0 0
        %1211 = vmatpush1.bf16.msra.mxu0 0
        %1212 = vmatprep.subr.bf16.mxu0 0
        %1213 = vmatpush1.bf16.msra.mxu0 0
        %1214 = vmatprep.subr.bf16.mxu0 0
        %1215 = vmatpush1.bf16.msra.mxu0 0
        %1216 = vmatprep.subr.bf16.mxu0 0
        %1217 = vmatpush1.bf16.msra.mxu0 0
        %1218 = vmatprep.subr.bf16.mxu0 0
        %1219 = vmatpush1.bf16.msra.mxu0 0
        %1220 = vmatprep.subr.bf16.mxu0 0
        %1221 = vmatpush1.bf16.msra.mxu0 0
        %1222 = vmatprep.subr.bf16.mxu0 0
        %1223 = vmatpush1.bf16.msra.mxu0 0
        %1224 = vmatprep.subr.bf16.mxu0 0
        %1225 = vmatpush1.bf16.msra.mxu0 0
        %1226 = vmatprep.subr.bf16.mxu0 0
        %1227 = vmatpush1.bf16.msra.mxu0 0
        %1228 = vmatprep.subr.bf16.mxu0 0
        %1229 = vmatpush1.bf16.msra.mxu0 0
        %1230 = vmatprep.subr.bf16.mxu0 0
        %1231 = vmatpush1.bf16.msra.mxu0 0
        %1232 = vmatprep.subr.bf16.mxu0 0
        %1233 = vmatpush1.bf16.msra.mxu0 0
        %1234 = vmatprep.mubr.bf16.mxu0 0
        %1235 = vmatmul.mubr.bf16.gmra.mrb[0].mxu0 %v1200
        %v1236 = vpop.f32.mrb[0].mxu0
        %v1237 = vadd.f32 %v1152, %v1236
        %v1238 = vpop.f32.mrb[0].mxu0
        %v1239 = vadd.f32 %v1156, %v1238
        %v1240 = vpop.f32.mrb[0].mxu0
        %v1241 = vpop.f32.mrb[0].mxu0
        %1242 = vdwg.mxu0
        %v1243 = vmax.f32 %v1237, 0.0
        %v1244 = vmax.f32 %v1239, 0.0
        %v1245 = vpack.c.bf16 %v1243, %v1243
        %v1246 = vpack.c.bf16 %v1244, %v1244
        %v1247 = vld [vmem:[%s10] sm:$0xf]
        %v1248 = vld [vmem:[%s10 + $0x4] sm:$0xf]
        %v1249 = vld [vmem:[%s10 + $0x8] sm:$0xf]
        %v1250 = vld [vmem:[%s10 + $0xc] sm:$0xf]
        %v1251 = vld [vmem:[%s10 + $0x10] sm:$0xf]
        %v1252 = vld [vmem:[%s10 + $0x14] sm:$0xf]
        %v1253 = vld [vmem:[%s10 + $0x18] sm:$0xf]
        %v1254 = vld [vmem:[%s10 + $0x1c] sm:$0xf]
        %v1255 = vld [vmem:[%s10 + $0x20] sm:$0xf]
        %v1256 = vld [vmem:[%s10 + $0x24] sm:$0xf]
        %v1257 = vld [vmem:[%s10 + $0x28] sm:$0xf]
        %v1258 = vld [vmem:[%s10 + $0x2c] sm:$0xf]
        %v1259 = vld [vmem:[%s10 + $0x30] sm:$0xf]
        %v1260 = vld [vmem:[%s10 + $0x34] sm:$0xf]
        %v1261 = vld [vmem:[%s10 + $0x38] sm:$0xf]
        %v1262 = vld [vmem:[%s10 + $0x3c] sm:$0xf]
        %v1263 = vld [vmem:[%s10 + $0x40] sm:$0xf]
        %v1264 = vld [vmem:[%s10 + $0x44] sm:$0xf]
        %v1265 = vld [vmem:[%s10 + $0x48] sm:$0xf]
        %v1266 = vld [vmem:[%s10 + $0x4c] sm:$0xf]
        %v1267 = vld [vmem:[%s10 + $0x50] sm:$0xf]
        %v1268 = vld [vmem:[%s10 + $0x54] sm:$0xf]
        %v1269 = vld [vmem:[%s10 + $0x58] sm:$0xf]
        %v1270 = vld [vmem:[%s10 + $0x5c] sm:$0xf]
        %v1271 = vld [vmem:[%s10 + $0x60] sm:$0xf]
        %v1272 = vld [vmem:[%s10 + $0x64] sm:$0xf]
        %v1273 = vld [vmem:[%s10 + $0x68] sm:$0xf]
        %v1274 = vld [vmem:[%s10 + $0x6c] sm:$0xf]
        %v1275 = vld [vmem:[%s10 + $0x70] sm:$0xf]
        %v1276 = vld [vmem:[%s10 + $0x74] sm:$0xf]
        %v1277 = vld [vmem:[%s10 + $0x78] sm:$0xf]
        %v1278 = vld [vmem:[%s10 + $0x7c] sm:$0xf]
        %v1279 = vlaneseq
        %v1280 = vshrl.u32 %v1279, 7
        %v1281 = vsub.s32 5, %v1280
        %v1282 = vrot.slane %v446, %v1281
        %v1315 = vunpack.c.l.b16 %v1247
        %v1316 = vunpack.c.l.b16 %v1248
        %v1317 = vunpack.c.l.b16 %v1249
        %v1318 = vunpack.c.l.b16 %v1250
        %v1319 = vunpack.c.l.b16 %v1251
        %v1320 = vunpack.c.l.b16 %v1252
        %v1321 = vunpack.c.l.b16 %v1253
        %v1322 = vunpack.c.l.b16 %v1254
        %v1323 = vunpack.c.l.b16 %v1255
        %v1324 = vunpack.c.l.b16 %v1256
        %v1325 = vunpack.c.l.b16 %v1257
        %v1326 = vunpack.c.l.b16 %v1258
        %v1327 = vunpack.c.l.b16 %v1259
        %v1328 = vunpack.c.l.b16 %v1260
        %v1329 = vunpack.c.l.b16 %v1261
        %v1330 = vunpack.c.l.b16 %v1262
        %v1331 = vunpack.c.l.b16 %v1263
        %v1332 = vunpack.c.l.b16 %v1264
        %v1333 = vunpack.c.l.b16 %v1265
        %v1334 = vunpack.c.l.b16 %v1266
        %v1335 = vunpack.c.l.b16 %v1267
        %v1336 = vunpack.c.l.b16 %v1268
        %v1337 = vunpack.c.l.b16 %v1269
        %v1338 = vunpack.c.l.b16 %v1270
        %v1339 = vunpack.c.l.b16 %v1271
        %v1340 = vunpack.c.l.b16 %v1272
        %v1341 = vunpack.c.l.b16 %v1273
        %v1342 = vunpack.c.l.b16 %v1274
        %v1343 = vunpack.c.l.b16 %v1275
        %v1344 = vunpack.c.l.b16 %v1276
        %v1345 = vunpack.c.l.b16 %v1277
        %v1346 = vunpack.c.l.b16 %v1278
        %v1347 = vpack.c.b16 %v1316, %v1315
        %v1348 = vpack.c.b16 %v1318, %v1317
        %v1349 = vpack.c.b16 %v1320, %v1319
        %v1350 = vpack.c.b16 %v1322, %v1321
        %v1351 = vpack.c.b16 %v1324, %v1323
        %v1352 = vpack.c.b16 %v1326, %v1325
        %v1353 = vpack.c.b16 %v1328, %v1327
        %v1354 = vpack.c.b16 %v1330, %v1329
        %v1355 = vpack.c.b16 %v1332, %v1331
        %v1356 = vpack.c.b16 %v1334, %v1333
        %v1357 = vpack.c.b16 %v1336, %v1335
        %v1358 = vpack.c.b16 %v1338, %v1337
        %v1359 = vpack.c.b16 %v1340, %v1339
        %v1360 = vpack.c.b16 %v1342, %v1341
        %v1361 = vpack.c.b16 %v1344, %v1343
        %v1362 = vpack.c.b16 %v1346, %v1345
        %1379 = vmatprep.subr.bf16.mxu0 0
        %1380 = vmatpush1.bf16.msra.mxu0 %v1347
        %1381 = vmatprep.subr.bf16.mxu0 0
        %1382 = vmatpush1.bf16.msra.mxu0 %v1348
        %1383 = vmatprep.subr.bf16.mxu0 0
        %1384 = vmatpush1.bf16.msra.mxu0 %v1349
        %1385 = vmatprep.subr.bf16.mxu0 0
        %1386 = vmatpush1.bf16.msra.mxu0 %v1350
        %1387 = vmatprep.subr.bf16.mxu0 0
        %1388 = vmatpush1.bf16.msra.mxu0 %v1351
        %1389 = vmatprep.subr.bf16.mxu0 0
        %1390 = vmatpush1.bf16.msra.mxu0 %v1352
        %1391 = vmatprep.subr.bf16.mxu0 0
        %1392 = vmatpush1.bf16.msra.mxu0 %v1353
        %1393 = vmatprep.subr.bf16.mxu0 0
        %1394 = vmatpush1.bf16.msra.mxu0 %v1354
        %1395 = vmatprep.subr.bf16.mxu0 0
        %1396 = vmatpush1.bf16.msra.mxu0 %v1355
        %1397 = vmatprep.subr.bf16.mxu0 0
        %1398 = vmatpush1.bf16.msra.mxu0 %v1356
        %1399 = vmatprep.subr.bf16.mxu0 0
        %1400 = vmatpush1.bf16.msra.mxu0 %v1357
        %1401 = vmatprep.subr.bf16.mxu0 0
        %1402 = vmatpush1.bf16.msra.mxu0 %v1358
        %1403 = vmatprep.subr.bf16.mxu0 0
        %1404 = vmatpush1.bf16.msra.mxu0 %v1359
        %1405 = vmatprep.subr.bf16.mxu0 0
        %1406 = vmatpush1.bf16.msra.mxu0 %v1360
        %1407 = vmatprep.subr.bf16.mxu0 0
        %1408 = vmatpush1.bf16.msra.mxu0 %v1361
        %1409 = vmatprep.subr.bf16.mxu0 0
        %1410 = vmatpush1.bf16.msra.mxu0 %v1362
        %1411 = vmatprep.mubr.bf16.mxu0 %v1246
        %1412 = vmatmul.mubr.bf16.gmra.mrb[0].mxu0 %v1245
        %v1413 = vpop.f32.mrb[0].mxu0
        %v1414 = vadd.f32 %v1282, %v1413
        %v1415 = vpop.f32.mrb[0].mxu0
        %v1416 = vpop.f32.mrb[0].mxu0
        %v1417 = vpop.f32.mrb[0].mxu0
        %1418 = vdwg.mxu0
        %v1419 = vadd.f32 %v1137, %v1414
        %v1420 = vsel %vm508, %v1419, 0.0
        %1421 = vadd.xlane.f32.xlu0 %v1420
        %v1422 = vpop.xlane.xlu0 %1421
        %v1423 = vmul.f32 %v1422, %v1117
        %v1424 = vsub.f32 %v1419, %v1423
        %v1425 = vmul.f32 %v1424, %v1424
        %v1426 = vsel %vm508, %v1425, 0.0
        %1427 = vadd.xlane.f32.xlu0 %v1426
        %v1428 = vpop.xlane.xlu0 %1427
        %v1429 = vmul.f32 %v1428, %v1117
        %v1430 = vadd.f32 %v1429, 1e-05
        %v1431 = vrsqrt.pop %v1430
        %v1432 = vmul.f32 %v1424, %v1431
        %v1433 = vlaneseq
        %v1434 = vshrl.u32 %v1433, 7
        %v1435 = vsub.s32 3, %v1434
        %v1436 = vrot.slane %v446, %v1435
        %v1437 = vmul.f32 %v1432, %v1436
        %v1438 = vlaneseq
        %v1439 = vshrl.u32 %v1438, 7
        %v1440 = vsub.s32 4, %v1439
        %v1441 = vrot.slane %v446, %v1440
        %v1442 = vadd.f32 %v1437, %v1441
        %s1443 = scalar_lea.vmem %s7, 8
        %v1444 = vld [vmem:[%s1443] sm:$0x3f]
        %v1445 = vpack.c.bf16 %v1442, %v1442
        %s1446 = scalar_lea.vmem %s4, 64
        %v1447 = vld [vmem:[%s1446] sm:$0xff]
        %v1448 = vld [vmem:[%s1446 + $0x8] sm:$0xff]
        %v1449 = vld [vmem:[%s1446 + $0x10] sm:$0xff]
        %v1450 = vld [vmem:[%s1446 + $0x18] sm:$0xff]
        %v1451 = vld [vmem:[%s1446 + $0x20] sm:$0xff]
        %v1452 = vld [vmem:[%s1446 + $0x28] sm:$0xff]
        %v1453 = vld [vmem:[%s1446 + $0x30] sm:$0xff]
        %v1454 = vld [vmem:[%s1446 + $0x38] sm:$0xff]
        %s1455 = scalar_lea.vmem %s5, 2
        %v1456 = vld [vmem:[%s1455] sm:$0x3]
        %v1458 = vlaneseq
        %v1459 = vshrl.u32 %v1458, 7
        %v1460 = vsub.s32 0, %v1459
        %v1461 = vrot.slane %v1456, %v1460
        %v1462 = vlaneseq
        %v1463 = vshrl.u32 %v1462, 7
        %v1464 = vsub.s32 1, %v1463
        %v1465 = vrot.slane %v1456, %v1464
        %v1476 = vunpack.c.l.b16 %v1447
        %v1477 = vunpack.c.h.b16 %v1447
        %v1478 = vunpack.c.l.b16 %v1448
        %v1479 = vunpack.c.h.b16 %v1448
        %v1480 = vunpack.c.l.b16 %v1449
        %v1481 = vunpack.c.h.b16 %v1449
        %v1482 = vunpack.c.l.b16 %v1450
        %v1483 = vunpack.c.h.b16 %v1450
        %v1484 = vunpack.c.l.b16 %v1451
        %v1485 = vunpack.c.h.b16 %v1451
        %v1486 = vunpack.c.l.b16 %v1452
        %v1487 = vunpack.c.h.b16 %v1452
        %v1488 = vunpack.c.l.b16 %v1453
        %v1489 = vunpack.c.h.b16 %v1453
        %v1490 = vunpack.c.l.b16 %v1454
        %v1491 = vunpack.c.h.b16 %v1454
        %v1492 = vpack.c.b16 %v1478, %v1476
        %v1493 = vpack.c.b16 %v1479, %v1477
        %v1494 = vpack.c.b16 %v1482, %v1480
        %v1495 = vpack.c.b16 %v1483, %v1481
        %v1496 = vpack.c.b16 %v1486, %v1484
        %v1497 = vpack.c.b16 %v1487, %v1485
        %v1498 = vpack.c.b16 %v1490, %v1488
        %v1499 = vpack.c.b16 %v1491, %v1489
        %v1509 = vsel %vm508, %v1445, 0
        %1511 = vmatprep.subr.bf16.mxu0 %v1493
        %1512 = vmatpush1.bf16.msra.mxu0 %v1492
        %1513 = vmatprep.subr.bf16.mxu0 %v1495
        %1514 = vmatpush1.bf16.msra.mxu0 %v1494
        %1515 = vmatprep.subr.bf16.mxu0 %v1497
        %1516 = vmatpush1.bf16.msra.mxu0 %v1496
        %1517 = vmatprep.subr.bf16.mxu0 %v1499
        %1518 = vmatpush1.bf16.msra.mxu0 %v1498
        %1519 = vmatprep.subr.bf16.mxu0 0
        %1520 = vmatpush1.bf16.msra.mxu0 0
        %1521 = vmatprep.subr.bf16.mxu0 0
        %1522 = vmatpush1.bf16.msra.mxu0 0
        %1523 = vmatprep.subr.bf16.mxu0 0
        %1524 = vmatpush1.bf16.msra.mxu0 0
        %1525 = vmatprep.subr.bf16.mxu0 0
        %1526 = vmatpush1.bf16.msra.mxu0 0
        %1527 = vmatprep.subr.bf16.mxu0 0
        %1528 = vmatpush1.bf16.msra.mxu0 0
        %1529 = vmatprep.subr.bf16.mxu0 0
        %1530 = vmatpush1.bf16.msra.mxu0 0
        %1531 = vmatprep.subr.bf16.mxu0 0
        %1532 = vmatpush1.bf16.msra.mxu0 0
        %1533 = vmatprep.subr.bf16.mxu0 0
        %1534 = vmatpush1.bf16.msra.mxu0 0
        %1535 = vmatprep.subr.bf16.mxu0 0
        %1536 = vmatpush1.bf16.msra.mxu0 0
        %1537 = vmatprep.subr.bf16.mxu0 0
        %1538 = vmatpush1.bf16.msra.mxu0 0
        %1539 = vmatprep.subr.bf16.mxu0 0
        %1540 = vmatpush1.bf16.msra.mxu0 0
        %1541 = vmatprep.subr.bf16.mxu0 0
        %1542 = vmatpush1.bf16.msra.mxu0 0
        %1543 = vmatprep.mubr.bf16.mxu0 0
        %1544 = vmatmul.mubr.bf16.gmra.mrb[0].mxu0 %v1509
        %v1545 = vpop.f32.mrb[0].mxu0
        %v1546 = vadd.f32 %v1461, %v1545
        %v1547 = vpop.f32.mrb[0].mxu0
        %v1548 = vadd.f32 %v1465, %v1547
        %v1549 = vpop.f32.mrb[0].mxu0
        %v1550 = vpop.f32.mrb[0].mxu0
        %1551 = vdwg.mxu0
        %1553 = vrot.lane.b32.xlu0 %v1546, 112
        %v1554 = vpop.permute.xlu0 %1553
        %1556 = vrot.lane.b32.xlu0 %v1546, 96
        %v1557 = vpop.permute.xlu0 %1556
        %1559 = vrot.lane.b32.xlu0 %v1546, 80
        %v1560 = vpop.permute.xlu0 %1559
        %v1562 = vpack.c.bf16 %v1546, %v1546
        %v1563 = vpack.c.bf16 %v1554, %v1554
        %v1564 = vpack.c.bf16 %v1557, %v1557
        %v1565 = vpack.c.bf16 %v1560, %v1560
        %1567 = vrot.lane.b32.xlu0 %v1548, 112
        %v1568 = vpop.permute.xlu0 %1567
        %1570 = vrot.lane.b32.xlu0 %v1548, 96
        %v1571 = vpop.permute.xlu0 %1570
        %1573 = vrot.lane.b32.xlu0 %v1548, 80
        %v1574 = vpop.permute.xlu0 %1573
        %v1576 = vpack.c.bf16 %v1548, %v1548
        %v1577 = vpack.c.bf16 %v1568, %v1568
        %v1578 = vpack.c.bf16 %v1571, %v1571
        %v1579 = vpack.c.bf16 %v1574, %v1574
        %1581 = vrot.lane.b32.xlu0 %v1562, 64
        %v1582 = vpop.permute.xlu0 %1581
        %v1584 = vsel %vm584, %v1562, 0
        %v1587 = vsel %vm584, %v1582, 0
        %1589 = vmatprep.subr.bf16.mxu0 0
        %1590 = vmatpush1.bf16.xpose.msra.mxu0 %v1587
        %1591 = vmatprep.subr.bf16.mxu0 0
        %1592 = vmatpush1.bf16.xpose.msra.mxu0 0
        %1593 = vmatprep.subr.bf16.mxu0 0
        %1594 = vmatpush1.bf16.xpose.msra.mxu0 0
        %1595 = vmatprep.subr.bf16.mxu0 0
        %1596 = vmatpush1.bf16.xpose.msra.mxu0 0
        %1597 = vmatprep.subr.bf16.mxu0 0
        %1598 = vmatpush1.bf16.xpose.msra.mxu0 0
        %1599 = vmatprep.subr.bf16.mxu0 0
        %1600 = vmatpush1.bf16.xpose.msra.mxu0 0
        %1601 = vmatprep.subr.bf16.mxu0 0
        %1602 = vmatpush1.bf16.xpose.msra.mxu0 0
        %1603 = vmatprep.subr.bf16.mxu0 0
        %1604 = vmatpush1.bf16.xpose.msra.mxu0 0
        %1605 = vmatprep.subr.bf16.mxu0 0
        %1606 = vmatpush1.bf16.xpose.msra.mxu0 0
        %1607 = vmatprep.subr.bf16.mxu0 0
        %1608 = vmatpush1.bf16.xpose.msra.mxu0 0
        %1609 = vmatprep.subr.bf16.mxu0 0
        %1610 = vmatpush1.bf16.xpose.msra.mxu0 0
        %1611 = vmatprep.subr.bf16.mxu0 0
        %1612 = vmatpush1.bf16.xpose.msra.mxu0 0
        %1613 = vmatprep.subr.bf16.mxu0 0
        %1614 = vmatpush1.bf16.xpose.msra.mxu0 0
        %1615 = vmatprep.subr.bf16.mxu0 0
        %1616 = vmatpush1.bf16.xpose.msra.mxu0 0
        %1617 = vmatprep.subr.bf16.mxu0 0
        %1618 = vmatpush1.bf16.xpose.msra.mxu0 0
        %1619 = vmatprep.subr.bf16.mxu0 0
        %1620 = vmatpush1.bf16.xpose.msra.mxu0 0
        %1621 = vmatprep.mubr.bf16.mxu0 0
        %1622 = vmatmul.mubr.bf16.gmra.mrb[0].mxu0 %v1584
        %v1623 = vpop.f32.mrb[0].mxu0
        %v1624 = vadd.f32 0.0, %v1623
        %v1625 = vpop.f32.mrb[0].mxu0
        %v1626 = vpop.f32.mrb[0].mxu0
        %v1627 = vpop.f32.mrb[0].mxu0
        %1628 = vdwg.mxu0
        %1630 = vrot.lane.b32.xlu0 %v1563, 64
        %v1631 = vpop.permute.xlu0 %1630
        %v1633 = vsel %vm584, %v1563, 0
        %v1636 = vsel %vm584, %v1631, 0
        %1638 = vmatprep.subr.bf16.mxu0 0
        %1639 = vmatpush1.bf16.xpose.msra.mxu0 %v1636
        %1640 = vmatprep.subr.bf16.mxu0 0
        %1641 = vmatpush1.bf16.xpose.msra.mxu0 0
        %1642 = vmatprep.subr.bf16.mxu0 0
        %1643 = vmatpush1.bf16.xpose.msra.mxu0 0
        %1644 = vmatprep.subr.bf16.mxu0 0
        %1645 = vmatpush1.bf16.xpose.msra.mxu0 0
        %1646 = vmatprep.subr.bf16.mxu0 0
        %1647 = vmatpush1.bf16.xpose.msra.mxu0 0
        %1648 = vmatprep.subr.bf16.mxu0 0
        %1649 = vmatpush1.bf16.xpose.msra.mxu0 0
        %1650 = vmatprep.subr.bf16.mxu0 0
        %1651 = vmatpush1.bf16.xpose.msra.mxu0 0
        %1652 = vmatprep.subr.bf16.mxu0 0
        %1653 = vmatpush1.bf16.xpose.msra.mxu0 0
        %1654 = vmatprep.subr.bf16.mxu0 0
        %1655 = vmatpush1.bf16.xpose.msra.mxu0 0
        %1656 = vmatprep.subr.bf16.mxu0 0
        %1657 = vmatpush1.bf16.xpose.msra.mxu0 0
        %1658 = vmatprep.subr.bf16.mxu0 0
        %1659 = vmatpush1.bf16.xpose.msra.mxu0 0
        %1660 = vmatprep.subr.bf16.mxu0 0
        %1661 = vmatpush1.bf16.xpose.msra.mxu0 0
        %1662 = vmatprep.subr.bf16.mxu0 0
        %1663 = vmatpush1.bf16.xpose.msra.mxu0 0
        %1664 = vmatprep.subr.bf16.mxu0 0
        %1665 = vmatpush1.bf16.xpose.msra.mxu0 0
        %1666 = vmatprep.subr.bf16.mxu0 0
        %1667 = vmatpush1.bf16.xpose.msra.mxu0 0
        %1668 = vmatprep.subr.bf16.mxu0 0
        %1669 = vmatpush1.bf16.xpose.msra.mxu0 0
        %1670 = vmatprep.mubr.bf16.mxu0 0
        %1671 = vmatmul.mubr.bf16.gmra.mrb[0].mxu0 %v1633
        %v1672 = vpop.f32.mrb[0].mxu0
        %v1673 = vadd.f32 0.0, %v1672
        %v1674 = vpop.f32.mrb[0].mxu0
        %v1675 = vpop.f32.mrb[0].mxu0
        %v1676 = vpop.f32.mrb[0].mxu0
        %1677 = vdwg.mxu0
        %1679 = vrot.lane.b32.xlu0 %v1564, 64
        %v1680 = vpop.permute.xlu0 %1679
        %v1682 = vsel %vm584, %v1564, 0
        %v1685 = vsel %vm584, %v1680, 0
        %1687 = vmatprep.subr.bf16.mxu0 0
        %1688 = vmatpush1.bf16.xpose.msra.mxu0 %v1685
        %1689 = vmatprep.subr.bf16.mxu0 0
        %1690 = vmatpush1.bf16.xpose.msra.mxu0 0
        %1691 = vmatprep.subr.bf16.mxu0 0
        %1692 = vmatpush1.bf16.xpose.msra.mxu0 0
        %1693 = vmatprep.subr.bf16.mxu0 0
        %1694 = vmatpush1.bf16.xpose.msra.mxu0 0
        %1695 = vmatprep.subr.bf16.mxu0 0
        %1696 = vmatpush1.bf16.xpose.msra.mxu0 0
        %1697 = vmatprep.subr.bf16.mxu0 0
        %1698 = vmatpush1.bf16.xpose.msra.mxu0 0
        %1699 = vmatprep.subr.bf16.mxu0 0
        %1700 = vmatpush1.bf16.xpose.msra.mxu0 0
        %1701 = vmatprep.subr.bf16.mxu0 0
        %1702 = vmatpush1.bf16.xpose.msra.mxu0 0
        %1703 = vmatprep.subr.bf16.mxu0 0
        %1704 = vmatpush1.bf16.xpose.msra.mxu0 0
        %1705 = vmatprep.subr.bf16.mxu0 0
        %1706 = vmatpush1.bf16.xpose.msra.mxu0 0
        %1707 = vmatprep.subr.bf16.mxu0 0
        %1708 = vmatpush1.bf16.xpose.msra.mxu0 0
        %1709 = vmatprep.subr.bf16.mxu0 0
        %1710 = vmatpush1.bf16.xpose.msra.mxu0 0
        %1711 = vmatprep.subr.bf16.mxu0 0
        %1712 = vmatpush1.bf16.xpose.msra.mxu0 0
        %1713 = vmatprep.subr.bf16.mxu0 0
        %1714 = vmatpush1.bf16.xpose.msra.mxu0 0
        %1715 = vmatprep.subr.bf16.mxu0 0
        %1716 = vmatpush1.bf16.xpose.msra.mxu0 0
        %1717 = vmatprep.subr.bf16.mxu0 0
        %1718 = vmatpush1.bf16.xpose.msra.mxu0 0
        %1719 = vmatprep.mubr.bf16.mxu0 0
        %1720 = vmatmul.mubr.bf16.gmra.mrb[0].mxu0 %v1682
        %v1721 = vpop.f32.mrb[0].mxu0
        %v1722 = vadd.f32 0.0, %v1721
        %v1723 = vpop.f32.mrb[0].mxu0
        %v1724 = vpop.f32.mrb[0].mxu0
        %v1725 = vpop.f32.mrb[0].mxu0
        %1726 = vdwg.mxu0
        %1728 = vrot.lane.b32.xlu0 %v1565, 64
        %v1729 = vpop.permute.xlu0 %1728
        %v1731 = vsel %vm584, %v1565, 0
        %v1734 = vsel %vm584, %v1729, 0
        %1736 = vmatprep.subr.bf16.mxu0 0
        %1737 = vmatpush1.bf16.xpose.msra.mxu0 %v1734
        %1738 = vmatprep.subr.bf16.mxu0 0
        %1739 = vmatpush1.bf16.xpose.msra.mxu0 0
        %1740 = vmatprep.subr.bf16.mxu0 0
        %1741 = vmatpush1.bf16.xpose.msra.mxu0 0
        %1742 = vmatprep.subr.bf16.mxu0 0
        %1743 = vmatpush1.bf16.xpose.msra.mxu0 0
        %1744 = vmatprep.subr.bf16.mxu0 0
        %1745 = vmatpush1.bf16.xpose.msra.mxu0 0
        %1746 = vmatprep.subr.bf16.mxu0 0
        %1747 = vmatpush1.bf16.xpose.msra.mxu0 0
        %1748 = vmatprep.subr.bf16.mxu0 0
        %1749 = vmatpush1.bf16.xpose.msra.mxu0 0
        %1750 = vmatprep.subr.bf16.mxu0 0
        %1751 = vmatpush1.bf16.xpose.msra.mxu0 0
        %1752 = vmatprep.subr.bf16.mxu0 0
        %1753 = vmatpush1.bf16.xpose.msra.mxu0 0
        %1754 = vmatprep.subr.bf16.mxu0 0
        %1755 = vmatpush1.bf16.xpose.msra.mxu0 0
        %1756 = vmatprep.subr.bf16.mxu0 0
        %1757 = vmatpush1.bf16.xpose.msra.mxu0 0
        %1758 = vmatprep.subr.bf16.mxu0 0
        %1759 = vmatpush1.bf16.xpose.msra.mxu0 0
        %1760 = vmatprep.subr.bf16.mxu0 0
        %1761 = vmatpush1.bf16.xpose.msra.mxu0 0
        %1762 = vmatprep.subr.bf16.mxu0 0
        %1763 = vmatpush1.bf16.xpose.msra.mxu0 0
        %1764 = vmatprep.subr.bf16.mxu0 0
        %1765 = vmatpush1.bf16.xpose.msra.mxu0 0
        %1766 = vmatprep.subr.bf16.mxu0 0
        %1767 = vmatpush1.bf16.xpose.msra.mxu0 0
        %1768 = vmatprep.mubr.bf16.mxu0 0
        %1769 = vmatmul.mubr.bf16.gmra.mrb[0].mxu0 %v1731
        %v1770 = vpop.f32.mrb[0].mxu0
        %v1771 = vadd.f32 0.0, %v1770
        %v1772 = vpop.f32.mrb[0].mxu0
        %v1773 = vpop.f32.mrb[0].mxu0
        %v1774 = vpop.f32.mrb[0].mxu0
        %1775 = vdwg.mxu0
        %v1776 = vmul.f32 %v1624, 0.25
        %v1777 = vmul.f32 %v1673, 0.25
        %v1778 = vmul.f32 %v1722, 0.25
        %v1779 = vmul.f32 %v1771, 0.25
        %v1780 = vsel %vm782, %v1776, -inf
        %1781 = vmax.xlane.f32.xlu0 %v1780
        %v1782 = vpop.xlane.xlu0 %1781
        %v1783 = vsel %vm782, %v1777, -inf
        %1784 = vmax.xlane.f32.xlu0 %v1783
        %v1785 = vpop.xlane.xlu0 %1784
        %v1786 = vsel %vm782, %v1778, -inf
        %1787 = vmax.xlane.f32.xlu0 %v1786
        %v1788 = vpop.xlane.xlu0 %1787
        %v1789 = vsel %vm782, %v1779, -inf
        %1790 = vmax.xlane.f32.xlu0 %v1789
        %v1791 = vpop.xlane.xlu0 %1790
        %v1792 = vsub.f32 %v1776, %v1782
        %v1793 = vsub.f32 %v1777, %v1785
        %v1794 = vsub.f32 %v1778, %v1788
        %v1795 = vsub.f32 %v1779, %v1791
        %v1796 = vmul.f32 %v1792, 1.442695
        %v1797 = vpow.pop %v1796
        %v1798 = vmul.f32 %v1793, 1.442695
        %v1799 = vpow.pop %v1798
        %v1800 = vmul.f32 %v1794, 1.442695
        %v1801 = vpow.pop %v1800
        %v1802 = vmul.f32 %v1795, 1.442695
        %v1803 = vpow.pop %v1802
        %v1804 = vsel %vm782, %v1797, 0.0
        %1805 = vadd.xlane.f32.xlu0 %v1804
        %v1806 = vpop.xlane.xlu0 %1805
        %v1807 = vsel %vm782, %v1799, 0.0
        %1808 = vadd.xlane.f32.xlu0 %v1807
        %v1809 = vpop.xlane.xlu0 %1808
        %v1810 = vsel %vm782, %v1801, 0.0
        %1811 = vadd.xlane.f32.xlu0 %v1810
        %v1812 = vpop.xlane.xlu0 %1811
        %v1813 = vsel %vm782, %v1803, 0.0
        %1814 = vadd.xlane.f32.xlu0 %v1813
        %v1815 = vpop.xlane.xlu0 %1814
        %v1816 = vrcp.pop %v1806
        %v1817 = vmul.f32 %v1797, %v1816
        %v1818 = vrcp.pop %v1809
        %v1819 = vmul.f32 %v1799, %v1818
        %v1820 = vrcp.pop %v1812
        %v1821 = vmul.f32 %v1801, %v1820
        %v1822 = vrcp.pop %v1815
        %v1823 = vmul.f32 %v1803, %v1822
        %v1824 = vpack.c.bf16 %v1817, %v1817
        %v1825 = vpack.c.bf16 %v1819, %v1819
        %v1826 = vpack.c.bf16 %v1821, %v1821
        %v1827 = vpack.c.bf16 %v1823, %v1823
        %v1829 = vsel %vm782, %v1824, 0
        %v1832 = vsel %vm834, %v1576, 0
        %1834 = vmatprep.subr.bf16.mxu0 0
        %1835 = vmatpush1.bf16.msra.mxu0 %v1832
        %1836 = vmatprep.subr.bf16.mxu0 0
        %1837 = vmatpush1.bf16.msra.mxu0 0
        %1838 = vmatprep.subr.bf16.mxu0 0
        %1839 = vmatpush1.bf16.msra.mxu0 0
        %1840 = vmatprep.subr.bf16.mxu0 0
        %1841 = vmatpush1.bf16.msra.mxu0 0
        %1842 = vmatprep.subr.bf16.mxu0 0
        %1843 = vmatpush1.bf16.msra.mxu0 0
        %1844 = vmatprep.subr.bf16.mxu0 0
        %1845 = vmatpush1.bf16.msra.mxu0 0
        %1846 = vmatprep.subr.bf16.mxu0 0
        %1847 = vmatpush1.bf16.msra.mxu0 0
        %1848 = vmatprep.subr.bf16.mxu0 0
        %1849 = vmatpush1.bf16.msra.mxu0 0
        %1850 = vmatprep.subr.bf16.mxu0 0
        %1851 = vmatpush1.bf16.msra.mxu0 0
        %1852 = vmatprep.subr.bf16.mxu0 0
        %1853 = vmatpush1.bf16.msra.mxu0 0
        %1854 = vmatprep.subr.bf16.mxu0 0
        %1855 = vmatpush1.bf16.msra.mxu0 0
        %1856 = vmatprep.subr.bf16.mxu0 0
        %1857 = vmatpush1.bf16.msra.mxu0 0
        %1858 = vmatprep.subr.bf16.mxu0 0
        %1859 = vmatpush1.bf16.msra.mxu0 0
        %1860 = vmatprep.subr.bf16.mxu0 0
        %1861 = vmatpush1.bf16.msra.mxu0 0
        %1862 = vmatprep.subr.bf16.mxu0 0
        %1863 = vmatpush1.bf16.msra.mxu0 0
        %1864 = vmatprep.subr.bf16.mxu0 0
        %1865 = vmatpush1.bf16.msra.mxu0 0
        %1866 = vmatprep.mubr.bf16.mxu0 0
        %1867 = vmatmul.mubr.bf16.gmra.mrb[0].mxu0 %v1829
        %v1868 = vpop.f32.mrb[0].mxu0
        %v1869 = vadd.f32 0.0, %v1868
        %v1870 = vpop.f32.mrb[0].mxu0
        %v1871 = vpop.f32.mrb[0].mxu0
        %v1872 = vpop.f32.mrb[0].mxu0
        %1873 = vdwg.mxu0
        %v1875 = vsel %vm782, %v1825, 0
        %v1878 = vsel %vm834, %v1577, 0
        %1880 = vmatprep.subr.bf16.mxu0 0
        %1881 = vmatpush1.bf16.msra.mxu0 %v1878
        %1882 = vmatprep.subr.bf16.mxu0 0
        %1883 = vmatpush1.bf16.msra.mxu0 0
        %1884 = vmatprep.subr.bf16.mxu0 0
        %1885 = vmatpush1.bf16.msra.mxu0 0
        %1886 = vmatprep.subr.bf16.mxu0 0
        %1887 = vmatpush1.bf16.msra.mxu0 0
        %1888 = vmatprep.subr.bf16.mxu0 0
        %1889 = vmatpush1.bf16.msra.mxu0 0
        %1890 = vmatprep.subr.bf16.mxu0 0
        %1891 = vmatpush1.bf16.msra.mxu0 0
        %1892 = vmatprep.subr.bf16.mxu0 0
        %1893 = vmatpush1.bf16.msra.mxu0 0
        %1894 = vmatprep.subr.bf16.mxu0 0
        %1895 = vmatpush1.bf16.msra.mxu0 0
        %1896 = vmatprep.subr.bf16.mxu0 0
        %1897 = vmatpush1.bf16.msra.mxu0 0
        %1898 = vmatprep.subr.bf16.mxu0 0
        %1899 = vmatpush1.bf16.msra.mxu0 0
        %1900 = vmatprep.subr.bf16.mxu0 0
        %1901 = vmatpush1.bf16.msra.mxu0 0
        %1902 = vmatprep.subr.bf16.mxu0 0
        %1903 = vmatpush1.bf16.msra.mxu0 0
        %1904 = vmatprep.subr.bf16.mxu0 0
        %1905 = vmatpush1.bf16.msra.mxu0 0
        %1906 = vmatprep.subr.bf16.mxu0 0
        %1907 = vmatpush1.bf16.msra.mxu0 0
        %1908 = vmatprep.subr.bf16.mxu0 0
        %1909 = vmatpush1.bf16.msra.mxu0 0
        %1910 = vmatprep.subr.bf16.mxu0 0
        %1911 = vmatpush1.bf16.msra.mxu0 0
        %1912 = vmatprep.mubr.bf16.mxu0 0
        %1913 = vmatmul.mubr.bf16.gmra.mrb[0].mxu0 %v1875
        %v1914 = vpop.f32.mrb[0].mxu0
        %v1915 = vadd.f32 0.0, %v1914
        %v1916 = vpop.f32.mrb[0].mxu0
        %v1917 = vpop.f32.mrb[0].mxu0
        %v1918 = vpop.f32.mrb[0].mxu0
        %1919 = vdwg.mxu0
        %v1921 = vsel %vm782, %v1826, 0
        %v1924 = vsel %vm834, %v1578, 0
        %1926 = vmatprep.subr.bf16.mxu0 0
        %1927 = vmatpush1.bf16.msra.mxu0 %v1924
        %1928 = vmatprep.subr.bf16.mxu0 0
        %1929 = vmatpush1.bf16.msra.mxu0 0
        %1930 = vmatprep.subr.bf16.mxu0 0
        %1931 = vmatpush1.bf16.msra.mxu0 0
        %1932 = vmatprep.subr.bf16.mxu0 0
        %1933 = vmatpush1.bf16.msra.mxu0 0
        %1934 = vmatprep.subr.bf16.mxu0 0
        %1935 = vmatpush1.bf16.msra.mxu0 0
        %1936 = vmatprep.subr.bf16.mxu0 0
        %1937 = vmatpush1.bf16.msra.mxu0 0
        %1938 = vmatprep.subr.bf16.mxu0 0
        %1939 = vmatpush1.bf16.msra.mxu0 0
        %1940 = vmatprep.subr.bf16.mxu0 0
        %1941 = vmatpush1.bf16.msra.mxu0 0
        %1942 = vmatprep.subr.bf16.mxu0 0
        %1943 = vmatpush1.bf16.msra.mxu0 0
        %1944 = vmatprep.subr.bf16.mxu0 0
        %1945 = vmatpush1.bf16.msra.mxu0 0
        %1946 = vmatprep.subr.bf16.mxu0 0
        %1947 = vmatpush1.bf16.msra.mxu0 0
        %1948 = vmatprep.subr.bf16.mxu0 0
        %1949 = vmatpush1.bf16.msra.mxu0 0
        %1950 = vmatprep.subr.bf16.mxu0 0
        %1951 = vmatpush1.bf16.msra.mxu0 0
        %1952 = vmatprep.subr.bf16.mxu0 0
        %1953 = vmatpush1.bf16.msra.mxu0 0
        %1954 = vmatprep.subr.bf16.mxu0 0
        %1955 = vmatpush1.bf16.msra.mxu0 0
        %1956 = vmatprep.subr.bf16.mxu0 0
        %1957 = vmatpush1.bf16.msra.mxu0 0
        %1958 = vmatprep.mubr.bf16.mxu0 0
        %1959 = vmatmul.mubr.bf16.gmra.mrb[0].mxu0 %v1921
        %v1960 = vpop.f32.mrb[0].mxu0
        %v1961 = vadd.f32 0.0, %v1960
        %v1962 = vpop.f32.mrb[0].mxu0
        %v1963 = vpop.f32.mrb[0].mxu0
        %v1964 = vpop.f32.mrb[0].mxu0
        %1965 = vdwg.mxu0
        %v1967 = vsel %vm782, %v1827, 0
        %v1970 = vsel %vm834, %v1579, 0
        %1972 = vmatprep.subr.bf16.mxu0 0
        %1973 = vmatpush1.bf16.msra.mxu0 %v1970
        %1974 = vmatprep.subr.bf16.mxu0 0
        %1975 = vmatpush1.bf16.msra.mxu0 0
        %1976 = vmatprep.subr.bf16.mxu0 0
        %1977 = vmatpush1.bf16.msra.mxu0 0
        %1978 = vmatprep.subr.bf16.mxu0 0
        %1979 = vmatpush1.bf16.msra.mxu0 0
        %1980 = vmatprep.subr.bf16.mxu0 0
        %1981 = vmatpush1.bf16.msra.mxu0 0
        %1982 = vmatprep.subr.bf16.mxu0 0
        %1983 = vmatpush1.bf16.msra.mxu0 0
        %1984 = vmatprep.subr.bf16.mxu0 0
        %1985 = vmatpush1.bf16.msra.mxu0 0
        %1986 = vmatprep.subr.bf16.mxu0 0
        %1987 = vmatpush1.bf16.msra.mxu0 0
        %1988 = vmatprep.subr.bf16.mxu0 0
        %1989 = vmatpush1.bf16.msra.mxu0 0
        %1990 = vmatprep.subr.bf16.mxu0 0
        %1991 = vmatpush1.bf16.msra.mxu0 0
        %1992 = vmatprep.subr.bf16.mxu0 0
        %1993 = vmatpush1.bf16.msra.mxu0 0
        %1994 = vmatprep.subr.bf16.mxu0 0
        %1995 = vmatpush1.bf16.msra.mxu0 0
        %1996 = vmatprep.subr.bf16.mxu0 0
        %1997 = vmatpush1.bf16.msra.mxu0 0
        %1998 = vmatprep.subr.bf16.mxu0 0
        %1999 = vmatpush1.bf16.msra.mxu0 0
        %2000 = vmatprep.subr.bf16.mxu0 0
        %2001 = vmatpush1.bf16.msra.mxu0 0
        %2002 = vmatprep.subr.bf16.mxu0 0
        %2003 = vmatpush1.bf16.msra.mxu0 0
        %2004 = vmatprep.mubr.bf16.mxu0 0
        %2005 = vmatmul.mubr.bf16.gmra.mrb[0].mxu0 %v1967
        %v2006 = vpop.f32.mrb[0].mxu0
        %v2007 = vadd.f32 0.0, %v2006
        %v2008 = vpop.f32.mrb[0].mxu0
        %v2009 = vpop.f32.mrb[0].mxu0
        %v2010 = vpop.f32.mrb[0].mxu0
        %2011 = vdwg.mxu0
        %2013 = vrot.lane.b32.xlu0 %v1915, 16
        %v2014 = vpop.permute.xlu0 %2013
        %2017 = vrot.lane.b32.xlu0 %v1961, 32
        %v2018 = vpop.permute.xlu0 %2017
        %2021 = vrot.lane.b32.xlu0 %v2007, 48
        %v2022 = vpop.permute.xlu0 %2021
        %v2024 = vsel %vm584, %v1869, %v2014
        %v2025 = vsel %vm1029, %v2024, %v2018
        %v2026 = vsel %vm1031, %v2025, %v2022
        %v2027 = vpack.c.bf16 %v2026, %v2026
        %s2028 = scalar_lea.vmem %s6, 32
        %v2029 = vld [vmem:[%s2028] sm:$0xf]
        %v2030 = vld [vmem:[%s2028 + $0x4] sm:$0xf]
        %v2031 = vld [vmem:[%s2028 + $0x8] sm:$0xf]
        %v2032 = vld [vmem:[%s2028 + $0xc] sm:$0xf]
        %v2033 = vld [vmem:[%s2028 + $0x10] sm:$0xf]
        %v2034 = vld [vmem:[%s2028 + $0x14] sm:$0xf]
        %v2035 = vld [vmem:[%s2028 + $0x18] sm:$0xf]
        %v2036 = vld [vmem:[%s2028 + $0x1c] sm:$0xf]
        %v2037 = vlaneseq
        %v2038 = vshrl.u32 %v2037, 7
        %v2039 = vsub.s32 0, %v2038
        %v2040 = vrot.slane %v1444, %v2039
        %v2049 = vunpack.c.l.b16 %v2029
        %v2050 = vunpack.c.l.b16 %v2030
        %v2051 = vunpack.c.l.b16 %v2031
        %v2052 = vunpack.c.l.b16 %v2032
        %v2053 = vunpack.c.l.b16 %v2033
        %v2054 = vunpack.c.l.b16 %v2034
        %v2055 = vunpack.c.l.b16 %v2035
        %v2056 = vunpack.c.l.b16 %v2036
        %v2057 = vpack.c.b16 %v2050, %v2049
        %v2058 = vpack.c.b16 %v2052, %v2051
        %v2059 = vpack.c.b16 %v2054, %v2053
        %v2060 = vpack.c.b16 %v2056, %v2055
        %v2066 = vsel %vm508, %v2027, 0
        %2068 = vmatprep.subr.bf16.mxu0 0
        %2069 = vmatpush1.bf16.msra.mxu0 %v2057
        %2070 = vmatprep.subr.bf16.mxu0 0
        %2071 = vmatpush1.bf16.msra.mxu0 %v2058
        %2072 = vmatprep.subr.bf16.mxu0 0
        %2073 = vmatpush1.bf16.msra.mxu0 %v2059
        %2074 = vmatprep.subr.bf16.mxu0 0
        %2075 = vmatpush1.bf16.msra.mxu0 %v2060
        %2076 = vmatprep.subr.bf16.mxu0 0
        %2077 = vmatpush1.bf16.msra.mxu0 0
        %2078 = vmatprep.subr.bf16.mxu0 0
        %2079 = vmatpush1.bf16.msra.mxu0 0
        %2080 = vmatprep.subr.bf16.mxu0 0
        %2081 = vmatpush1.bf16.msra.mxu0 0
        %2082 = vmatprep.subr.bf16.mxu0 0
        %2083 = vmatpush1.bf16.msra.mxu0 0
        %2084 = vmatprep.subr.bf16.mxu0 0
        %2085 = vmatpush1.bf16.msra.mxu0 0
        %2086 = vmatprep.subr.bf16.mxu0 0
        %2087 = vmatpush1.bf16.msra.mxu0 0
        %2088 = vmatprep.subr.bf16.mxu0 0
        %2089 = vmatpush1.bf16.msra.mxu0 0
        %2090 = vmatprep.subr.bf16.mxu0 0
        %2091 = vmatpush1.bf16.msra.mxu0 0
        %2092 = vmatprep.subr.bf16.mxu0 0
        %2093 = vmatpush1.bf16.msra.mxu0 0
        %2094 = vmatprep.subr.bf16.mxu0 0
        %2095 = vmatpush1.bf16.msra.mxu0 0
        %2096 = vmatprep.subr.bf16.mxu0 0
        %2097 = vmatpush1.bf16.msra.mxu0 0
        %2098 = vmatprep.subr.bf16.mxu0 0
        %2099 = vmatpush1.bf16.msra.mxu0 0
        %2100 = vmatprep.mubr.bf16.mxu0 0
        %2101 = vmatmul.mubr.bf16.gmra.mrb[0].mxu0 %v2066
        %v2102 = vpop.f32.mrb[0].mxu0
        %v2103 = vadd.f32 %v2040, %v2102
        %v2104 = vpop.f32.mrb[0].mxu0
        %v2105 = vpop.f32.mrb[0].mxu0
        %v2106 = vpop.f32.mrb[0].mxu0
        %2107 = vdwg.mxu0
        %v2108 = vadd.f32 %v1442, %v2103
        %v2109 = vsel %vm508, %v2108, 0.0
        %2110 = vadd.xlane.f32.xlu0 %v2109
        %v2111 = vpop.xlane.xlu0 %2110
        %v2112 = vmul.f32 %v2111, %v1117
        %v2113 = vsub.f32 %v2108, %v2112
        %v2114 = vmul.f32 %v2113, %v2113
        %v2115 = vsel %vm508, %v2114, 0.0
        %2116 = vadd.xlane.f32.xlu0 %v2115
        %v2117 = vpop.xlane.xlu0 %2116
        %v2118 = vmul.f32 %v2117, %v1117
        %v2119 = vadd.f32 %v2118, 1e-05
        %v2120 = vrsqrt.pop %v2119
        %v2121 = vmul.f32 %v2113, %v2120
        %v2122 = vlaneseq
        %v2123 = vshrl.u32 %v2122, 7
        %v2124 = vsub.s32 1, %v2123
        %v2125 = vrot.slane %v1444, %v2124
        %v2126 = vmul.f32 %v2121, %v2125
        %v2127 = vlaneseq
        %v2128 = vshrl.u32 %v2127, 7
        %v2129 = vsub.s32 2, %v2128
        %v2130 = vrot.slane %v1444, %v2129
        %v2131 = vadd.f32 %v2126, %v2130
        %v2132 = vpack.c.bf16 %v2131, %v2131
        %s2133 = scalar_lea.vmem %s8, 64
        %v2134 = vld [vmem:[%s2133] sm:$0xff]
        %v2135 = vld [vmem:[%s2133 + $0x8] sm:$0xff]
        %v2136 = vld [vmem:[%s2133 + $0x10] sm:$0xff]
        %v2137 = vld [vmem:[%s2133 + $0x18] sm:$0xff]
        %v2138 = vld [vmem:[%s2133 + $0x20] sm:$0xff]
        %v2139 = vld [vmem:[%s2133 + $0x28] sm:$0xff]
        %v2140 = vld [vmem:[%s2133 + $0x30] sm:$0xff]
        %v2141 = vld [vmem:[%s2133 + $0x38] sm:$0xff]
        %s2142 = scalar_lea.vmem %s9, 2
        %v2143 = vld [vmem:[%s2142] sm:$0x3]
        %v2145 = vlaneseq
        %v2146 = vshrl.u32 %v2145, 7
        %v2147 = vsub.s32 0, %v2146
        %v2148 = vrot.slane %v2143, %v2147
        %v2149 = vlaneseq
        %v2150 = vshrl.u32 %v2149, 7
        %v2151 = vsub.s32 1, %v2150
        %v2152 = vrot.slane %v2143, %v2151
        %v2163 = vunpack.c.l.b16 %v2134
        %v2164 = vunpack.c.h.b16 %v2134
        %v2165 = vunpack.c.l.b16 %v2135
        %v2166 = vunpack.c.h.b16 %v2135
        %v2167 = vunpack.c.l.b16 %v2136
        %v2168 = vunpack.c.h.b16 %v2136
        %v2169 = vunpack.c.l.b16 %v2137
        %v2170 = vunpack.c.h.b16 %v2137
        %v2171 = vunpack.c.l.b16 %v2138
        %v2172 = vunpack.c.h.b16 %v2138
        %v2173 = vunpack.c.l.b16 %v2139
        %v2174 = vunpack.c.h.b16 %v2139
        %v2175 = vunpack.c.l.b16 %v2140
        %v2176 = vunpack.c.h.b16 %v2140
        %v2177 = vunpack.c.l.b16 %v2141
        %v2178 = vunpack.c.h.b16 %v2141
        %v2179 = vpack.c.b16 %v2165, %v2163
        %v2180 = vpack.c.b16 %v2166, %v2164
        %v2181 = vpack.c.b16 %v2169, %v2167
        %v2182 = vpack.c.b16 %v2170, %v2168
        %v2183 = vpack.c.b16 %v2173, %v2171
        %v2184 = vpack.c.b16 %v2174, %v2172
        %v2185 = vpack.c.b16 %v2177, %v2175
        %v2186 = vpack.c.b16 %v2178, %v2176
        %v2196 = vsel %vm508, %v2132, 0
        %2198 = vmatprep.subr.bf16.mxu0 %v2180
        %2199 = vmatpush1.bf16.msra.mxu0 %v2179
        %2200 = vmatprep.subr.bf16.mxu0 %v2182
        %2201 = vmatpush1.bf16.msra.mxu0 %v2181
        %2202 = vmatprep.subr.bf16.mxu0 %v2184
        %2203 = vmatpush1.bf16.msra.mxu0 %v2183
        %2204 = vmatprep.subr.bf16.mxu0 %v2186
        %2205 = vmatpush1.bf16.msra.mxu0 %v2185
        %2206 = vmatprep.subr.bf16.mxu0 0
        %2207 = vmatpush1.bf16.msra.mxu0 0
        %2208 = vmatprep.subr.bf16.mxu0 0
        %2209 = vmatpush1.bf16.msra.mxu0 0
        %2210 = vmatprep.subr.bf16.mxu0 0
        %2211 = vmatpush1.bf16.msra.mxu0 0
        %2212 = vmatprep.subr.bf16.mxu0 0
        %2213 = vmatpush1.bf16.msra.mxu0 0
        %2214 = vmatprep.subr.bf16.mxu0 0
        %2215 = vmatpush1.bf16.msra.mxu0 0
        %2216 = vmatprep.subr.bf16.mxu0 0
        %2217 = vmatpush1.bf16.msra.mxu0 0
        %2218 = vmatprep.subr.bf16.mxu0 0
        %2219 = vmatpush1.bf16.msra.mxu0 0
        %2220 = vmatprep.subr.bf16.mxu0 0
        %2221 = vmatpush1.bf16.msra.mxu0 0
        %2222 = vmatprep.subr.bf16.mxu0 0
        %2223 = vmatpush1.bf16.msra.mxu0 0
        %2224 = vmatprep.subr.bf16.mxu0 0
        %2225 = vmatpush1.bf16.msra.mxu0 0
        %2226 = vmatprep.subr.bf16.mxu0 0
        %2227 = vmatpush1.bf16.msra.mxu0 0
        %2228 = vmatprep.subr.bf16.mxu0 0
        %2229 = vmatpush1.bf16.msra.mxu0 0
        %2230 = vmatprep.mubr.bf16.mxu0 0
        %2231 = vmatmul.mubr.bf16.gmra.mrb[0].mxu0 %v2196
        %v2232 = vpop.f32.mrb[0].mxu0
        %v2233 = vadd.f32 %v2148, %v2232
        %v2234 = vpop.f32.mrb[0].mxu0
        %v2235 = vadd.f32 %v2152, %v2234
        %v2236 = vpop.f32.mrb[0].mxu0
        %v2237 = vpop.f32.mrb[0].mxu0
        %2238 = vdwg.mxu0
        %v2239 = vmax.f32 %v2233, 0.0
        %v2240 = vmax.f32 %v2235, 0.0
        %v2241 = vpack.c.bf16 %v2239, %v2239
        %v2242 = vpack.c.bf16 %v2240, %v2240
        %s2243 = scalar_lea.vmem %s10, 128
        %v2244 = vld [vmem:[%s2243] sm:$0xf]
        %v2245 = vld [vmem:[%s2243 + $0x4] sm:$0xf]
        %v2246 = vld [vmem:[%s2243 + $0x8] sm:$0xf]
        %v2247 = vld [vmem:[%s2243 + $0xc] sm:$0xf]
        %v2248 = vld [vmem:[%s2243 + $0x10] sm:$0xf]
        %v2249 = vld [vmem:[%s2243 + $0x14] sm:$0xf]
        %v2250 = vld [vmem:[%s2243 + $0x18] sm:$0xf]
        %v2251 = vld [vmem:[%s2243 + $0x1c] sm:$0xf]
        %v2252 = vld [vmem:[%s2243 + $0x20] sm:$0xf]
        %v2253 = vld [vmem:[%s2243 + $0x24] sm:$0xf]
        %v2254 = vld [vmem:[%s2243 + $0x28] sm:$0xf]
        %v2255 = vld [vmem:[%s2243 + $0x2c] sm:$0xf]
        %v2256 = vld [vmem:[%s2243 + $0x30] sm:$0xf]
        %v2257 = vld [vmem:[%s2243 + $0x34] sm:$0xf]
        %v2258 = vld [vmem:[%s2243 + $0x38] sm:$0xf]
        %v2259 = vld [vmem:[%s2243 + $0x3c] sm:$0xf]
        %v2260 = vld [vmem:[%s2243 + $0x40] sm:$0xf]
        %v2261 = vld [vmem:[%s2243 + $0x44] sm:$0xf]
        %v2262 = vld [vmem:[%s2243 + $0x48] sm:$0xf]
        %v2263 = vld [vmem:[%s2243 + $0x4c] sm:$0xf]
        %v2264 = vld [vmem:[%s2243 + $0x50] sm:$0xf]
        %v2265 = vld [vmem:[%s2243 + $0x54] sm:$0xf]
        %v2266 = vld [vmem:[%s2243 + $0x58] sm:$0xf]
        %v2267 = vld [vmem:[%s2243 + $0x5c] sm:$0xf]
        %v2268 = vld [vmem:[%s2243 + $0x60] sm:$0xf]
        %v2269 = vld [vmem:[%s2243 + $0x64] sm:$0xf]
        %v2270 = vld [vmem:[%s2243 + $0x68] sm:$0xf]
        %v2271 = vld [vmem:[%s2243 + $0x6c] sm:$0xf]
        %v2272 = vld [vmem:[%s2243 + $0x70] sm:$0xf]
        %v2273 = vld [vmem:[%s2243 + $0x74] sm:$0xf]
        %v2274 = vld [vmem:[%s2243 + $0x78] sm:$0xf]
        %v2275 = vld [vmem:[%s2243 + $0x7c] sm:$0xf]
        %v2276 = vlaneseq
        %v2277 = vshrl.u32 %v2276, 7
        %v2278 = vsub.s32 5, %v2277
        %v2279 = vrot.slane %v1444, %v2278
        %v2312 = vunpack.c.l.b16 %v2244
        %v2313 = vunpack.c.l.b16 %v2245
        %v2314 = vunpack.c.l.b16 %v2246
        %v2315 = vunpack.c.l.b16 %v2247
        %v2316 = vunpack.c.l.b16 %v2248
        %v2317 = vunpack.c.l.b16 %v2249
        %v2318 = vunpack.c.l.b16 %v2250
        %v2319 = vunpack.c.l.b16 %v2251
        %v2320 = vunpack.c.l.b16 %v2252
        %v2321 = vunpack.c.l.b16 %v2253
        %v2322 = vunpack.c.l.b16 %v2254
        %v2323 = vunpack.c.l.b16 %v2255
        %v2324 = vunpack.c.l.b16 %v2256
        %v2325 = vunpack.c.l.b16 %v2257
        %v2326 = vunpack.c.l.b16 %v2258
        %v2327 = vunpack.c.l.b16 %v2259
        %v2328 = vunpack.c.l.b16 %v2260
        %v2329 = vunpack.c.l.b16 %v2261
        %v2330 = vunpack.c.l.b16 %v2262
        %v2331 = vunpack.c.l.b16 %v2263
        %v2332 = vunpack.c.l.b16 %v2264
        %v2333 = vunpack.c.l.b16 %v2265
        %v2334 = vunpack.c.l.b16 %v2266
        %v2335 = vunpack.c.l.b16 %v2267
        %v2336 = vunpack.c.l.b16 %v2268
        %v2337 = vunpack.c.l.b16 %v2269
        %v2338 = vunpack.c.l.b16 %v2270
        %v2339 = vunpack.c.l.b16 %v2271
        %v2340 = vunpack.c.l.b16 %v2272
        %v2341 = vunpack.c.l.b16 %v2273
        %v2342 = vunpack.c.l.b16 %v2274
        %v2343 = vunpack.c.l.b16 %v2275
        %v2344 = vpack.c.b16 %v2313, %v2312
        %v2345 = vpack.c.b16 %v2315, %v2314
        %v2346 = vpack.c.b16 %v2317, %v2316
        %v2347 = vpack.c.b16 %v2319, %v2318
        %v2348 = vpack.c.b16 %v2321, %v2320
        %v2349 = vpack.c.b16 %v2323, %v2322
        %v2350 = vpack.c.b16 %v2325, %v2324
        %v2351 = vpack.c.b16 %v2327, %v2326
        %v2352 = vpack.c.b16 %v2329, %v2328
        %v2353 = vpack.c.b16 %v2331, %v2330
        %v2354 = vpack.c.b16 %v2333, %v2332
        %v2355 = vpack.c.b16 %v2335, %v2334
        %v2356 = vpack.c.b16 %v2337, %v2336
        %v2357 = vpack.c.b16 %v2339, %v2338
        %v2358 = vpack.c.b16 %v2341, %v2340
        %v2359 = vpack.c.b16 %v2343, %v2342
        %2376 = vmatprep.subr.bf16.mxu0 0
        %2377 = vmatpush1.bf16.msra.mxu0 %v2344
        %2378 = vmatprep.subr.bf16.mxu0 0
        %2379 = vmatpush1.bf16.msra.mxu0 %v2345
        %2380 = vmatprep.subr.bf16.mxu0 0
        %2381 = vmatpush1.bf16.msra.mxu0 %v2346
        %2382 = vmatprep.subr.bf16.mxu0 0
        %2383 = vmatpush1.bf16.msra.mxu0 %v2347
        %2384 = vmatprep.subr.bf16.mxu0 0
        %2385 = vmatpush1.bf16.msra.mxu0 %v2348
        %2386 = vmatprep.subr.bf16.mxu0 0
        %2387 = vmatpush1.bf16.msra.mxu0 %v2349
        %2388 = vmatprep.subr.bf16.mxu0 0
        %2389 = vmatpush1.bf16.msra.mxu0 %v2350
        %2390 = vmatprep.subr.bf16.mxu0 0
        %2391 = vmatpush1.bf16.msra.mxu0 %v2351
        %2392 = vmatprep.subr.bf16.mxu0 0
        %2393 = vmatpush1.bf16.msra.mxu0 %v2352
        %2394 = vmatprep.subr.bf16.mxu0 0
        %2395 = vmatpush1.bf16.msra.mxu0 %v2353
        %2396 = vmatprep.subr.bf16.mxu0 0
        %2397 = vmatpush1.bf16.msra.mxu0 %v2354
        %2398 = vmatprep.subr.bf16.mxu0 0
        %2399 = vmatpush1.bf16.msra.mxu0 %v2355
        %2400 = vmatprep.subr.bf16.mxu0 0
        %2401 = vmatpush1.bf16.msra.mxu0 %v2356
        %2402 = vmatprep.subr.bf16.mxu0 0
        %2403 = vmatpush1.bf16.msra.mxu0 %v2357
        %2404 = vmatprep.subr.bf16.mxu0 0
        %2405 = vmatpush1.bf16.msra.mxu0 %v2358
        %2406 = vmatprep.subr.bf16.mxu0 0
        %2407 = vmatpush1.bf16.msra.mxu0 %v2359
        %2408 = vmatprep.mubr.bf16.mxu0 %v2242
        %2409 = vmatmul.mubr.bf16.gmra.mrb[0].mxu0 %v2241
        %v2410 = vpop.f32.mrb[0].mxu0
        %v2411 = vadd.f32 %v2279, %v2410
        %v2412 = vpop.f32.mrb[0].mxu0
        %v2413 = vpop.f32.mrb[0].mxu0
        %v2414 = vpop.f32.mrb[0].mxu0
        %2415 = vdwg.mxu0
        %v2416 = vadd.f32 %v2131, %v2411
        %v2417 = vsel %vm508, %v2416, 0.0
        %2418 = vadd.xlane.f32.xlu0 %v2417
        %v2419 = vpop.xlane.xlu0 %2418
        %v2420 = vmul.f32 %v2419, %v1117
        %v2421 = vsub.f32 %v2416, %v2420
        %v2422 = vmul.f32 %v2421, %v2421
        %v2423 = vsel %vm508, %v2422, 0.0
        %2424 = vadd.xlane.f32.xlu0 %v2423
        %v2425 = vpop.xlane.xlu0 %2424
        %v2426 = vmul.f32 %v2425, %v1117
        %v2427 = vadd.f32 %v2426, 1e-05
        %v2428 = vrsqrt.pop %v2427
        %v2429 = vmul.f32 %v2421, %v2428
        %v2430 = vlaneseq
        %v2431 = vshrl.u32 %v2430, 7
        %v2432 = vsub.s32 3, %v2431
        %v2433 = vrot.slane %v1444, %v2432
        %v2434 = vmul.f32 %v2429, %v2433
        %v2435 = vlaneseq
        %v2436 = vshrl.u32 %v2435, 7
        %v2437 = vsub.s32 4, %v2436
        %v2438 = vrot.slane %v1444, %v2437
        %v2439 = vadd.f32 %v2434, %v2438
        %s2440 = scalar_lea.vmem %s7, 16
        %v2441 = vld [vmem:[%s2440] sm:$0x3f]
        %v2442 = vpack.c.bf16 %v2439, %v2439
        %s2443 = scalar_lea.vmem %s4, 128
        %v2444 = vld [vmem:[%s2443] sm:$0xff]
        %v2445 = vld [vmem:[%s2443 + $0x8] sm:$0xff]
        %v2446 = vld [vmem:[%s2443 + $0x10] sm:$0xff]
        %v2447 = vld [vmem:[%s2443 + $0x18] sm:$0xff]
        %v2448 = vld [vmem:[%s2443 + $0x20] sm:$0xff]
        %v2449 = vld [vmem:[%s2443 + $0x28] sm:$0xff]
        %v2450 = vld [vmem:[%s2443 + $0x30] sm:$0xff]
        %v2451 = vld [vmem:[%s2443 + $0x38] sm:$0xff]
        %s2452 = scalar_lea.vmem %s5, 4
        %v2453 = vld [vmem:[%s2452] sm:$0x3]
        %v2455 = vlaneseq
        %v2456 = vshrl.u32 %v2455, 7
        %v2457 = vsub.s32 0, %v2456
        %v2458 = vrot.slane %v2453, %v2457
        %v2459 = vlaneseq
        %v2460 = vshrl.u32 %v2459, 7
        %v2461 = vsub.s32 1, %v2460
        %v2462 = vrot.slane %v2453, %v2461
        %v2473 = vunpack.c.l.b16 %v2444
        %v2474 = vunpack.c.h.b16 %v2444
        %v2475 = vunpack.c.l.b16 %v2445
        %v2476 = vunpack.c.h.b16 %v2445
        %v2477 = vunpack.c.l.b16 %v2446
        %v2478 = vunpack.c.h.b16 %v2446
        %v2479 = vunpack.c.l.b16 %v2447
        %v2480 = vunpack.c.h.b16 %v2447
        %v2481 = vunpack.c.l.b16 %v2448
        %v2482 = vunpack.c.h.b16 %v2448
        %v2483 = vunpack.c.l.b16 %v2449
        %v2484 = vunpack.c.h.b16 %v2449
        %v2485 = vunpack.c.l.b16 %v2450
        %v2486 = vunpack.c.h.b16 %v2450
        %v2487 = vunpack.c.l.b16 %v2451
        %v2488 = vunpack.c.h.b16 %v2451
        %v2489 = vpack.c.b16 %v2475, %v2473
        %v2490 = vpack.c.b16 %v2476, %v2474
        %v2491 = vpack.c.b16 %v2479, %v2477
        %v2492 = vpack.c.b16 %v2480, %v2478
        %v2493 = vpack.c.b16 %v2483, %v2481
        %v2494 = vpack.c.b16 %v2484, %v2482
        %v2495 = vpack.c.b16 %v2487, %v2485
        %v2496 = vpack.c.b16 %v2488, %v2486
        %v2506 = vsel %vm508, %v2442, 0
        %2508 = vmatprep.subr.bf16.mxu0 %v2490
        %2509 = vmatpush1.bf16.msra.mxu0 %v2489
        %2510 = vmatprep.subr.bf16.mxu0 %v2492
        %2511 = vmatpush1.bf16.msra.mxu0 %v2491
        %2512 = vmatprep.subr.bf16.mxu0 %v2494
        %2513 = vmatpush1.bf16.msra.mxu0 %v2493
        %2514 = vmatprep.subr.bf16.mxu0 %v2496
        %2515 = vmatpush1.bf16.msra.mxu0 %v2495
        %2516 = vmatprep.subr.bf16.mxu0 0
        %2517 = vmatpush1.bf16.msra.mxu0 0
        %2518 = vmatprep.subr.bf16.mxu0 0
        %2519 = vmatpush1.bf16.msra.mxu0 0
        %2520 = vmatprep.subr.bf16.mxu0 0
        %2521 = vmatpush1.bf16.msra.mxu0 0
        %2522 = vmatprep.subr.bf16.mxu0 0
        %2523 = vmatpush1.bf16.msra.mxu0 0
        %2524 = vmatprep.subr.bf16.mxu0 0
        %2525 = vmatpush1.bf16.msra.mxu0 0
        %2526 = vmatprep.subr.bf16.mxu0 0
        %2527 = vmatpush1.bf16.msra.mxu0 0
        %2528 = vmatprep.subr.bf16.mxu0 0
        %2529 = vmatpush1.bf16.msra.mxu0 0
        %2530 = vmatprep.subr.bf16.mxu0 0
        %2531 = vmatpush1.bf16.msra.mxu0 0
        %2532 = vmatprep.subr.bf16.mxu0 0
        %2533 = vmatpush1.bf16.msra.mxu0 0
        %2534 = vmatprep.subr.bf16.mxu0 0
        %2535 = vmatpush1.bf16.msra.mxu0 0
        %2536 = vmatprep.subr.bf16.mxu0 0
        %2537 = vmatpush1.bf16.msra.mxu0 0
        %2538 = vmatprep.subr.bf16.mxu0 0
        %2539 = vmatpush1.bf16.msra.mxu0 0
        %2540 = vmatprep.mubr.bf16.mxu0 0
        %2541 = vmatmul.mubr.bf16.gmra.mrb[0].mxu0 %v2506
        %v2542 = vpop.f32.mrb[0].mxu0
        %v2543 = vadd.f32 %v2458, %v2542
        %v2544 = vpop.f32.mrb[0].mxu0
        %v2545 = vadd.f32 %v2462, %v2544
        %v2546 = vpop.f32.mrb[0].mxu0
        %v2547 = vpop.f32.mrb[0].mxu0
        %2548 = vdwg.mxu0
        %2550 = vrot.lane.b32.xlu0 %v2543, 112
        %v2551 = vpop.permute.xlu0 %2550
        %2553 = vrot.lane.b32.xlu0 %v2543, 96
        %v2554 = vpop.permute.xlu0 %2553
        %2556 = vrot.lane.b32.xlu0 %v2543, 80
        %v2557 = vpop.permute.xlu0 %2556
        %v2559 = vpack.c.bf16 %v2543, %v2543
        %v2560 = vpack.c.bf16 %v2551, %v2551
        %v2561 = vpack.c.bf16 %v2554, %v2554
        %v2562 = vpack.c.bf16 %v2557, %v2557
        %2564 = vrot.lane.b32.xlu0 %v2545, 112
        %v2565 = vpop.permute.xlu0 %2564
        %2567 = vrot.lane.b32.xlu0 %v2545, 96
        %v2568 = vpop.permute.xlu0 %2567
        %2570 = vrot.lane.b32.xlu0 %v2545, 80
        %v2571 = vpop.permute.xlu0 %2570
        %v2573 = vpack.c.bf16 %v2545, %v2545
        %v2574 = vpack.c.bf16 %v2565, %v2565
        %v2575 = vpack.c.bf16 %v2568, %v2568
        %v2576 = vpack.c.bf16 %v2571, %v2571
        %2578 = vrot.lane.b32.xlu0 %v2559, 64
        %v2579 = vpop.permute.xlu0 %2578
        %v2581 = vsel %vm584, %v2559, 0
        %v2584 = vsel %vm584, %v2579, 0
        %2586 = vmatprep.subr.bf16.mxu0 0
        %2587 = vmatpush1.bf16.xpose.msra.mxu0 %v2584
        %2588 = vmatprep.subr.bf16.mxu0 0
        %2589 = vmatpush1.bf16.xpose.msra.mxu0 0
        %2590 = vmatprep.subr.bf16.mxu0 0
        %2591 = vmatpush1.bf16.xpose.msra.mxu0 0
        %2592 = vmatprep.subr.bf16.mxu0 0
        %2593 = vmatpush1.bf16.xpose.msra.mxu0 0
        %2594 = vmatprep.subr.bf16.mxu0 0
        %2595 = vmatpush1.bf16.xpose.msra.mxu0 0
        %2596 = vmatprep.subr.bf16.mxu0 0
        %2597 = vmatpush1.bf16.xpose.msra.mxu0 0
        %2598 = vmatprep.subr.bf16.mxu0 0
        %2599 = vmatpush1.bf16.xpose.msra.mxu0 0
        %2600 = vmatprep.subr.bf16.mxu0 0
        %2601 = vmatpush1.bf16.xpose.msra.mxu0 0
        %2602 = vmatprep.subr.bf16.mxu0 0
        %2603 = vmatpush1.bf16.xpose.msra.mxu0 0
        %2604 = vmatprep.subr.bf16.mxu0 0
        %2605 = vmatpush1.bf16.xpose.msra.mxu0 0
        %2606 = vmatprep.subr.bf16.mxu0 0
        %2607 = vmatpush1.bf16.xpose.msra.mxu0 0
        %2608 = vmatprep.subr.bf16.mxu0 0
        %2609 = vmatpush1.bf16.xpose.msra.mxu0 0
        %2610 = vmatprep.subr.bf16.mxu0 0
        %2611 = vmatpush1.bf16.xpose.msra.mxu0 0
        %2612 = vmatprep.subr.bf16.mxu0 0
        %2613 = vmatpush1.bf16.xpose.msra.mxu0 0
        %2614 = vmatprep.subr.bf16.mxu0 0
        %2615 = vmatpush1.bf16.xpose.msra.mxu0 0
        %2616 = vmatprep.subr.bf16.mxu0 0
        %2617 = vmatpush1.bf16.xpose.msra.mxu0 0
        %2618 = vmatprep.mubr.bf16.mxu0 0
        %2619 = vmatmul.mubr.bf16.gmra.mrb[0].mxu0 %v2581
        %v2620 = vpop.f32.mrb[0].mxu0
        %v2621 = vadd.f32 0.0, %v2620
        %v2622 = vpop.f32.mrb[0].mxu0
        %v2623 = vpop.f32.mrb[0].mxu0
        %v2624 = vpop.f32.mrb[0].mxu0
        %2625 = vdwg.mxu0
        %2627 = vrot.lane.b32.xlu0 %v2560, 64
        %v2628 = vpop.permute.xlu0 %2627
        %v2630 = vsel %vm584, %v2560, 0
        %v2633 = vsel %vm584, %v2628, 0
        %2635 = vmatprep.subr.bf16.mxu0 0
        %2636 = vmatpush1.bf16.xpose.msra.mxu0 %v2633
        %2637 = vmatprep.subr.bf16.mxu0 0
        %2638 = vmatpush1.bf16.xpose.msra.mxu0 0
        %2639 = vmatprep.subr.bf16.mxu0 0
        %2640 = vmatpush1.bf16.xpose.msra.mxu0 0
        %2641 = vmatprep.subr.bf16.mxu0 0
        %2642 = vmatpush1.bf16.xpose.msra.mxu0 0
        %2643 = vmatprep.subr.bf16.mxu0 0
        %2644 = vmatpush1.bf16.xpose.msra.mxu0 0
        %2645 = vmatprep.subr.bf16.mxu0 0
        %2646 = vmatpush1.bf16.xpose.msra.mxu0 0
        %2647 = vmatprep.subr.bf16.mxu0 0
        %2648 = vmatpush1.bf16.xpose.msra.mxu0 0
        %2649 = vmatprep.subr.bf16.mxu0 0
        %2650 = vmatpush1.bf16.xpose.msra.mxu0 0
        %2651 = vmatprep.subr.bf16.mxu0 0
        %2652 = vmatpush1.bf16.xpose.msra.mxu0 0
        %2653 = vmatprep.subr.bf16.mxu0 0
        %2654 = vmatpush1.bf16.xpose.msra.mxu0 0
        %2655 = vmatprep.subr.bf16.mxu0 0
        %2656 = vmatpush1.bf16.xpose.msra.mxu0 0
        %2657 = vmatprep.subr.bf16.mxu0 0
        %2658 = vmatpush1.bf16.xpose.msra.mxu0 0
        %2659 = vmatprep.subr.bf16.mxu0 0
        %2660 = vmatpush1.bf16.xpose.msra.mxu0 0
        %2661 = vmatprep.subr.bf16.mxu0 0
        %2662 = vmatpush1.bf16.xpose.msra.mxu0 0
        %2663 = vmatprep.subr.bf16.mxu0 0
        %2664 = vmatpush1.bf16.xpose.msra.mxu0 0
        %2665 = vmatprep.subr.bf16.mxu0 0
        %2666 = vmatpush1.bf16.xpose.msra.mxu0 0
        %2667 = vmatprep.mubr.bf16.mxu0 0
        %2668 = vmatmul.mubr.bf16.gmra.mrb[0].mxu0 %v2630
        %v2669 = vpop.f32.mrb[0].mxu0
        %v2670 = vadd.f32 0.0, %v2669
        %v2671 = vpop.f32.mrb[0].mxu0
        %v2672 = vpop.f32.mrb[0].mxu0
        %v2673 = vpop.f32.mrb[0].mxu0
        %2674 = vdwg.mxu0
        %2676 = vrot.lane.b32.xlu0 %v2561, 64
        %v2677 = vpop.permute.xlu0 %2676
        %v2679 = vsel %vm584, %v2561, 0
        %v2682 = vsel %vm584, %v2677, 0
        %2684 = vmatprep.subr.bf16.mxu0 0
        %2685 = vmatpush1.bf16.xpose.msra.mxu0 %v2682
        %2686 = vmatprep.subr.bf16.mxu0 0
        %2687 = vmatpush1.bf16.xpose.msra.mxu0 0
        %2688 = vmatprep.subr.bf16.mxu0 0
        %2689 = vmatpush1.bf16.xpose.msra.mxu0 0
        %2690 = vmatprep.subr.bf16.mxu0 0
        %2691 = vmatpush1.bf16.xpose.msra.mxu0 0
        %2692 = vmatprep.subr.bf16.mxu0 0
        %2693 = vmatpush1.bf16.xpose.msra.mxu0 0
        %2694 = vmatprep.subr.bf16.mxu0 0
        %2695 = vmatpush1.bf16.xpose.msra.mxu0 0
        %2696 = vmatprep.subr.bf16.mxu0 0
        %2697 = vmatpush1.bf16.xpose.msra.mxu0 0
        %2698 = vmatprep.subr.bf16.mxu0 0
        %2699 = vmatpush1.bf16.xpose.msra.mxu0 0
        %2700 = vmatprep.subr.bf16.mxu0 0
        %2701 = vmatpush1.bf16.xpose.msra.mxu0 0
        %2702 = vmatprep.subr.bf16.mxu0 0
        %2703 = vmatpush1.bf16.xpose.msra.mxu0 0
        %2704 = vmatprep.subr.bf16.mxu0 0
        %2705 = vmatpush1.bf16.xpose.msra.mxu0 0
        %2706 = vmatprep.subr.bf16.mxu0 0
        %2707 = vmatpush1.bf16.xpose.msra.mxu0 0
        %2708 = vmatprep.subr.bf16.mxu0 0
        %2709 = vmatpush1.bf16.xpose.msra.mxu0 0
        %2710 = vmatprep.subr.bf16.mxu0 0
        %2711 = vmatpush1.bf16.xpose.msra.mxu0 0
        %2712 = vmatprep.subr.bf16.mxu0 0
        %2713 = vmatpush1.bf16.xpose.msra.mxu0 0
        %2714 = vmatprep.subr.bf16.mxu0 0
        %2715 = vmatpush1.bf16.xpose.msra.mxu0 0
        %2716 = vmatprep.mubr.bf16.mxu0 0
        %2717 = vmatmul.mubr.bf16.gmra.mrb[0].mxu0 %v2679
        %v2718 = vpop.f32.mrb[0].mxu0
        %v2719 = vadd.f32 0.0, %v2718
        %v2720 = vpop.f32.mrb[0].mxu0
        %v2721 = vpop.f32.mrb[0].mxu0
        %v2722 = vpop.f32.mrb[0].mxu0
        %2723 = vdwg.mxu0
        %2725 = vrot.lane.b32.xlu0 %v2562, 64
        %v2726 = vpop.permute.xlu0 %2725
        %v2728 = vsel %vm584, %v2562, 0
        %v2731 = vsel %vm584, %v2726, 0
        %2733 = vmatprep.subr.bf16.mxu0 0
        %2734 = vmatpush1.bf16.xpose.msra.mxu0 %v2731
        %2735 = vmatprep.subr.bf16.mxu0 0
        %2736 = vmatpush1.bf16.xpose.msra.mxu0 0
        %2737 = vmatprep.subr.bf16.mxu0 0
        %2738 = vmatpush1.bf16.xpose.msra.mxu0 0
        %2739 = vmatprep.subr.bf16.mxu0 0
        %2740 = vmatpush1.bf16.xpose.msra.mxu0 0
        %2741 = vmatprep.subr.bf16.mxu0 0
        %2742 = vmatpush1.bf16.xpose.msra.mxu0 0
        %2743 = vmatprep.subr.bf16.mxu0 0
        %2744 = vmatpush1.bf16.xpose.msra.mxu0 0
        %2745 = vmatprep.subr.bf16.mxu0 0
        %2746 = vmatpush1.bf16.xpose.msra.mxu0 0
        %2747 = vmatprep.subr.bf16.mxu0 0
        %2748 = vmatpush1.bf16.xpose.msra.mxu0 0
        %2749 = vmatprep.subr.bf16.mxu0 0
        %2750 = vmatpush1.bf16.xpose.msra.mxu0 0
        %2751 = vmatprep.subr.bf16.mxu0 0
        %2752 = vmatpush1.bf16.xpose.msra.mxu0 0
        %2753 = vmatprep.subr.bf16.mxu0 0
        %2754 = vmatpush1.bf16.xpose.msra.mxu0 0
        %2755 = vmatprep.subr.bf16.mxu0 0
        %2756 = vmatpush1.bf16.xpose.msra.mxu0 0
        %2757 = vmatprep.subr.bf16.mxu0 0
        %2758 = vmatpush1.bf16.xpose.msra.mxu0 0
        %2759 = vmatprep.subr.bf16.mxu0 0
        %2760 = vmatpush1.bf16.xpose.msra.mxu0 0
        %2761 = vmatprep.subr.bf16.mxu0 0
        %2762 = vmatpush1.bf16.xpose.msra.mxu0 0
        %2763 = vmatprep.subr.bf16.mxu0 0
        %2764 = vmatpush1.bf16.xpose.msra.mxu0 0
        %2765 = vmatprep.mubr.bf16.mxu0 0
        %2766 = vmatmul.mubr.bf16.gmra.mrb[0].mxu0 %v2728
        %v2767 = vpop.f32.mrb[0].mxu0
        %v2768 = vadd.f32 0.0, %v2767
        %v2769 = vpop.f32.mrb[0].mxu0
        %v2770 = vpop.f32.mrb[0].mxu0
        %v2771 = vpop.f32.mrb[0].mxu0
        %2772 = vdwg.mxu0
        %v2773 = vmul.f32 %v2621, 0.25
        %v2774 = vmul.f32 %v2670, 0.25
        %v2775 = vmul.f32 %v2719, 0.25
        %v2776 = vmul.f32 %v2768, 0.25
        %v2777 = vsel %vm782, %v2773, -inf
        %2778 = vmax.xlane.f32.xlu0 %v2777
        %v2779 = vpop.xlane.xlu0 %2778
        %v2780 = vsel %vm782, %v2774, -inf
        %2781 = vmax.xlane.f32.xlu0 %v2780
        %v2782 = vpop.xlane.xlu0 %2781
        %v2783 = vsel %vm782, %v2775, -inf
        %2784 = vmax.xlane.f32.xlu0 %v2783
        %v2785 = vpop.xlane.xlu0 %2784
        %v2786 = vsel %vm782, %v2776, -inf
        %2787 = vmax.xlane.f32.xlu0 %v2786
        %v2788 = vpop.xlane.xlu0 %2787
        %v2789 = vsub.f32 %v2773, %v2779
        %v2790 = vsub.f32 %v2774, %v2782
        %v2791 = vsub.f32 %v2775, %v2785
        %v2792 = vsub.f32 %v2776, %v2788
        %v2793 = vmul.f32 %v2789, 1.442695
        %v2794 = vpow.pop %v2793
        %v2795 = vmul.f32 %v2790, 1.442695
        %v2796 = vpow.pop %v2795
        %v2797 = vmul.f32 %v2791, 1.442695
        %v2798 = vpow.pop %v2797
        %v2799 = vmul.f32 %v2792, 1.442695
        %v2800 = vpow.pop %v2799
        %v2801 = vsel %vm782, %v2794, 0.0
        %2802 = vadd.xlane.f32.xlu0 %v2801
        %v2803 = vpop.xlane.xlu0 %2802
        %v2804 = vsel %vm782, %v2796, 0.0
        %2805 = vadd.xlane.f32.xlu0 %v2804
        %v2806 = vpop.xlane.xlu0 %2805
        %v2807 = vsel %vm782, %v2798, 0.0
        %2808 = vadd.xlane.f32.xlu0 %v2807
        %v2809 = vpop.xlane.xlu0 %2808
        %v2810 = vsel %vm782, %v2800, 0.0
        %2811 = vadd.xlane.f32.xlu0 %v2810
        %v2812 = vpop.xlane.xlu0 %2811
        %v2813 = vrcp.pop %v2803
        %v2814 = vmul.f32 %v2794, %v2813
        %v2815 = vrcp.pop %v2806
        %v2816 = vmul.f32 %v2796, %v2815
        %v2817 = vrcp.pop %v2809
        %v2818 = vmul.f32 %v2798, %v2817
        %v2819 = vrcp.pop %v2812
        %v2820 = vmul.f32 %v2800, %v2819
        %v2821 = vpack.c.bf16 %v2814, %v2814
        %v2822 = vpack.c.bf16 %v2816, %v2816
        %v2823 = vpack.c.bf16 %v2818, %v2818
        %v2824 = vpack.c.bf16 %v2820, %v2820
        %v2826 = vsel %vm782, %v2821, 0
        %v2829 = vsel %vm834, %v2573, 0
        %2831 = vmatprep.subr.bf16.mxu0 0
        %2832 = vmatpush1.bf16.msra.mxu0 %v2829
        %2833 = vmatprep.subr.bf16.mxu0 0
        %2834 = vmatpush1.bf16.msra.mxu0 0
        %2835 = vmatprep.subr.bf16.mxu0 0
        %2836 = vmatpush1.bf16.msra.mxu0 0
        %2837 = vmatprep.subr.bf16.mxu0 0
        %2838 = vmatpush1.bf16.msra.mxu0 0
        %2839 = vmatprep.subr.bf16.mxu0 0
        %2840 = vmatpush1.bf16.msra.mxu0 0
        %2841 = vmatprep.subr.bf16.mxu0 0
        %2842 = vmatpush1.bf16.msra.mxu0 0
        %2843 = vmatprep.subr.bf16.mxu0 0
        %2844 = vmatpush1.bf16.msra.mxu0 0
        %2845 = vmatprep.subr.bf16.mxu0 0
        %2846 = vmatpush1.bf16.msra.mxu0 0
        %2847 = vmatprep.subr.bf16.mxu0 0
        %2848 = vmatpush1.bf16.msra.mxu0 0
        %2849 = vmatprep.subr.bf16.mxu0 0
        %2850 = vmatpush1.bf16.msra.mxu0 0
        %2851 = vmatprep.subr.bf16.mxu0 0
        %2852 = vmatpush1.bf16.msra.mxu0 0
        %2853 = vmatprep.subr.bf16.mxu0 0
        %2854 = vmatpush1.bf16.msra.mxu0 0
        %2855 = vmatprep.subr.bf16.mxu0 0
        %2856 = vmatpush1.bf16.msra.mxu0 0
        %2857 = vmatprep.subr.bf16.mxu0 0
        %2858 = vmatpush1.bf16.msra.mxu0 0
        %2859 = vmatprep.subr.bf16.mxu0 0
        %2860 = vmatpush1.bf16.msra.mxu0 0
        %2861 = vmatprep.subr.bf16.mxu0 0
        %2862 = vmatpush1.bf16.msra.mxu0 0
        %2863 = vmatprep.mubr.bf16.mxu0 0
        %2864 = vmatmul.mubr.bf16.gmra.mrb[0].mxu0 %v2826
        %v2865 = vpop.f32.mrb[0].mxu0
        %v2866 = vadd.f32 0.0, %v2865
        %v2867 = vpop.f32.mrb[0].mxu0
        %v2868 = vpop.f32.mrb[0].mxu0
        %v2869 = vpop.f32.mrb[0].mxu0
        %2870 = vdwg.mxu0
        %v2872 = vsel %vm782, %v2822, 0
        %v2875 = vsel %vm834, %v2574, 0
        %2877 = vmatprep.subr.bf16.mxu0 0
        %2878 = vmatpush1.bf16.msra.mxu0 %v2875
        %2879 = vmatprep.subr.bf16.mxu0 0
        %2880 = vmatpush1.bf16.msra.mxu0 0
        %2881 = vmatprep.subr.bf16.mxu0 0
        %2882 = vmatpush1.bf16.msra.mxu0 0
        %2883 = vmatprep.subr.bf16.mxu0 0
        %2884 = vmatpush1.bf16.msra.mxu0 0
        %2885 = vmatprep.subr.bf16.mxu0 0
        %2886 = vmatpush1.bf16.msra.mxu0 0
        %2887 = vmatprep.subr.bf16.mxu0 0
        %2888 = vmatpush1.bf16.msra.mxu0 0
        %2889 = vmatprep.subr.bf16.mxu0 0
        %2890 = vmatpush1.bf16.msra.mxu0 0
        %2891 = vmatprep.subr.bf16.mxu0 0
        %2892 = vmatpush1.bf16.msra.mxu0 0
        %2893 = vmatprep.subr.bf16.mxu0 0
        %2894 = vmatpush1.bf16.msra.mxu0 0
        %2895 = vmatprep.subr.bf16.mxu0 0
        %2896 = vmatpush1.bf16.msra.mxu0 0
        %2897 = vmatprep.subr.bf16.mxu0 0
        %2898 = vmatpush1.bf16.msra.mxu0 0
        %2899 = vmatprep.subr.bf16.mxu0 0
        %2900 = vmatpush1.bf16.msra.mxu0 0
        %2901 = vmatprep.subr.bf16.mxu0 0
        %2902 = vmatpush1.bf16.msra.mxu0 0
        %2903 = vmatprep.subr.bf16.mxu0 0
        %2904 = vmatpush1.bf16.msra.mxu0 0
        %2905 = vmatprep.subr.bf16.mxu0 0
        %2906 = vmatpush1.bf16.msra.mxu0 0
        %2907 = vmatprep.subr.bf16.mxu0 0
        %2908 = vmatpush1.bf16.msra.mxu0 0
        %2909 = vmatprep.mubr.bf16.mxu0 0
        %2910 = vmatmul.mubr.bf16.gmra.mrb[0].mxu0 %v2872
        %v2911 = vpop.f32.mrb[0].mxu0
        %v2912 = vadd.f32 0.0, %v2911
        %v2913 = vpop.f32.mrb[0].mxu0
        %v2914 = vpop.f32.mrb[0].mxu0
        %v2915 = vpop.f32.mrb[0].mxu0
        %2916 = vdwg.mxu0
        %v2918 = vsel %vm782, %v2823, 0
        %v2921 = vsel %vm834, %v2575, 0
        %2923 = vmatprep.subr.bf16.mxu0 0
        %2924 = vmatpush1.bf16.msra.mxu0 %v2921
        %2925 = vmatprep.subr.bf16.mxu0 0
        %2926 = vmatpush1.bf16.msra.mxu0 0
        %2927 = vmatprep.subr.bf16.mxu0 0
        %2928 = vmatpush1.bf16.msra.mxu0 0
        %2929 = vmatprep.subr.bf16.mxu0 0
        %2930 = vmatpush1.bf16.msra.mxu0 0
        %2931 = vmatprep.subr.bf16.mxu0 0
        %2932 = vmatpush1.bf16.msra.mxu0 0
        %2933 = vmatprep.subr.bf16.mxu0 0
        %2934 = vmatpush1.bf16.msra.mxu0 0
        %2935 = vmatprep.subr.bf16.mxu0 0
        %2936 = vmatpush1.bf16.msra.mxu0 0
        %2937 = vmatprep.subr.bf16.mxu0 0
        %2938 = vmatpush1.bf16.msra.mxu0 0
        %2939 = vmatprep.subr.bf16.mxu0 0
        %2940 = vmatpush1.bf16.msra.mxu0 0
        %2941 = vmatprep.subr.bf16.mxu0 0
        %2942 = vmatpush1.bf16.msra.mxu0 0
        %2943 = vmatprep.subr.bf16.mxu0 0
        %2944 = vmatpush1.bf16.msra.mxu0 0
        %2945 = vmatprep.subr.bf16.mxu0 0
        %2946 = vmatpush1.bf16.msra.mxu0 0
        %2947 = vmatprep.subr.bf16.mxu0 0
        %2948 = vmatpush1.bf16.msra.mxu0 0
        %2949 = vmatprep.subr.bf16.mxu0 0
        %2950 = vmatpush1.bf16.msra.mxu0 0
        %2951 = vmatprep.subr.bf16.mxu0 0
        %2952 = vmatpush1.bf16.msra.mxu0 0
        %2953 = vmatprep.subr.bf16.mxu0 0
        %2954 = vmatpush1.bf16.msra.mxu0 0
        %2955 = vmatprep.mubr.bf16.mxu0 0
        %2956 = vmatmul.mubr.bf16.gmra.mrb[0].mxu0 %v2918
        %v2957 = vpop.f32.mrb[0].mxu0
        %v2958 = vadd.f32 0.0, %v2957
        %v2959 = vpop.f32.mrb[0].mxu0
        %v2960 = vpop.f32.mrb[0].mxu0
        %v2961 = vpop.f32.mrb[0].mxu0
        %2962 = vdwg.mxu0
        %v2964 = vsel %vm782, %v2824, 0
        %v2967 = vsel %vm834, %v2576, 0
        %2969 = vmatprep.subr.bf16.mxu0 0
        %2970 = vmatpush1.bf16.msra.mxu0 %v2967
        %2971 = vmatprep.subr.bf16.mxu0 0
        %2972 = vmatpush1.bf16.msra.mxu0 0
        %2973 = vmatprep.subr.bf16.mxu0 0
        %2974 = vmatpush1.bf16.msra.mxu0 0
        %2975 = vmatprep.subr.bf16.mxu0 0
        %2976 = vmatpush1.bf16.msra.mxu0 0
        %2977 = vmatprep.subr.bf16.mxu0 0
        %2978 = vmatpush1.bf16.msra.mxu0 0
        %2979 = vmatprep.subr.bf16.mxu0 0
        %2980 = vmatpush1.bf16.msra.mxu0 0
        %2981 = vmatprep.subr.bf16.mxu0 0
        %2982 = vmatpush1.bf16.msra.mxu0 0
        %2983 = vmatprep.subr.bf16.mxu0 0
        %2984 = vmatpush1.bf16.msra.mxu0 0
        %2985 = vmatprep.subr.bf16.mxu0 0
        %2986 = vmatpush1.bf16.msra.mxu0 0
        %2987 = vmatprep.subr.bf16.mxu0 0
        %2988 = vmatpush1.bf16.msra.mxu0 0
        %2989 = vmatprep.subr.bf16.mxu0 0
        %2990 = vmatpush1.bf16.msra.mxu0 0
        %2991 = vmatprep.subr.bf16.mxu0 0
        %2992 = vmatpush1.bf16.msra.mxu0 0
        %2993 = vmatprep.subr.bf16.mxu0 0
        %2994 = vmatpush1.bf16.msra.mxu0 0
        %2995 = vmatprep.subr.bf16.mxu0 0
        %2996 = vmatpush1.bf16.msra.mxu0 0
        %2997 = vmatprep.subr.bf16.mxu0 0
        %2998 = vmatpush1.bf16.msra.mxu0 0
        %2999 = vmatprep.subr.bf16.mxu0 0
        %3000 = vmatpush1.bf16.msra.mxu0 0
        %3001 = vmatprep.mubr.bf16.mxu0 0
        %3002 = vmatmul.mubr.bf16.gmra.mrb[0].mxu0 %v2964
        %v3003 = vpop.f32.mrb[0].mxu0
        %v3004 = vadd.f32 0.0, %v3003
        %v3005 = vpop.f32.mrb[0].mxu0
        %v3006 = vpop.f32.mrb[0].mxu0
        %v3007 = vpop.f32.mrb[0].mxu0
        %3008 = vdwg.mxu0
        %3010 = vrot.lane.b32.xlu0 %v2912, 16
        %v3011 = vpop.permute.xlu0 %3010
        %3014 = vrot.lane.b32.xlu0 %v2958, 32
        %v3015 = vpop.permute.xlu0 %3014
        %3018 = vrot.lane.b32.xlu0 %v3004, 48
        %v3019 = vpop.permute.xlu0 %3018
        %v3021 = vsel %vm584, %v2866, %v3011
        %v3022 = vsel %vm1029, %v3021, %v3015
        %v3023 = vsel %vm1031, %v3022, %v3019
        %v3024 = vpack.c.bf16 %v3023, %v3023
        %s3025 = scalar_lea.vmem %s6, 64
        %v3026 = vld [vmem:[%s3025] sm:$0xf]
        %v3027 = vld [vmem:[%s3025 + $0x4] sm:$0xf]
        %v3028 = vld [vmem:[%s3025 + $0x8] sm:$0xf]
        %v3029 = vld [vmem:[%s3025 + $0xc] sm:$0xf]
        %v3030 = vld [vmem:[%s3025 + $0x10] sm:$0xf]
        %v3031 = vld [vmem:[%s3025 + $0x14] sm:$0xf]
        %v3032 = vld [vmem:[%s3025 + $0x18] sm:$0xf]
        %v3033 = vld [vmem:[%s3025 + $0x1c] sm:$0xf]
        %v3034 = vlaneseq
        %v3035 = vshrl.u32 %v3034, 7
        %v3036 = vsub.s32 0, %v3035
        %v3037 = vrot.slane %v2441, %v3036
        %v3046 = vunpack.c.l.b16 %v3026
        %v3047 = vunpack.c.l.b16 %v3027
        %v3048 = vunpack.c.l.b16 %v3028
        %v3049 = vunpack.c.l.b16 %v3029
        %v3050 = vunpack.c.l.b16 %v3030
        %v3051 = vunpack.c.l.b16 %v3031
        %v3052 = vunpack.c.l.b16 %v3032
        %v3053 = vunpack.c.l.b16 %v3033
        %v3054 = vpack.c.b16 %v3047, %v3046
        %v3055 = vpack.c.b16 %v3049, %v3048
        %v3056 = vpack.c.b16 %v3051, %v3050
        %v3057 = vpack.c.b16 %v3053, %v3052
        %v3063 = vsel %vm508, %v3024, 0
        %3065 = vmatprep.subr.bf16.mxu0 0
        %3066 = vmatpush1.bf16.msra.mxu0 %v3054
        %3067 = vmatprep.subr.bf16.mxu0 0
        %3068 = vmatpush1.bf16.msra.mxu0 %v3055
        %3069 = vmatprep.subr.bf16.mxu0 0
        %3070 = vmatpush1.bf16.msra.mxu0 %v3056
        %3071 = vmatprep.subr.bf16.mxu0 0
        %3072 = vmatpush1.bf16.msra.mxu0 %v3057
        %3073 = vmatprep.subr.bf16.mxu0 0
        %3074 = vmatpush1.bf16.msra.mxu0 0
        %3075 = vmatprep.subr.bf16.mxu0 0
        %3076 = vmatpush1.bf16.msra.mxu0 0
        %3077 = vmatprep.subr.bf16.mxu0 0
        %3078 = vmatpush1.bf16.msra.mxu0 0
        %3079 = vmatprep.subr.bf16.mxu0 0
        %3080 = vmatpush1.bf16.msra.mxu0 0
        %3081 = vmatprep.subr.bf16.mxu0 0
        %3082 = vmatpush1.bf16.msra.mxu0 0
        %3083 = vmatprep.subr.bf16.mxu0 0
        %3084 = vmatpush1.bf16.msra.mxu0 0
        %3085 = vmatprep.subr.bf16.mxu0 0
        %3086 = vmatpush1.bf16.msra.mxu0 0
        %3087 = vmatprep.subr.bf16.mxu0 0
        %3088 = vmatpush1.bf16.msra.mxu0 0
        %3089 = vmatprep.subr.bf16.mxu0 0
        %3090 = vmatpush1.bf16.msra.mxu0 0
        %3091 = vmatprep.subr.bf16.mxu0 0
        %3092 = vmatpush1.bf16.msra.mxu0 0
        %3093 = vmatprep.subr.bf16.mxu0 0
        %3094 = vmatpush1.bf16.msra.mxu0 0
        %3095 = vmatprep.subr.bf16.mxu0 0
        %3096 = vmatpush1.bf16.msra.mxu0 0
        %3097 = vmatprep.mubr.bf16.mxu0 0
        %3098 = vmatmul.mubr.bf16.gmra.mrb[0].mxu0 %v3063
        %v3099 = vpop.f32.mrb[0].mxu0
        %v3100 = vadd.f32 %v3037, %v3099
        %v3101 = vpop.f32.mrb[0].mxu0
        %v3102 = vpop.f32.mrb[0].mxu0
        %v3103 = vpop.f32.mrb[0].mxu0
        %3104 = vdwg.mxu0
        %v3105 = vadd.f32 %v2439, %v3100
        %v3106 = vsel %vm508, %v3105, 0.0
        %3107 = vadd.xlane.f32.xlu0 %v3106
        %v3108 = vpop.xlane.xlu0 %3107
        %v3109 = vmul.f32 %v3108, %v1117
        %v3110 = vsub.f32 %v3105, %v3109
        %v3111 = vmul.f32 %v3110, %v3110
        %v3112 = vsel %vm508, %v3111, 0.0
        %3113 = vadd.xlane.f32.xlu0 %v3112
        %v3114 = vpop.xlane.xlu0 %3113
        %v3115 = vmul.f32 %v3114, %v1117
        %v3116 = vadd.f32 %v3115, 1e-05
        %v3117 = vrsqrt.pop %v3116
        %v3118 = vmul.f32 %v3110, %v3117
        %v3119 = vlaneseq
        %v3120 = vshrl.u32 %v3119, 7
        %v3121 = vsub.s32 1, %v3120
        %v3122 = vrot.slane %v2441, %v3121
        %v3123 = vmul.f32 %v3118, %v3122
        %v3124 = vlaneseq
        %v3125 = vshrl.u32 %v3124, 7
        %v3126 = vsub.s32 2, %v3125
        %v3127 = vrot.slane %v2441, %v3126
        %v3128 = vadd.f32 %v3123, %v3127
        %v3129 = vpack.c.bf16 %v3128, %v3128
        %s3130 = scalar_lea.vmem %s8, 128
        %v3131 = vld [vmem:[%s3130] sm:$0xff]
        %v3132 = vld [vmem:[%s3130 + $0x8] sm:$0xff]
        %v3133 = vld [vmem:[%s3130 + $0x10] sm:$0xff]
        %v3134 = vld [vmem:[%s3130 + $0x18] sm:$0xff]
        %v3135 = vld [vmem:[%s3130 + $0x20] sm:$0xff]
        %v3136 = vld [vmem:[%s3130 + $0x28] sm:$0xff]
        %v3137 = vld [vmem:[%s3130 + $0x30] sm:$0xff]
        %v3138 = vld [vmem:[%s3130 + $0x38] sm:$0xff]
        %s3139 = scalar_lea.vmem %s9, 4
        %v3140 = vld [vmem:[%s3139] sm:$0x3]
        %v3142 = vlaneseq
        %v3143 = vshrl.u32 %v3142, 7
        %v3144 = vsub.s32 0, %v3143
        %v3145 = vrot.slane %v3140, %v3144
        %v3146 = vlaneseq
        %v3147 = vshrl.u32 %v3146, 7
        %v3148 = vsub.s32 1, %v3147
        %v3149 = vrot.slane %v3140, %v3148
        %v3160 = vunpack.c.l.b16 %v3131
        %v3161 = vunpack.c.h.b16 %v3131
        %v3162 = vunpack.c.l.b16 %v3132
        %v3163 = vunpack.c.h.b16 %v3132
        %v3164 = vunpack.c.l.b16 %v3133
        %v3165 = vunpack.c.h.b16 %v3133
        %v3166 = vunpack.c.l.b16 %v3134
        %v3167 = vunpack.c.h.b16 %v3134
        %v3168 = vunpack.c.l.b16 %v3135
        %v3169 = vunpack.c.h.b16 %v3135
        %v3170 = vunpack.c.l.b16 %v3136
        %v3171 = vunpack.c.h.b16 %v3136
        %v3172 = vunpack.c.l.b16 %v3137
        %v3173 = vunpack.c.h.b16 %v3137
        %v3174 = vunpack.c.l.b16 %v3138
        %v3175 = vunpack.c.h.b16 %v3138
        %v3176 = vpack.c.b16 %v3162, %v3160
        %v3177 = vpack.c.b16 %v3163, %v3161
        %v3178 = vpack.c.b16 %v3166, %v3164
        %v3179 = vpack.c.b16 %v3167, %v3165
        %v3180 = vpack.c.b16 %v3170, %v3168
        %v3181 = vpack.c.b16 %v3171, %v3169
        %v3182 = vpack.c.b16 %v3174, %v3172
        %v3183 = vpack.c.b16 %v3175, %v3173
        %v3193 = vsel %vm508, %v3129, 0
        %3195 = vmatprep.subr.bf16.mxu0 %v3177
        %3196 = vmatpush1.bf16.msra.mxu0 %v3176
        %3197 = vmatprep.subr.bf16.mxu0 %v3179
        %3198 = vmatpush1.bf16.msra.mxu0 %v3178
        %3199 = vmatprep.subr.bf16.mxu0 %v3181
        %3200 = vmatpush1.bf16.msra.mxu0 %v3180
        %3201 = vmatprep.subr.bf16.mxu0 %v3183
        %3202 = vmatpush1.bf16.msra.mxu0 %v3182
        %3203 = vmatprep.subr.bf16.mxu0 0
        %3204 = vmatpush1.bf16.msra.mxu0 0
        %3205 = vmatprep.subr.bf16.mxu0 0
        %3206 = vmatpush1.bf16.msra.mxu0 0
        %3207 = vmatprep.subr.bf16.mxu0 0
        %3208 = vmatpush1.bf16.msra.mxu0 0
        %3209 = vmatprep.subr.bf16.mxu0 0
        %3210 = vmatpush1.bf16.msra.mxu0 0
        %3211 = vmatprep.subr.bf16.mxu0 0
        %3212 = vmatpush1.bf16.msra.mxu0 0
        %3213 = vmatprep.subr.bf16.mxu0 0
        %3214 = vmatpush1.bf16.msra.mxu0 0
        %3215 = vmatprep.subr.bf16.mxu0 0
        %3216 = vmatpush1.bf16.msra.mxu0 0
        %3217 = vmatprep.subr.bf16.mxu0 0
        %3218 = vmatpush1.bf16.msra.mxu0 0
        %3219 = vmatprep.subr.bf16.mxu0 0
        %3220 = vmatpush1.bf16.msra.mxu0 0
        %3221 = vmatprep.subr.bf16.mxu0 0
        %3222 = vmatpush1.bf16.msra.mxu0 0
        %3223 = vmatprep.subr.bf16.mxu0 0
        %3224 = vmatpush1.bf16.msra.mxu0 0
        %3225 = vmatprep.subr.bf16.mxu0 0
        %3226 = vmatpush1.bf16.msra.mxu0 0
        %3227 = vmatprep.mubr.bf16.mxu0 0
        %3228 = vmatmul.mubr.bf16.gmra.mrb[0].mxu0 %v3193
        %v3229 = vpop.f32.mrb[0].mxu0
        %v3230 = vadd.f32 %v3145, %v3229
        %v3231 = vpop.f32.mrb[0].mxu0
        %v3232 = vadd.f32 %v3149, %v3231
        %v3233 = vpop.f32.mrb[0].mxu0
        %v3234 = vpop.f32.mrb[0].mxu0
        %3235 = vdwg.mxu0
        %v3236 = vmax.f32 %v3230, 0.0
        %v3237 = vmax.f32 %v3232, 0.0
        %v3238 = vpack.c.bf16 %v3236, %v3236
        %v3239 = vpack.c.bf16 %v3237, %v3237
        %s3240 = scalar_lea.vmem %s10, 256
        %v3241 = vld [vmem:[%s3240] sm:$0xf]
        %v3242 = vld [vmem:[%s3240 + $0x4] sm:$0xf]
        %v3243 = vld [vmem:[%s3240 + $0x8] sm:$0xf]
        %v3244 = vld [vmem:[%s3240 + $0xc] sm:$0xf]
        %v3245 = vld [vmem:[%s3240 + $0x10] sm:$0xf]
        %v3246 = vld [vmem:[%s3240 + $0x14] sm:$0xf]
        %v3247 = vld [vmem:[%s3240 + $0x18] sm:$0xf]
        %v3248 = vld [vmem:[%s3240 + $0x1c] sm:$0xf]
        %v3249 = vld [vmem:[%s3240 + $0x20] sm:$0xf]
        %v3250 = vld [vmem:[%s3240 + $0x24] sm:$0xf]
        %v3251 = vld [vmem:[%s3240 + $0x28] sm:$0xf]
        %v3252 = vld [vmem:[%s3240 + $0x2c] sm:$0xf]
        %v3253 = vld [vmem:[%s3240 + $0x30] sm:$0xf]
        %v3254 = vld [vmem:[%s3240 + $0x34] sm:$0xf]
        %v3255 = vld [vmem:[%s3240 + $0x38] sm:$0xf]
        %v3256 = vld [vmem:[%s3240 + $0x3c] sm:$0xf]
        %v3257 = vld [vmem:[%s3240 + $0x40] sm:$0xf]
        %v3258 = vld [vmem:[%s3240 + $0x44] sm:$0xf]
        %v3259 = vld [vmem:[%s3240 + $0x48] sm:$0xf]
        %v3260 = vld [vmem:[%s3240 + $0x4c] sm:$0xf]
        %v3261 = vld [vmem:[%s3240 + $0x50] sm:$0xf]
        %v3262 = vld [vmem:[%s3240 + $0x54] sm:$0xf]
        %v3263 = vld [vmem:[%s3240 + $0x58] sm:$0xf]
        %v3264 = vld [vmem:[%s3240 + $0x5c] sm:$0xf]
        %v3265 = vld [vmem:[%s3240 + $0x60] sm:$0xf]
        %v3266 = vld [vmem:[%s3240 + $0x64] sm:$0xf]
        %v3267 = vld [vmem:[%s3240 + $0x68] sm:$0xf]
        %v3268 = vld [vmem:[%s3240 + $0x6c] sm:$0xf]
        %v3269 = vld [vmem:[%s3240 + $0x70] sm:$0xf]
        %v3270 = vld [vmem:[%s3240 + $0x74] sm:$0xf]
        %v3271 = vld [vmem:[%s3240 + $0x78] sm:$0xf]
        %v3272 = vld [vmem:[%s3240 + $0x7c] sm:$0xf]
        %v3273 = vlaneseq
        %v3274 = vshrl.u32 %v3273, 7
        %v3275 = vsub.s32 5, %v3274
        %v3276 = vrot.slane %v2441, %v3275
        %v3309 = vunpack.c.l.b16 %v3241
        %v3310 = vunpack.c.l.b16 %v3242
        %v3311 = vunpack.c.l.b16 %v3243
        %v3312 = vunpack.c.l.b16 %v3244
        %v3313 = vunpack.c.l.b16 %v3245
        %v3314 = vunpack.c.l.b16 %v3246
        %v3315 = vunpack.c.l.b16 %v3247
        %v3316 = vunpack.c.l.b16 %v3248
        %v3317 = vunpack.c.l.b16 %v3249
        %v3318 = vunpack.c.l.b16 %v3250
        %v3319 = vunpack.c.l.b16 %v3251
        %v3320 = vunpack.c.l.b16 %v3252
        %v3321 = vunpack.c.l.b16 %v3253
        %v3322 = vunpack.c.l.b16 %v3254
        %v3323 = vunpack.c.l.b16 %v3255
        %v3324 = vunpack.c.l.b16 %v3256
        %v3325 = vunpack.c.l.b16 %v3257
        %v3326 = vunpack.c.l.b16 %v3258
        %v3327 = vunpack.c.l.b16 %v3259
        %v3328 = vunpack.c.l.b16 %v3260
        %v3329 = vunpack.c.l.b16 %v3261
        %v3330 = vunpack.c.l.b16 %v3262
        %v3331 = vunpack.c.l.b16 %v3263
        %v3332 = vunpack.c.l.b16 %v3264
        %v3333 = vunpack.c.l.b16 %v3265
        %v3334 = vunpack.c.l.b16 %v3266
        %v3335 = vunpack.c.l.b16 %v3267
        %v3336 = vunpack.c.l.b16 %v3268
        %v3337 = vunpack.c.l.b16 %v3269
        %v3338 = vunpack.c.l.b16 %v3270
        %v3339 = vunpack.c.l.b16 %v3271
        %v3340 = vunpack.c.l.b16 %v3272
        %v3341 = vpack.c.b16 %v3310, %v3309
        %v3342 = vpack.c.b16 %v3312, %v3311
        %v3343 = vpack.c.b16 %v3314, %v3313
        %v3344 = vpack.c.b16 %v3316, %v3315
        %v3345 = vpack.c.b16 %v3318, %v3317
        %v3346 = vpack.c.b16 %v3320, %v3319
        %v3347 = vpack.c.b16 %v3322, %v3321
        %v3348 = vpack.c.b16 %v3324, %v3323
        %v3349 = vpack.c.b16 %v3326, %v3325
        %v3350 = vpack.c.b16 %v3328, %v3327
        %v3351 = vpack.c.b16 %v3330, %v3329
        %v3352 = vpack.c.b16 %v3332, %v3331
        %v3353 = vpack.c.b16 %v3334, %v3333
        %v3354 = vpack.c.b16 %v3336, %v3335
        %v3355 = vpack.c.b16 %v3338, %v3337
        %v3356 = vpack.c.b16 %v3340, %v3339
        %3373 = vmatprep.subr.bf16.mxu0 0
        %3374 = vmatpush1.bf16.msra.mxu0 %v3341
        %3375 = vmatprep.subr.bf16.mxu0 0
        %3376 = vmatpush1.bf16.msra.mxu0 %v3342
        %3377 = vmatprep.subr.bf16.mxu0 0
        %3378 = vmatpush1.bf16.msra.mxu0 %v3343
        %3379 = vmatprep.subr.bf16.mxu0 0
        %3380 = vmatpush1.bf16.msra.mxu0 %v3344
        %3381 = vmatprep.subr.bf16.mxu0 0
        %3382 = vmatpush1.bf16.msra.mxu0 %v3345
        %3383 = vmatprep.subr.bf16.mxu0 0
        %3384 = vmatpush1.bf16.msra.mxu0 %v3346
        %3385 = vmatprep.subr.bf16.mxu0 0
        %3386 = vmatpush1.bf16.msra.mxu0 %v3347
        %3387 = vmatprep.subr.bf16.mxu0 0
        %3388 = vmatpush1.bf16.msra.mxu0 %v3348
        %3389 = vmatprep.subr.bf16.mxu0 0
        %3390 = vmatpush1.bf16.msra.mxu0 %v3349
        %3391 = vmatprep.subr.bf16.mxu0 0
        %3392 = vmatpush1.bf16.msra.mxu0 %v3350
        %3393 = vmatprep.subr.bf16.mxu0 0
        %3394 = vmatpush1.bf16.msra.mxu0 %v3351
        %3395 = vmatprep.subr.bf16.mxu0 0
        %3396 = vmatpush1.bf16.msra.mxu0 %v3352
        %3397 = vmatprep.subr.bf16.mxu0 0
        %3398 = vmatpush1.bf16.msra.mxu0 %v3353
        %3399 = vmatprep.subr.bf16.mxu0 0
        %3400 = vmatpush1.bf16.msra.mxu0 %v3354
        %3401 = vmatprep.subr.bf16.mxu0 0
        %3402 = vmatpush1.bf16.msra.mxu0 %v3355
        %3403 = vmatprep.subr.bf16.mxu0 0
        %3404 = vmatpush1.bf16.msra.mxu0 %v3356
        %3405 = vmatprep.mubr.bf16.mxu0 %v3239
        %3406 = vmatmul.mubr.bf16.gmra.mrb[0].mxu0 %v3238
        %v3407 = vpop.f32.mrb[0].mxu0
        %v3408 = vadd.f32 %v3276, %v3407
        %v3409 = vpop.f32.mrb[0].mxu0
        %v3410 = vpop.f32.mrb[0].mxu0
        %v3411 = vpop.f32.mrb[0].mxu0
        %3412 = vdwg.mxu0
        %v3413 = vadd.f32 %v3128, %v3408
        %v3414 = vsel %vm508, %v3413, 0.0
        %3415 = vadd.xlane.f32.xlu0 %v3414
        %v3416 = vpop.xlane.xlu0 %3415
        %v3417 = vmul.f32 %v3416, %v1117
        %v3418 = vsub.f32 %v3413, %v3417
        %v3419 = vmul.f32 %v3418, %v3418
        %v3420 = vsel %vm508, %v3419, 0.0
        %3421 = vadd.xlane.f32.xlu0 %v3420
        %v3422 = vpop.xlane.xlu0 %3421
        %v3423 = vmul.f32 %v3422, %v1117
        %v3424 = vadd.f32 %v3423, 1e-05
        %v3425 = vrsqrt.pop %v3424
        %v3426 = vmul.f32 %v3418, %v3425
        %v3427 = vlaneseq
        %v3428 = vshrl.u32 %v3427, 7
        %v3429 = vsub.s32 3, %v3428
        %v3430 = vrot.slane %v2441, %v3429
        %v3431 = vmul.f32 %v3426, %v3430
        %v3432 = vlaneseq
        %v3433 = vshrl.u32 %v3432, 7
        %v3434 = vsub.s32 4, %v3433
        %v3435 = vrot.slane %v2441, %v3434
        %v3436 = vadd.f32 %v3431, %v3435
        %3437 = vst.msk [vmem:[%s377] sm:$0xff] %vm508, %v3436
        %s3438 = sand.u32 %s269, 1
        %s3439 = scalar_lea.sflag [#allocation3], %s3438
        %s3440 = sand.u32 %s269, 1
        %s3441 = smul.addr %s3440, 8
        %s3442 = scalar_lea.vmem [#allocation2], %s3441
        // Predicated region
        $region65: #{tpu_custom_call.1} parent=63 // pred_check
          %p3443 = pneg %p279
        $region66: #{tpu_custom_call.1} parent=63 // pred_check_branch
          %3445 = sbr.rel (%p3443) target = $region68
        $region67: #{tpu_custom_call.1} parent=63 // pred_region
          %s3447 = ssub.s32 128, 128
          %3448 = vsyncadd %s3439, %s3447
          %s3449 = smul.addr %s25, 128
          %s3450 = scalar_lea.hbm %s11, %s3449
          %s3452 = sshll.u32 %s3442, 4
          %s3453 = int_to_ptr.vmem [resolvable:$true] %s3452
          %3455 = dma.vmem_to_hbm [thread:$0]  %s3453, 128, %s3450, %s3439
        $region68: #{tpu_custom_call.1} parent=63 // pred_fallthru
          _
      $region64: #{tpu_custom_call.1} parent=5 // pred_fallthru
        _
      %p3456 = scmp.le.s32.totalorder 2, %s20
      // Predicated region
      $region69: #{tpu_custom_call.1} parent=5 // pred_check
        %p3457 = pneg %p3456
      $region70: #{tpu_custom_call.1} parent=5 // pred_check_branch
        %3459 = sbr.rel (%p3457) target = $region72
      $region71: #{tpu_custom_call.1} parent=5 // pred_region
        %s3460 = ssub.s32 %s20, 2
        // Predicated region
        $region73: #{tpu_custom_call.1} parent=71 // pred_check
          %p3461 = pneg %p285
        $region74: #{tpu_custom_call.1} parent=71 // pred_check_branch
          %3463 = sbr.rel (%p3461) target = $region76
        $region75: #{tpu_custom_call.1} parent=71 // pred_region
          %s3464 = sand.u32 %s270, 1
          %s3465 = scalar_lea.sflag [#allocation3], %s3464
          %s3466 = sand.u32 %s270, 1
          %s3467 = smul.addr %s3466, 8
          %s3468 = scalar_lea.vmem [#allocation2], %s3467
          %3469 = dma.done %s3465, 128
        $region76: #{tpu_custom_call.1} parent=71 // pred_fallthru
          _
      $region72: #{tpu_custom_call.1} parent=5 // pred_fallthru
        _
    $region6: #{tpu_custom_call.1} parent=1 // loop_footer
      %s24 = sadd.s32 1, %s20
    $region7: #{tpu_custom_call.1} parent=1 // loop_footer_branch
      %19 = sbr.rel target = $region3
    $region8: #{tpu_custom_call.1} parent=1 // loop_exit
      _
    %3470 = vsyncpa [#allocation3], 1
    %s3471 = scalar_lea.sflag [#allocation3], 1
    %3472 = vsyncpa %s3471, 1

</llo_original>
